<compile_context>
chip_gen: v7x
topology: tpu7x:2x2x1
jax: 0.10.0
libtpu: 0.0.40
codegen_flags: <defaults>
</compile_context>

<pallas_src>
import math

import jax
import jax.numpy as jnp
from jax.experimental import pallas as pl
from jax.experimental.pallas import tpu as pltpu

# ----------------------------- configuration --------------------------------
IN_CH = 4
PATCH = 4
IMG = 16
EMB = 32
DEPTH = 2
HEADS = 4
MLP_DIM = 64
N_CLASSES = 16
N_PATCH = (IMG // PATCH) ** 2          # 16
N_TOK = N_PATCH + 1                    # 17 (cls token + patches)
HEAD_DIM = EMB // HEADS                # 8
LN_EPS = 1e-6
DTYPE = jnp.float32
MM_DTYPE = jnp.bfloat16                # MXU input dtype; accumulate in f32

# TODO(synk): dropout layers are identity at p=0.0 (the module default) and are
# therefore omitted.


# ------------------------------ in-kernel math -------------------------------
def _mm(a, b):
    """MXU matmul: bf16 inputs, f32 accumulation."""
    return jnp.dot(a.astype(MM_DTYPE), b.astype(MM_DTYPE),
                   preferred_element_type=jnp.float32)


def _layernorm(x, g, b):
    mu = jnp.mean(x, axis=-1, keepdims=True)
    var = jnp.mean((x - mu) ** 2, axis=-1, keepdims=True)
    return (x - mu) * jax.lax.rsqrt(var + LN_EPS) * g + b


def _erf(x):
    # Abramowitz & Stegun 7.1.26 rational approximation (|err| < 1.5e-7),
    # i.e. exact-GELU to within float32 precision, built only from ops that
    # lower cleanly on the TPU VPU/EUP (exp, mul, add, where).
    a1, a2, a3, a4, a5 = 0.254829592, -0.284496736, 1.421413741, -1.453152027, 1.061405429
    p = 0.3275911
    ax = jnp.abs(x)
    t = 1.0 / (1.0 + p * ax)
    poly = ((((a5 * t + a4) * t + a3) * t + a2) * t + a1) * t
    y = 1.0 - poly * jnp.exp(-ax * ax)
    return jnp.where(x >= 0.0, y, -y)


def _gelu(x):
    # exact (erf-based) GELU, matching torch.nn.functional.gelu default
    return 0.5 * x * (1.0 + _erf(x * (1.0 / math.sqrt(2.0))))


# -------------------------------- fused kernel --------------------------------
def vit_fwd_kernel(
    patches_ref, pw_ref, pb_ref, cls_ref, pos_ref,
    ln_ref,                 # (DEPTH, 4, E): [ln1_g, ln1_b, ln2_g, ln2_b]
    wqkv_ref, bqkv_ref,     # (DEPTH, E, 3E), (DEPTH, 1, 3E)
    wo_ref, bo_ref,         # (DEPTH, E, E),  (DEPTH, 1, E)
    w1_ref, b1_ref,         # (DEPTH, E, MLP_DIM), (DEPTH, 1, MLP_DIM)
    w2_ref, b2_ref,         # (DEPTH, MLP_DIM, E), (DEPTH, 1, E)
    fln_ref,                # (2, E): final LN gamma / beta
    hw_ref, hb_ref,         # (E, N_CLASSES), (1, N_CLASSES)
    logits_ref, probs_ref,  # outputs
    ctx_scr,                # VMEM scratch (B, N_TOK, E) f32
):
    B = logits_ref.shape[0]
    N, E, H, d, P = N_TOK, EMB, HEADS, HEAD_DIM, N_PATCH
    scale = 1.0 / math.sqrt(float(d))

    # ---- patch embedding (stride==kernel Conv2d as one matmul) + cls + pos ---
    pe = _mm(patches_ref[...], pw_ref[...]) + pb_ref[...]          # (B*P, E)
    pos = pos_ref[...]                                             # (N, E)
    rows = []
    for b in range(B):
        rows.append(cls_ref[...] + pos[0:1, :])                    # (1, E)
        rows.append(pe[b * P:(b + 1) * P, :] + pos[1:, :])         # (P, E)
    x = jnp.concatenate(rows, axis=0)                              # (B*N, E)

    # ---- transformer encoder (static unroll over depth) ----------------------
    for L in range(DEPTH):
        lnp = ln_ref[L]                                            # (4, E)

        # pre-attention LayerNorm + fused QKV projection (one MXU matmul)
        h = _layernorm(x, lnp[0:1, :], lnp[1:2, :])
        qkv = _mm(h, wqkv_ref[L]) + bqkv_ref[L]                    # (B*N, 3E)
        q = qkv[:, 0:E]
        k = qkv[:, E:2 * E]
        v = qkv[:, 2 * E:3 * E]

        # multi-head attention; per-head context written to VMEM scratch
        for b in range(B):
            r0, r1 = b * N, (b + 1) * N
            for hh in range(H):
                c0, c1 = hh * d, (hh + 1) * d
                qh = q[r0:r1, c0:c1]
                kh = k[r0:r1, c0:c1]
                vh = v[r0:r1, c0:c1]
                s = jax.lax.dot_general(
                    qh.astype(MM_DTYPE), kh.astype(MM_DTYPE),
                    (((1,), (1,)), ((), ())),
                    preferred_element_type=jnp.float32) * scale    # (N, N)
                s = s - jnp.max(s, axis=-1, keepdims=True)
                ex = jnp.exp(s)
                p = ex / jnp.sum(ex, axis=-1, keepdims=True)
                probs_ref[(L * B + b) * H + hh, :, :] = p
                ctx_scr[b, :, c0:c1] = _mm(p, vh)                  # (N, d)

        ctx = jnp.concatenate([ctx_scr[b] for b in range(B)], axis=0)   # (B*N, E)
        x = x + _mm(ctx, wo_ref[L]) + bo_ref[L]                    # residual 1

        # MLP block
        h2 = _layernorm(x, lnp[2:3, :], lnp[3:4, :])
        f = _gelu(_mm(h2, w1_ref[L]) + b1_ref[L])
        x = x + _mm(f, w2_ref[L]) + b2_ref[L]                      # residual 2

    # ---- final LayerNorm (row-wise, so cls rows only is equivalent) + head ---
    cls_rows = jnp.concatenate([x[b * N:b * N + 1, :] for b in range(B)], axis=0)
    hc = _layernorm(cls_rows, fln_ref[0:1, :], fln_ref[1:2, :])
    logits_ref[...] = _mm(hc, hw_ref[...]) + hb_ref[...]


# ------------------------------ full forward ----------------------------------
def vit_forward(x_nchw, params):
    B, C, Himg, Wimg = x_nchw.shape
    nH, nW = Himg // PATCH, Wimg // PATCH

    # stride==kernel Conv2d -> patch extraction (layout glue only).
    # Flattened patch ordering (c, kh, kw) matches the PyTorch Conv2d weight
    # layout (E, C, kh, kw) flattened over its last three dims.
    patches = (
        x_nchw.reshape(B, C, nH, PATCH, nW, PATCH)
        .transpose(0, 2, 4, 1, 3, 5)
        .reshape(B * nH * nW, C * PATCH * PATCH)
    )

    logits, probs_flat = pl.pallas_call(
        vit_fwd_kernel,
        out_shape=(
            jax.ShapeDtypeStruct((B, N_CLASSES), DTYPE),
            jax.ShapeDtypeStruct((DEPTH * B * HEADS, N_TOK, N_TOK), DTYPE),
        ),
        scratch_shapes=[pltpu.VMEM((B, N_TOK, EMB), jnp.float32)],
    )(
        patches,
        params["patch_w"], params["patch_b"],
        params["cls_token"], params["pos_emb"],
        params["ln"], params["wqkv"], params["bqkv"],
        params["wo"], params["bo"],
        params["w1"], params["b1"], params["w2"], params["b2"],
        params["final_ln"], params["head_w"], params["head_b"],
    )
    probs = probs_flat.reshape(DEPTH, B, HEADS, N_TOK, N_TOK)
    return logits, [probs[L] for L in range(DEPTH)]


# ------------------------------ param init ------------------------------------
def init_params(key):
    def nxt():
        nonlocal key
        key, sub = jax.random.split(key)
        return sub

    def rnd(shape, scale):
        return (scale * jax.random.normal(nxt(), shape, DTYPE)).astype(DTYPE)

    k_in = IN_CH * PATCH * PATCH
    params = {
        "patch_w": rnd((k_in, EMB), 1.0 / math.sqrt(k_in)),
        "patch_b": rnd((1, EMB), 0.01),
        "cls_token": rnd((1, EMB), 0.02),
        "pos_emb": rnd((N_TOK, EMB), 0.02),
        "final_ln": jnp.concatenate(
            [jnp.ones((1, EMB), DTYPE), jnp.zeros((1, EMB), DTYPE)], axis=0),
        "head_w": rnd((EMB, N_CLASSES), 1.0 / math.sqrt(EMB)),
        "head_b": rnd((1, N_CLASSES), 0.01),
    }
    ln, wqkv, bqkv, wo, bo, w1, b1, w2, b2 = ([] for _ in range(9))
    for _ in range(DEPTH):
        ln.append(jnp.concatenate(
            [jnp.ones((1, EMB), DTYPE), jnp.zeros((1, EMB), DTYPE),
             jnp.ones((1, EMB), DTYPE), jnp.zeros((1, EMB), DTYPE)], axis=0))
        wqkv.append(rnd((EMB, 3 * EMB), 1.0 / math.sqrt(EMB)))       # fused Q,K,V
        bqkv.append(rnd((1, 3 * EMB), 0.01))
        wo.append(rnd((EMB, EMB), 1.0 / math.sqrt(EMB)))
        bo.append(rnd((1, EMB), 0.01))
        w1.append(rnd((EMB, MLP_DIM), 1.0 / math.sqrt(EMB)))          # xavier-ish
        b1.append(rnd((1, MLP_DIM), 1e-6))
        w2.append(rnd((MLP_DIM, EMB), 1.0 / math.sqrt(MLP_DIM)))
        b2.append(rnd((1, EMB), 1e-6))
    params.update(
        ln=jnp.stack(ln), wqkv=jnp.stack(wqkv), bqkv=jnp.stack(bqkv),
        wo=jnp.stack(wo), bo=jnp.stack(bo),
        w1=jnp.stack(w1), b1=jnp.stack(b1), w2=jnp.stack(w2), b2=jnp.stack(b2),
    )
    return params


# --------------------------------- main ----------------------------------------
if __name__ == "__main__":
    root = jax.random.PRNGKey(0)
    k_params, k_x = jax.random.split(root)
    params = init_params(k_params)

    x = jax.random.normal(k_x, (2, IN_CH, IMG, IMG), DTYPE)   # NCHW, like PyTorch

    fwd = jax.jit(vit_forward)
    logits, attn_probs = fwd(x, params)
    logits = jax.block_until_ready(logits)
    attn_probs = [jax.block_until_ready(p) for p in attn_probs]

    assert logits.shape == (2, N_CLASSES)
    assert len(attn_probs) == DEPTH
    assert all(p.shape == (2, HEADS, N_TOK, N_TOK) for p in attn_probs)
    assert bool(jnp.isfinite(logits).all())
    # attention rows must sum to 1 (softmax, normalized in f32)
    assert bool(jnp.allclose(jnp.sum(attn_probs[0], axis=-1), 1.0, atol=1e-4))
    print("KERNEL_OK")
</pallas_src>

<mosaic_0001>
module attributes {stable_mosaic.version = 11 : i64} {
  func.func @vit_fwd_kernel(%arg0: memref<32x64xf32, #tpu.memory_space<vmem>>, %arg1: memref<64x32xf32, #tpu.memory_space<vmem>>, %arg2: memref<1x32xf32, #tpu.memory_space<vmem>>, %arg3: memref<1x32xf32, #tpu.memory_space<vmem>>, %arg4: memref<17x32xf32, #tpu.memory_space<vmem>>, %arg5: memref<2x4x32xf32, #tpu.memory_space<vmem>>, %arg6: memref<2x32x96xf32, #tpu.memory_space<vmem>>, %arg7: memref<2x1x96xf32, #tpu.memory_space<vmem>>, %arg8: memref<2x32x32xf32, #tpu.memory_space<vmem>>, %arg9: memref<2x1x32xf32, #tpu.memory_space<vmem>>, %arg10: memref<2x32x64xf32, #tpu.memory_space<vmem>>, %arg11: memref<2x1x64xf32, #tpu.memory_space<vmem>>, %arg12: memref<2x64x32xf32, #tpu.memory_space<vmem>>, %arg13: memref<2x1x32xf32, #tpu.memory_space<vmem>>, %arg14: memref<2x32xf32, #tpu.memory_space<vmem>>, %arg15: memref<32x16xf32, #tpu.memory_space<vmem>>, %arg16: memref<1x16xf32, #tpu.memory_space<vmem>>, %arg17: memref<2x16xf32, #tpu.memory_space<vmem>>, %arg18: memref<16x17x17xf32, #tpu.memory_space<vmem>>, %arg19: memref<2x17x32xf32, #tpu.memory_space<vmem>>) attributes {dimension_semantics = [], scalar_prefetch = 0 : i64, scratch_operands = 1 : i64, tpu.core_type = #tpu.core_type<tc>} {
    %c0 = arith.constant 0 : index
    %c0_0 = arith.constant 0 : index
    %0 = vector.load %arg0[%c0, %c0_0] : memref<32x64xf32, #tpu.memory_space<vmem>>, vector<32x64xf32>
    %c0_1 = arith.constant 0 : index
    %c0_2 = arith.constant 0 : index
    %1 = vector.load %arg1[%c0_1, %c0_2] : memref<64x32xf32, #tpu.memory_space<vmem>>, vector<64x32xf32>
    %2 = arith.truncf %0 : vector<32x64xf32> to vector<32x64xbf16>
    %3 = arith.truncf %1 : vector<64x32xf32> to vector<64x32xbf16>
    %cst = arith.constant dense<0.000000e+00> : vector<32x32xf32>
    %4 = tpu.matmul %2, %3, %cst {dimension_numbers = #tpu.dot_dimension_numbers<[1], [0], [0], [1], [0, 0, 1, 1], [], []>} : vector<32x64xbf16>, vector<64x32xbf16>, vector<32x32xf32> -> vector<32x32xf32>
    %c0_3 = arith.constant 0 : index
    %c0_4 = arith.constant 0 : index
    %5 = vector.load %arg2[%c0_3, %c0_4] : memref<1x32xf32, #tpu.memory_space<vmem>>, vector<1x32xf32>
    %6 = vector.broadcast %5 : vector<1x32xf32> to vector<32x32xf32>
    %7 = arith.addf %4, %6 : vector<32x32xf32>
    %c0_5 = arith.constant 0 : index
    %c0_6 = arith.constant 0 : index
    %8 = vector.load %arg4[%c0_5, %c0_6] : memref<17x32xf32, #tpu.memory_space<vmem>>, vector<17x32xf32>
    %c0_7 = arith.constant 0 : index
    %c0_8 = arith.constant 0 : index
    %9 = vector.load %arg3[%c0_7, %c0_8] : memref<1x32xf32, #tpu.memory_space<vmem>>, vector<1x32xf32>
    %10 = vector.extract_strided_slice %8 {offsets = [0, 0], sizes = [1, 32], strides = [1, 1]} : vector<17x32xf32> to vector<1x32xf32>
    %11 = arith.addf %9, %10 : vector<1x32xf32>
    %12 = vector.extract_strided_slice %7 {offsets = [0, 0], sizes = [16, 32], strides = [1, 1]} : vector<32x32xf32> to vector<16x32xf32>
    %13 = vector.extract_strided_slice %8 {offsets = [1, 0], sizes = [16, 32], strides = [1, 1]} : vector<17x32xf32> to vector<16x32xf32>
    %14 = arith.addf %12, %13 : vector<16x32xf32>
    %c0_9 = arith.constant 0 : index
    %c0_10 = arith.constant 0 : index
    %15 = vector.load %arg3[%c0_9, %c0_10] : memref<1x32xf32, #tpu.memory_space<vmem>>, vector<1x32xf32>
    %16 = vector.extract_strided_slice %8 {offsets = [0, 0], sizes = [1, 32], strides = [1, 1]} : vector<17x32xf32> to vector<1x32xf32>
    %17 = arith.addf %15, %16 : vector<1x32xf32>
    %18 = vector.extract_strided_slice %7 {offsets = [16, 0], sizes = [16, 32], strides = [1, 1]} : vector<32x32xf32> to vector<16x32xf32>
    %19 = vector.extract_strided_slice %8 {offsets = [1, 0], sizes = [16, 32], strides = [1, 1]} : vector<17x32xf32> to vector<16x32xf32>
    %20 = arith.addf %18, %19 : vector<16x32xf32>
    %21 = tpu.concatenate %11, %14, %17, %20 in 0 : vector<1x32xf32>, vector<16x32xf32>, vector<1x32xf32>, vector<16x32xf32> -> vector<34x32xf32>
    %c0_11 = arith.constant 0 : index
    %c0_12 = arith.constant 0 : index
    %c0_13 = arith.constant 0 : index
    %22 = vector.load %arg5[%c0_11, %c0_12, %c0_13] : memref<2x4x32xf32, #tpu.memory_space<vmem>>, vector<1x4x32xf32>
    %23 = vector.shape_cast %22 : vector<1x4x32xf32> to vector<4x32xf32>
    %24 = vector.extract_strided_slice %23 {offsets = [0, 0], sizes = [1, 32], strides = [1, 1]} : vector<4x32xf32> to vector<1x32xf32>
    %25 = vector.extract_strided_slice %23 {offsets = [1, 0], sizes = [1, 32], strides = [1, 1]} : vector<4x32xf32> to vector<1x32xf32>
    %cst_14 = arith.constant dense<0.000000e+00> : vector<34xf32>
    %26 = vector.multi_reduction <add>, %21, %cst_14 [1] : vector<34x32xf32> to vector<34xf32>
    %27 = vector.shape_cast %26 : vector<34xf32> to vector<34x1xf32>
    %cst_15 = arith.constant 3.200000e+01 : f32
    %28 = vector.broadcast %cst_15 : f32 to vector<34x1xf32>
    %29 = arith.divf %27, %28 : vector<34x1xf32>
    %30 = vector.broadcast %29 : vector<34x1xf32> to vector<34x32xf32>
    %31 = arith.subf %21, %30 : vector<34x32xf32>
    %32 = arith.mulf %31, %31 : vector<34x32xf32>
    %cst_16 = arith.constant dense<0.000000e+00> : vector<34xf32>
    %33 = vector.multi_reduction <add>, %32, %cst_16 [1] : vector<34x32xf32> to vector<34xf32>
    %34 = vector.shape_cast %33 : vector<34xf32> to vector<34x1xf32>
    %cst_17 = arith.constant 3.200000e+01 : f32
    %35 = vector.broadcast %cst_17 : f32 to vector<34x1xf32>
    %36 = arith.divf %34, %35 : vector<34x1xf32>
    %37 = vector.broadcast %29 : vector<34x1xf32> to vector<34x32xf32>
    %38 = arith.subf %21, %37 : vector<34x32xf32>
    %cst_18 = arith.constant 9.99999997E-7 : f32
    %39 = vector.broadcast %cst_18 : f32 to vector<34x1xf32>
    %40 = arith.addf %36, %39 : vector<34x1xf32>
    %41 = math.rsqrt %40 : vector<34x1xf32>
    %42 = vector.broadcast %41 : vector<34x1xf32> to vector<34x32xf32>
    %43 = arith.mulf %38, %42 : vector<34x32xf32>
    %44 = vector.broadcast %24 : vector<1x32xf32> to vector<34x32xf32>
    %45 = arith.mulf %43, %44 : vector<34x32xf32>
    %46 = vector.broadcast %25 : vector<1x32xf32> to vector<34x32xf32>
    %47 = arith.addf %45, %46 : vector<34x32xf32>
    %c0_19 = arith.constant 0 : index
    %c0_20 = arith.constant 0 : index
    %c0_21 = arith.constant 0 : index
    %48 = vector.load %arg6[%c0_19, %c0_20, %c0_21] : memref<2x32x96xf32, #tpu.memory_space<vmem>>, vector<1x32x96xf32>
    %49 = vector.shape_cast %48 : vector<1x32x96xf32> to vector<32x96xf32>
    %50 = arith.truncf %47 : vector<34x32xf32> to vector<34x32xbf16>
    %51 = arith.truncf %49 : vector<32x96xf32> to vector<32x96xbf16>
    %cst_22 = arith.constant dense<0.000000e+00> : vector<34x96xf32>
    %52 = tpu.matmul %50, %51, %cst_22 {dimension_numbers = #tpu.dot_dimension_numbers<[1], [0], [0], [1], [0, 0, 1, 1], [], []>} : vector<34x32xbf16>, vector<32x96xbf16>, vector<34x96xf32> -> vector<34x96xf32>
    %c0_23 = arith.constant 0 : index
    %c0_24 = arith.constant 0 : index
    %c0_25 = arith.constant 0 : index
    %53 = vector.load %arg7[%c0_23, %c0_24, %c0_25] : memref<2x1x96xf32, #tpu.memory_space<vmem>>, vector<1x1x96xf32>
    %54 = vector.shape_cast %53 : vector<1x1x96xf32> to vector<1x96xf32>
    %55 = vector.broadcast %54 : vector<1x96xf32> to vector<34x96xf32>
    %56 = arith.addf %52, %55 : vector<34x96xf32>
    %57 = vector.extract_strided_slice %56 {offsets = [0, 0], sizes = [34, 32], strides = [1, 1]} : vector<34x96xf32> to vector<34x32xf32>
    %58 = vector.extract_strided_slice %56 {offsets = [0, 32], sizes = [34, 32], strides = [1, 1]} : vector<34x96xf32> to vector<34x32xf32>
    %59 = vector.extract_strided_slice %56 {offsets = [0, 64], sizes = [34, 32], strides = [1, 1]} : vector<34x96xf32> to vector<34x32xf32>
    %60 = vector.extract_strided_slice %57 {offsets = [0, 0], sizes = [17, 8], strides = [1, 1]} : vector<34x32xf32> to vector<17x8xf32>
    %61 = vector.extract_strided_slice %58 {offsets = [0, 0], sizes = [17, 8], strides = [1, 1]} : vector<34x32xf32> to vector<17x8xf32>
    %62 = vector.extract_strided_slice %59 {offsets = [0, 0], sizes = [17, 8], strides = [1, 1]} : vector<34x32xf32> to vector<17x8xf32>
    %63 = arith.truncf %60 : vector<17x8xf32> to vector<17x8xbf16>
    %64 = arith.truncf %61 : vector<17x8xf32> to vector<17x8xbf16>
    %cst_26 = arith.constant dense<0.000000e+00> : vector<17x17xf32>
    %65 = tpu.matmul %63, %64, %cst_26 {dimension_numbers = #tpu.dot_dimension_numbers<[1], [1], [0], [0], [0, 0, 1, 0], [], []>} : vector<17x8xbf16>, vector<17x8xbf16>, vector<17x17xf32> -> vector<17x17xf32>
    %cst_27 = arith.constant 0.353553385 : f32
    %66 = vector.broadcast %cst_27 : f32 to vector<17x17xf32>
    %67 = arith.mulf %65, %66 : vector<17x17xf32>
    %cst_28 = arith.constant dense<0xFF800000> : vector<17xf32>
    %68 = vector.multi_reduction <maximumf>, %67, %cst_28 [1] : vector<17x17xf32> to vector<17xf32>
    %69 = vector.shape_cast %68 : vector<17xf32> to vector<17x1xf32>
    %70 = vector.broadcast %69 : vector<17x1xf32> to vector<17x17xf32>
    %71 = arith.subf %67, %70 : vector<17x17xf32>
    %72 = math.exp %71 : vector<17x17xf32>
    %cst_29 = arith.constant dense<0.000000e+00> : vector<17xf32>
    %73 = vector.multi_reduction <add>, %72, %cst_29 [1] : vector<17x17xf32> to vector<17xf32>
    %74 = vector.shape_cast %73 : vector<17xf32> to vector<17x1xf32>
    %75 = vector.broadcast %74 : vector<17x1xf32> to vector<17x17xf32>
    %76 = arith.divf %72, %75 : vector<17x17xf32>
    %c0_30 = arith.constant 0 : index
    %c0_31 = arith.constant 0 : index
    %c0_32 = arith.constant 0 : index
    %77 = vector.load %arg18[%c0_30, %c0_31, %c0_32] : memref<16x17x17xf32, #tpu.memory_space<vmem>>, vector<1x17x17xf32>
    %78 = vector.shape_cast %77 : vector<1x17x17xf32> to vector<17x17xf32>
    %79 = vector.shape_cast %76 : vector<17x17xf32> to vector<1x17x17xf32>
    tpu.vector_store %arg18[%c0_30, %c0_31, %c0_32], %79 {strides = array<i32>} : memref<16x17x17xf32, #tpu.memory_space<vmem>>, vector<1x17x17xf32>,
    %80 = arith.truncf %76 : vector<17x17xf32> to vector<17x17xbf16>
    %81 = arith.truncf %62 : vector<17x8xf32> to vector<17x8xbf16>
    %cst_33 = arith.constant dense<0.000000e+00> : vector<17x8xf32>
    %82 = tpu.matmul %80, %81, %cst_33 {dimension_numbers = #tpu.dot_dimension_numbers<[1], [0], [0], [1], [0, 0, 1, 1], [], []>} : vector<17x17xbf16>, vector<17x8xbf16>, vector<17x8xf32> -> vector<17x8xf32>
    %c0_34 = arith.constant 0 : index
    %c0_35 = arith.constant 0 : index
    %c0_36 = arith.constant 0 : index
    %83 = vector.load %arg19[%c0_34, %c0_35, %c0_36] : memref<2x17x32xf32, #tpu.memory_space<vmem>>, vector<1x17x8xf32>
    %84 = vector.shape_cast %83 : vector<1x17x8xf32> to vector<17x8xf32>
    %85 = vector.shape_cast %82 : vector<17x8xf32> to vector<1x17x8xf32>
    tpu.vector_store %arg19[%c0_34, %c0_35, %c0_36], %85 {strides = array<i32>} : memref<2x17x32xf32, #tpu.memory_space<vmem>>, vector<1x17x8xf32>,
    %86 = vector.extract_strided_slice %57 {offsets = [0, 8], sizes = [17, 8], strides = [1, 1]} : vector<34x32xf32> to vector<17x8xf32>
    %87 = vector.extract_strided_slice %58 {offsets = [0, 8], sizes = [17, 8], strides = [1, 1]} : vector<34x32xf32> to vector<17x8xf32>
    %88 = vector.extract_strided_slice %59 {offsets = [0, 8], sizes = [17, 8], strides = [1, 1]} : vector<34x32xf32> to vector<17x8xf32>
    %89 = arith.truncf %86 : vector<17x8xf32> to vector<17x8xbf16>
    %90 = arith.truncf %87 : vector<17x8xf32> to vector<17x8xbf16>
    %cst_37 = arith.constant dense<0.000000e+00> : vector<17x17xf32>
    %91 = tpu.matmul %89, %90, %cst_37 {dimension_numbers = #tpu.dot_dimension_numbers<[1], [1], [0], [0], [0, 0, 1, 0], [], []>} : vector<17x8xbf16>, vector<17x8xbf16>, vector<17x17xf32> -> vector<17x17xf32>
    %cst_38 = arith.constant 0.353553385 : f32
    %92 = vector.broadcast %cst_38 : f32 to vector<17x17xf32>
    %93 = arith.mulf %91, %92 : vector<17x17xf32>
    %cst_39 = arith.constant dense<0xFF800000> : vector<17xf32>
    %94 = vector.multi_reduction <maximumf>, %93, %cst_39 [1] : vector<17x17xf32> to vector<17xf32>
    %95 = vector.shape_cast %94 : vector<17xf32> to vector<17x1xf32>
    %96 = vector.broadcast %95 : vector<17x1xf32> to vector<17x17xf32>
    %97 = arith.subf %93, %96 : vector<17x17xf32>
    %98 = math.exp %97 : vector<17x17xf32>
    %cst_40 = arith.constant dense<0.000000e+00> : vector<17xf32>
    %99 = vector.multi_reduction <add>, %98, %cst_40 [1] : vector<17x17xf32> to vector<17xf32>
    %100 = vector.shape_cast %99 : vector<17xf32> to vector<17x1xf32>
    %101 = vector.broadcast %100 : vector<17x1xf32> to vector<17x17xf32>
    %102 = arith.divf %98, %101 : vector<17x17xf32>
    %c1 = arith.constant 1 : index
    %c0_41 = arith.constant 0 : index
    %c0_42 = arith.constant 0 : index
    %103 = vector.load %arg18[%c1, %c0_41, %c0_42] : memref<16x17x17xf32, #tpu.memory_space<vmem>>, vector<1x17x17xf32>
    %104 = vector.shape_cast %103 : vector<1x17x17xf32> to vector<17x17xf32>
    %105 = vector.shape_cast %102 : vector<17x17xf32> to vector<1x17x17xf32>
    tpu.vector_store %arg18[%c1, %c0_41, %c0_42], %105 {strides = array<i32>} : memref<16x17x17xf32, #tpu.memory_space<vmem>>, vector<1x17x17xf32>,
    %106 = arith.truncf %102 : vector<17x17xf32> to vector<17x17xbf16>
    %107 = arith.truncf %88 : vector<17x8xf32> to vector<17x8xbf16>
    %cst_43 = arith.constant dense<0.000000e+00> : vector<17x8xf32>
    %108 = tpu.matmul %106, %107, %cst_43 {dimension_numbers = #tpu.dot_dimension_numbers<[1], [0], [0], [1], [0, 0, 1, 1], [], []>} : vector<17x17xbf16>, vector<17x8xbf16>, vector<17x8xf32> -> vector<17x8xf32>
    %c0_44 = arith.constant 0 : index
    %c0_45 = arith.constant 0 : index
    %c8 = arith.constant 8 : index
    %109 = vector.load %arg19[%c0_44, %c0_45, %c8] : memref<2x17x32xf32, #tpu.memory_space<vmem>>, vector<1x17x8xf32>
    %110 = vector.shape_cast %109 : vector<1x17x8xf32> to vector<17x8xf32>
    %111 = vector.shape_cast %108 : vector<17x8xf32> to vector<1x17x8xf32>
    tpu.vector_store %arg19[%c0_44, %c0_45, %c8], %111 {strides = array<i32>} : memref<2x17x32xf32, #tpu.memory_space<vmem>>, vector<1x17x8xf32>,
    %112 = vector.extract_strided_slice %57 {offsets = [0, 16], sizes = [17, 8], strides = [1, 1]} : vector<34x32xf32> to vector<17x8xf32>
    %113 = vector.extract_strided_slice %58 {offsets = [0, 16], sizes = [17, 8], strides = [1, 1]} : vector<34x32xf32> to vector<17x8xf32>
    %114 = vector.extract_strided_slice %59 {offsets = [0, 16], sizes = [17, 8], strides = [1, 1]} : vector<34x32xf32> to vector<17x8xf32>
    %115 = arith.truncf %112 : vector<17x8xf32> to vector<17x8xbf16>
    %116 = arith.truncf %113 : vector<17x8xf32> to vector<17x8xbf16>
    %cst_46 = arith.constant dense<0.000000e+00> : vector<17x17xf32>
    %117 = tpu.matmul %115, %116, %cst_46 {dimension_numbers = #tpu.dot_dimension_numbers<[1], [1], [0], [0], [0, 0, 1, 0], [], []>} : vector<17x8xbf16>, vector<17x8xbf16>, vector<17x17xf32> -> vector<17x17xf32>
    %cst_47 = arith.constant 0.353553385 : f32
    %118 = vector.broadcast %cst_47 : f32 to vector<17x17xf32>
    %119 = arith.mulf %117, %118 : vector<17x17xf32>
    %cst_48 = arith.constant dense<0xFF800000> : vector<17xf32>
    %120 = vector.multi_reduction <maximumf>, %119, %cst_48 [1] : vector<17x17xf32> to vector<17xf32>
    %121 = vector.shape_cast %120 : vector<17xf32> to vector<17x1xf32>
    %122 = vector.broadcast %121 : vector<17x1xf32> to vector<17x17xf32>
    %123 = arith.subf %119, %122 : vector<17x17xf32>
    %124 = math.exp %123 : vector<17x17xf32>
    %cst_49 = arith.constant dense<0.000000e+00> : vector<17xf32>
    %125 = vector.multi_reduction <add>, %124, %cst_49 [1] : vector<17x17xf32> to vector<17xf32>
    %126 = vector.shape_cast %125 : vector<17xf32> to vector<17x1xf32>
    %127 = vector.broadcast %126 : vector<17x1xf32> to vector<17x17xf32>
    %128 = arith.divf %124, %127 : vector<17x17xf32>
    %c2 = arith.constant 2 : index
    %c0_50 = arith.constant 0 : index
    %c0_51 = arith.constant 0 : index
    %129 = vector.load %arg18[%c2, %c0_50, %c0_51] : memref<16x17x17xf32, #tpu.memory_space<vmem>>, vector<1x17x17xf32>
    %130 = vector.shape_cast %129 : vector<1x17x17xf32> to vector<17x17xf32>
    %131 = vector.shape_cast %128 : vector<17x17xf32> to vector<1x17x17xf32>
    tpu.vector_store %arg18[%c2, %c0_50, %c0_51], %131 {strides = array<i32>} : memref<16x17x17xf32, #tpu.memory_space<vmem>>, vector<1x17x17xf32>,
    %132 = arith.truncf %128 : vector<17x17xf32> to vector<17x17xbf16>
    %133 = arith.truncf %114 : vector<17x8xf32> to vector<17x8xbf16>
    %cst_52 = arith.constant dense<0.000000e+00> : vector<17x8xf32>
    %134 = tpu.matmul %132, %133, %cst_52 {dimension_numbers = #tpu.dot_dimension_numbers<[1], [0], [0], [1], [0, 0, 1, 1], [], []>} : vector<17x17xbf16>, vector<17x8xbf16>, vector<17x8xf32> -> vector<17x8xf32>
    %c0_53 = arith.constant 0 : index
    %c0_54 = arith.constant 0 : index
    %c16 = arith.constant 16 : index
    %135 = vector.load %arg19[%c0_53, %c0_54, %c16] : memref<2x17x32xf32, #tpu.memory_space<vmem>>, vector<1x17x8xf32>
    %136 = vector.shape_cast %135 : vector<1x17x8xf32> to vector<17x8xf32>
    %137 = vector.shape_cast %134 : vector<17x8xf32> to vector<1x17x8xf32>
    tpu.vector_store %arg19[%c0_53, %c0_54, %c16], %137 {strides = array<i32>} : memref<2x17x32xf32, #tpu.memory_space<vmem>>, vector<1x17x8xf32>,
    %138 = vector.extract_strided_slice %57 {offsets = [0, 24], sizes = [17, 8], strides = [1, 1]} : vector<34x32xf32> to vector<17x8xf32>
    %139 = vector.extract_strided_slice %58 {offsets = [0, 24], sizes = [17, 8], strides = [1, 1]} : vector<34x32xf32> to vector<17x8xf32>
    %140 = vector.extract_strided_slice %59 {offsets = [0, 24], sizes = [17, 8], strides = [1, 1]} : vector<34x32xf32> to vector<17x8xf32>
    %141 = arith.truncf %138 : vector<17x8xf32> to vector<17x8xbf16>
    %142 = arith.truncf %139 : vector<17x8xf32> to vector<17x8xbf16>
    %cst_55 = arith.constant dense<0.000000e+00> : vector<17x17xf32>
    %143 = tpu.matmul %141, %142, %cst_55 {dimension_numbers = #tpu.dot_dimension_numbers<[1], [1], [0], [0], [0, 0, 1, 0], [], []>} : vector<17x8xbf16>, vector<17x8xbf16>, vector<17x17xf32> -> vector<17x17xf32>
    %cst_56 = arith.constant 0.353553385 : f32
    %144 = vector.broadcast %cst_56 : f32 to vector<17x17xf32>
    %145 = arith.mulf %143, %144 : vector<17x17xf32>
    %cst_57 = arith.constant dense<0xFF800000> : vector<17xf32>
    %146 = vector.multi_reduction <maximumf>, %145, %cst_57 [1] : vector<17x17xf32> to vector<17xf32>
    %147 = vector.shape_cast %146 : vector<17xf32> to vector<17x1xf32>
    %148 = vector.broadcast %147 : vector<17x1xf32> to vector<17x17xf32>
    %149 = arith.subf %145, %148 : vector<17x17xf32>
    %150 = math.exp %149 : vector<17x17xf32>
    %cst_58 = arith.constant dense<0.000000e+00> : vector<17xf32>
    %151 = vector.multi_reduction <add>, %150, %cst_58 [1] : vector<17x17xf32> to vector<17xf32>
    %152 = vector.shape_cast %151 : vector<17xf32> to vector<17x1xf32>
    %153 = vector.broadcast %152 : vector<17x1xf32> to vector<17x17xf32>
    %154 = arith.divf %150, %153 : vector<17x17xf32>
    %c3 = arith.constant 3 : index
    %c0_59 = arith.constant 0 : index
    %c0_60 = arith.constant 0 : index
    %155 = vector.load %arg18[%c3, %c0_59, %c0_60] : memref<16x17x17xf32, #tpu.memory_space<vmem>>, vector<1x17x17xf32>
    %156 = vector.shape_cast %155 : vector<1x17x17xf32> to vector<17x17xf32>
    %157 = vector.shape_cast %154 : vector<17x17xf32> to vector<1x17x17xf32>
    tpu.vector_store %arg18[%c3, %c0_59, %c0_60], %157 {strides = array<i32>} : memref<16x17x17xf32, #tpu.memory_space<vmem>>, vector<1x17x17xf32>,
    %158 = arith.truncf %154 : vector<17x17xf32> to vector<17x17xbf16>
    %159 = arith.truncf %140 : vector<17x8xf32> to vector<17x8xbf16>
    %cst_61 = arith.constant dense<0.000000e+00> : vector<17x8xf32>
    %160 = tpu.matmul %158, %159, %cst_61 {dimension_numbers = #tpu.dot_dimension_numbers<[1], [0], [0], [1], [0, 0, 1, 1], [], []>} : vector<17x17xbf16>, vector<17x8xbf16>, vector<17x8xf32> -> vector<17x8xf32>
    %c0_62 = arith.constant 0 : index
    %c0_63 = arith.constant 0 : index
    %c24 = arith.constant 24 : index
    %161 = vector.load %arg19[%c0_62, %c0_63, %c24] : memref<2x17x32xf32, #tpu.memory_space<vmem>>, vector<1x17x8xf32>
    %162 = vector.shape_cast %161 : vector<1x17x8xf32> to vector<17x8xf32>
    %163 = vector.shape_cast %160 : vector<17x8xf32> to vector<1x17x8xf32>
    tpu.vector_store %arg19[%c0_62, %c0_63, %c24], %163 {strides = array<i32>} : memref<2x17x32xf32, #tpu.memory_space<vmem>>, vector<1x17x8xf32>,
    %164 = vector.extract_strided_slice %57 {offsets = [17, 0], sizes = [17, 8], strides = [1, 1]} : vector<34x32xf32> to vector<17x8xf32>
    %165 = vector.extract_strided_slice %58 {offsets = [17, 0], sizes = [17, 8], strides = [1, 1]} : vector<34x32xf32> to vector<17x8xf32>
    %166 = vector.extract_strided_slice %59 {offsets = [17, 0], sizes = [17, 8], strides = [1, 1]} : vector<34x32xf32> to vector<17x8xf32>
    %167 = arith.truncf %164 : vector<17x8xf32> to vector<17x8xbf16>
    %168 = arith.truncf %165 : vector<17x8xf32> to vector<17x8xbf16>
    %cst_64 = arith.constant dense<0.000000e+00> : vector<17x17xf32>
    %169 = tpu.matmul %167, %168, %cst_64 {dimension_numbers = #tpu.dot_dimension_numbers<[1], [1], [0], [0], [0, 0, 1, 0], [], []>} : vector<17x8xbf16>, vector<17x8xbf16>, vector<17x17xf32> -> vector<17x17xf32>
    %cst_65 = arith.constant 0.353553385 : f32
    %170 = vector.broadcast %cst_65 : f32 to vector<17x17xf32>
    %171 = arith.mulf %169, %170 : vector<17x17xf32>
    %cst_66 = arith.constant dense<0xFF800000> : vector<17xf32>
    %172 = vector.multi_reduction <maximumf>, %171, %cst_66 [1] : vector<17x17xf32> to vector<17xf32>
    %173 = vector.shape_cast %172 : vector<17xf32> to vector<17x1xf32>
    %174 = vector.broadcast %173 : vector<17x1xf32> to vector<17x17xf32>
    %175 = arith.subf %171, %174 : vector<17x17xf32>
    %176 = math.exp %175 : vector<17x17xf32>
    %cst_67 = arith.constant dense<0.000000e+00> : vector<17xf32>
    %177 = vector.multi_reduction <add>, %176, %cst_67 [1] : vector<17x17xf32> to vector<17xf32>
    %178 = vector.shape_cast %177 : vector<17xf32> to vector<17x1xf32>
    %179 = vector.broadcast %178 : vector<17x1xf32> to vector<17x17xf32>
    %180 = arith.divf %176, %179 : vector<17x17xf32>
    %c4 = arith.constant 4 : index
    %c0_68 = arith.constant 0 : index
    %c0_69 = arith.constant 0 : index
    %181 = vector.load %arg18[%c4, %c0_68, %c0_69] : memref<16x17x17xf32, #tpu.memory_space<vmem>>, vector<1x17x17xf32>
    %182 = vector.shape_cast %181 : vector<1x17x17xf32> to vector<17x17xf32>
    %183 = vector.shape_cast %180 : vector<17x17xf32> to vector<1x17x17xf32>
    tpu.vector_store %arg18[%c4, %c0_68, %c0_69], %183 {strides = array<i32>} : memref<16x17x17xf32, #tpu.memory_space<vmem>>, vector<1x17x17xf32>,
    %184 = arith.truncf %180 : vector<17x17xf32> to vector<17x17xbf16>
    %185 = arith.truncf %166 : vector<17x8xf32> to vector<17x8xbf16>
    %cst_70 = arith.constant dense<0.000000e+00> : vector<17x8xf32>
    %186 = tpu.matmul %184, %185, %cst_70 {dimension_numbers = #tpu.dot_dimension_numbers<[1], [0], [0], [1], [0, 0, 1, 1], [], []>} : vector<17x17xbf16>, vector<17x8xbf16>, vector<17x8xf32> -> vector<17x8xf32>
    %c1_71 = arith.constant 1 : index
    %c0_72 = arith.constant 0 : index
    %c0_73 = arith.constant 0 : index
    %187 = vector.load %arg19[%c1_71, %c0_72, %c0_73] : memref<2x17x32xf32, #tpu.memory_space<vmem>>, vector<1x17x8xf32>
    %188 = vector.shape_cast %187 : vector<1x17x8xf32> to vector<17x8xf32>
    %189 = vector.shape_cast %186 : vector<17x8xf32> to vector<1x17x8xf32>
    tpu.vector_store %arg19[%c1_71, %c0_72, %c0_73], %189 {strides = array<i32>} : memref<2x17x32xf32, #tpu.memory_space<vmem>>, vector<1x17x8xf32>,
    %190 = vector.extract_strided_slice %57 {offsets = [17, 8], sizes = [17, 8], strides = [1, 1]} : vector<34x32xf32> to vector<17x8xf32>
    %191 = vector.extract_strided_slice %58 {offsets = [17, 8], sizes = [17, 8], strides = [1, 1]} : vector<34x32xf32> to vector<17x8xf32>
    %192 = vector.extract_strided_slice %59 {offsets = [17, 8], sizes = [17, 8], strides = [1, 1]} : vector<34x32xf32> to vector<17x8xf32>
    %193 = arith.truncf %190 : vector<17x8xf32> to vector<17x8xbf16>
    %194 = arith.truncf %191 : vector<17x8xf32> to vector<17x8xbf16>
    %cst_74 = arith.constant dense<0.000000e+00> : vector<17x17xf32>
    %195 = tpu.matmul %193, %194, %cst_74 {dimension_numbers = #tpu.dot_dimension_numbers<[1], [1], [0], [0], [0, 0, 1, 0], [], []>} : vector<17x8xbf16>, vector<17x8xbf16>, vector<17x17xf32> -> vector<17x17xf32>
    %cst_75 = arith.constant 0.353553385 : f32
    %196 = vector.broadcast %cst_75 : f32 to vector<17x17xf32>
    %197 = arith.mulf %195, %196 : vector<17x17xf32>
    %cst_76 = arith.constant dense<0xFF800000> : vector<17xf32>
    %198 = vector.multi_reduction <maximumf>, %197, %cst_76 [1] : vector<17x17xf32> to vector<17xf32>
    %199 = vector.shape_cast %198 : vector<17xf32> to vector<17x1xf32>
    %200 = vector.broadcast %199 : vector<17x1xf32> to vector<17x17xf32>
    %201 = arith.subf %197, %200 : vector<17x17xf32>
    %202 = math.exp %201 : vector<17x17xf32>
    %cst_77 = arith.constant dense<0.000000e+00> : vector<17xf32>
    %203 = vector.multi_reduction <add>, %202, %cst_77 [1] : vector<17x17xf32> to vector<17xf32>
    %204 = vector.shape_cast %203 : vector<17xf32> to vector<17x1xf32>
    %205 = vector.broadcast %204 : vector<17x1xf32> to vector<17x17xf32>
    %206 = arith.divf %202, %205 : vector<17x17xf32>
    %c5 = arith.constant 5 : index
    %c0_78 = arith.constant 0 : index
    %c0_79 = arith.constant 0 : index
    %207 = vector.load %arg18[%c5, %c0_78, %c0_79] : memref<16x17x17xf32, #tpu.memory_space<vmem>>, vector<1x17x17xf32>
    %208 = vector.shape_cast %207 : vector<1x17x17xf32> to vector<17x17xf32>
    %209 = vector.shape_cast %206 : vector<17x17xf32> to vector<1x17x17xf32>
    tpu.vector_store %arg18[%c5, %c0_78, %c0_79], %209 {strides = array<i32>} : memref<16x17x17xf32, #tpu.memory_space<vmem>>, vector<1x17x17xf32>,
    %210 = arith.truncf %206 : vector<17x17xf32> to vector<17x17xbf16>
    %211 = arith.truncf %192 : vector<17x8xf32> to vector<17x8xbf16>
    %cst_80 = arith.constant dense<0.000000e+00> : vector<17x8xf32>
    %212 = tpu.matmul %210, %211, %cst_80 {dimension_numbers = #tpu.dot_dimension_numbers<[1], [0], [0], [1], [0, 0, 1, 1], [], []>} : vector<17x17xbf16>, vector<17x8xbf16>, vector<17x8xf32> -> vector<17x8xf32>
    %c1_81 = arith.constant 1 : index
    %c0_82 = arith.constant 0 : index
    %c8_83 = arith.constant 8 : index
    %213 = vector.load %arg19[%c1_81, %c0_82, %c8_83] : memref<2x17x32xf32, #tpu.memory_space<vmem>>, vector<1x17x8xf32>
    %214 = vector.shape_cast %213 : vector<1x17x8xf32> to vector<17x8xf32>
    %215 = vector.shape_cast %212 : vector<17x8xf32> to vector<1x17x8xf32>
    tpu.vector_store %arg19[%c1_81, %c0_82, %c8_83], %215 {strides = array<i32>} : memref<2x17x32xf32, #tpu.memory_space<vmem>>, vector<1x17x8xf32>,
    %216 = vector.extract_strided_slice %57 {offsets = [17, 16], sizes = [17, 8], strides = [1, 1]} : vector<34x32xf32> to vector<17x8xf32>
    %217 = vector.extract_strided_slice %58 {offsets = [17, 16], sizes = [17, 8], strides = [1, 1]} : vector<34x32xf32> to vector<17x8xf32>
    %218 = vector.extract_strided_slice %59 {offsets = [17, 16], sizes = [17, 8], strides = [1, 1]} : vector<34x32xf32> to vector<17x8xf32>
    %219 = arith.truncf %216 : vector<17x8xf32> to vector<17x8xbf16>
    %220 = arith.truncf %217 : vector<17x8xf32> to vector<17x8xbf16>
    %cst_84 = arith.constant dense<0.000000e+00> : vector<17x17xf32>
    %221 = tpu.matmul %219, %220, %cst_84 {dimension_numbers = #tpu.dot_dimension_numbers<[1], [1], [0], [0], [0, 0, 1, 0], [], []>} : vector<17x8xbf16>, vector<17x8xbf16>, vector<17x17xf32> -> vector<17x17xf32>
    %cst_85 = arith.constant 0.353553385 : f32
    %222 = vector.broadcast %cst_85 : f32 to vector<17x17xf32>
    %223 = arith.mulf %221, %222 : vector<17x17xf32>
    %cst_86 = arith.constant dense<0xFF800000> : vector<17xf32>
    %224 = vector.multi_reduction <maximumf>, %223, %cst_86 [1] : vector<17x17xf32> to vector<17xf32>
    %225 = vector.shape_cast %224 : vector<17xf32> to vector<17x1xf32>
    %226 = vector.broadcast %225 : vector<17x1xf32> to vector<17x17xf32>
    %227 = arith.subf %223, %226 : vector<17x17xf32>
    %228 = math.exp %227 : vector<17x17xf32>
    %cst_87 = arith.constant dense<0.000000e+00> : vector<17xf32>
    %229 = vector.multi_reduction <add>, %228, %cst_87 [1] : vector<17x17xf32> to vector<17xf32>
    %230 = vector.shape_cast %229 : vector<17xf32> to vector<17x1xf32>
    %231 = vector.broadcast %230 : vector<17x1xf32> to vector<17x17xf32>
    %232 = arith.divf %228, %231 : vector<17x17xf32>
    %c6 = arith.constant 6 : index
    %c0_88 = arith.constant 0 : index
    %c0_89 = arith.constant 0 : index
    %233 = vector.load %arg18[%c6, %c0_88, %c0_89] : memref<16x17x17xf32, #tpu.memory_space<vmem>>, vector<1x17x17xf32>
    %234 = vector.shape_cast %233 : vector<1x17x17xf32> to vector<17x17xf32>
    %235 = vector.shape_cast %232 : vector<17x17xf32> to vector<1x17x17xf32>
    tpu.vector_store %arg18[%c6, %c0_88, %c0_89], %235 {strides = array<i32>} : memref<16x17x17xf32, #tpu.memory_space<vmem>>, vector<1x17x17xf32>,
    %236 = arith.truncf %232 : vector<17x17xf32> to vector<17x17xbf16>
    %237 = arith.truncf %218 : vector<17x8xf32> to vector<17x8xbf16>
    %cst_90 = arith.constant dense<0.000000e+00> : vector<17x8xf32>
    %238 = tpu.matmul %236, %237, %cst_90 {dimension_numbers = #tpu.dot_dimension_numbers<[1], [0], [0], [1], [0, 0, 1, 1], [], []>} : vector<17x17xbf16>, vector<17x8xbf16>, vector<17x8xf32> -> vector<17x8xf32>
    %c1_91 = arith.constant 1 : index
    %c0_92 = arith.constant 0 : index
    %c16_93 = arith.constant 16 : index
    %239 = vector.load %arg19[%c1_91, %c0_92, %c16_93] : memref<2x17x32xf32, #tpu.memory_space<vmem>>, vector<1x17x8xf32>
    %240 = vector.shape_cast %239 : vector<1x17x8xf32> to vector<17x8xf32>
    %241 = vector.shape_cast %238 : vector<17x8xf32> to vector<1x17x8xf32>
    tpu.vector_store %arg19[%c1_91, %c0_92, %c16_93], %241 {strides = array<i32>} : memref<2x17x32xf32, #tpu.memory_space<vmem>>, vector<1x17x8xf32>,
    %242 = vector.extract_strided_slice %57 {offsets = [17, 24], sizes = [17, 8], strides = [1, 1]} : vector<34x32xf32> to vector<17x8xf32>
    %243 = vector.extract_strided_slice %58 {offsets = [17, 24], sizes = [17, 8], strides = [1, 1]} : vector<34x32xf32> to vector<17x8xf32>
    %244 = vector.extract_strided_slice %59 {offsets = [17, 24], sizes = [17, 8], strides = [1, 1]} : vector<34x32xf32> to vector<17x8xf32>
    %245 = arith.truncf %242 : vector<17x8xf32> to vector<17x8xbf16>
    %246 = arith.truncf %243 : vector<17x8xf32> to vector<17x8xbf16>
    %cst_94 = arith.constant dense<0.000000e+00> : vector<17x17xf32>
    %247 = tpu.matmul %245, %246, %cst_94 {dimension_numbers = #tpu.dot_dimension_numbers<[1], [1], [0], [0], [0, 0, 1, 0], [], []>} : vector<17x8xbf16>, vector<17x8xbf16>, vector<17x17xf32> -> vector<17x17xf32>
    %cst_95 = arith.constant 0.353553385 : f32
    %248 = vector.broadcast %cst_95 : f32 to vector<17x17xf32>
    %249 = arith.mulf %247, %248 : vector<17x17xf32>
    %cst_96 = arith.constant dense<0xFF800000> : vector<17xf32>
    %250 = vector.multi_reduction <maximumf>, %249, %cst_96 [1] : vector<17x17xf32> to vector<17xf32>
    %251 = vector.shape_cast %250 : vector<17xf32> to vector<17x1xf32>
    %252 = vector.broadcast %251 : vector<17x1xf32> to vector<17x17xf32>
    %253 = arith.subf %249, %252 : vector<17x17xf32>
    %254 = math.exp %253 : vector<17x17xf32>
    %cst_97 = arith.constant dense<0.000000e+00> : vector<17xf32>
    %255 = vector.multi_reduction <add>, %254, %cst_97 [1] : vector<17x17xf32> to vector<17xf32>
    %256 = vector.shape_cast %255 : vector<17xf32> to vector<17x1xf32>
    %257 = vector.broadcast %256 : vector<17x1xf32> to vector<17x17xf32>
    %258 = arith.divf %254, %257 : vector<17x17xf32>
    %c7 = arith.constant 7 : index
    %c0_98 = arith.constant 0 : index
    %c0_99 = arith.constant 0 : index
    %259 = vector.load %arg18[%c7, %c0_98, %c0_99] : memref<16x17x17xf32, #tpu.memory_space<vmem>>, vector<1x17x17xf32>
    %260 = vector.shape_cast %259 : vector<1x17x17xf32> to vector<17x17xf32>
    %261 = vector.shape_cast %258 : vector<17x17xf32> to vector<1x17x17xf32>
    tpu.vector_store %arg18[%c7, %c0_98, %c0_99], %261 {strides = array<i32>} : memref<16x17x17xf32, #tpu.memory_space<vmem>>, vector<1x17x17xf32>,
    %262 = arith.truncf %258 : vector<17x17xf32> to vector<17x17xbf16>
    %263 = arith.truncf %244 : vector<17x8xf32> to vector<17x8xbf16>
    %cst_100 = arith.constant dense<0.000000e+00> : vector<17x8xf32>
    %264 = tpu.matmul %262, %263, %cst_100 {dimension_numbers = #tpu.dot_dimension_numbers<[1], [0], [0], [1], [0, 0, 1, 1], [], []>} : vector<17x17xbf16>, vector<17x8xbf16>, vector<17x8xf32> -> vector<17x8xf32>
    %c1_101 = arith.constant 1 : index
    %c0_102 = arith.constant 0 : index
    %c24_103 = arith.constant 24 : index
    %265 = vector.load %arg19[%c1_101, %c0_102, %c24_103] : memref<2x17x32xf32, #tpu.memory_space<vmem>>, vector<1x17x8xf32>
    %266 = vector.shape_cast %265 : vector<1x17x8xf32> to vector<17x8xf32>
    %267 = vector.shape_cast %264 : vector<17x8xf32> to vector<1x17x8xf32>
    tpu.vector_store %arg19[%c1_101, %c0_102, %c24_103], %267 {strides = array<i32>} : memref<2x17x32xf32, #tpu.memory_space<vmem>>, vector<1x17x8xf32>,
    %c0_104 = arith.constant 0 : index
    %c0_105 = arith.constant 0 : index
    %c0_106 = arith.constant 0 : index
    %268 = vector.load %arg19[%c0_104, %c0_105, %c0_106] : memref<2x17x32xf32, #tpu.memory_space<vmem>>, vector<1x17x32xf32>
    %269 = vector.shape_cast %268 : vector<1x17x32xf32> to vector<17x32xf32>
    %c1_107 = arith.constant 1 : index
    %c0_108 = arith.constant 0 : index
    %c0_109 = arith.constant 0 : index
    %270 = vector.load %arg19[%c1_107, %c0_108, %c0_109] : memref<2x17x32xf32, #tpu.memory_space<vmem>>, vector<1x17x32xf32>
    %271 = vector.shape_cast %270 : vector<1x17x32xf32> to vector<17x32xf32>
    %272 = tpu.concatenate %269, %271 in 0 : vector<17x32xf32>, vector<17x32xf32> -> vector<34x32xf32>
    %c0_110 = arith.constant 0 : index
    %c0_111 = arith.constant 0 : index
    %c0_112 = arith.constant 0 : index
    %273 = vector.load %arg8[%c0_110, %c0_111, %c0_112] : memref<2x32x32xf32, #tpu.memory_space<vmem>>, vector<1x32x32xf32>
    %274 = vector.shape_cast %273 : vector<1x32x32xf32> to vector<32x32xf32>
    %275 = arith.truncf %272 : vector<34x32xf32> to vector<34x32xbf16>
    %276 = arith.truncf %274 : vector<32x32xf32> to vector<32x32xbf16>
    %cst_113 = arith.constant dense<0.000000e+00> : vector<34x32xf32>
    %277 = tpu.matmul %275, %276, %cst_113 {dimension_numbers = #tpu.dot_dimension_numbers<[1], [0], [0], [1], [0, 0, 1, 1], [], []>} : vector<34x32xbf16>, vector<32x32xbf16>, vector<34x32xf32> -> vector<34x32xf32>
    %278 = arith.addf %21, %277 : vector<34x32xf32>
    %c0_114 = arith.constant 0 : index
    %c0_115 = arith.constant 0 : index
    %c0_116 = arith.constant 0 : index
    %279 = vector.load %arg9[%c0_114, %c0_115, %c0_116] : memref<2x1x32xf32, #tpu.memory_space<vmem>>, vector<1x1x32xf32>
    %280 = vector.shape_cast %279 : vector<1x1x32xf32> to vector<1x32xf32>
    %281 = vector.broadcast %280 : vector<1x32xf32> to vector<34x32xf32>
    %282 = arith.addf %278, %281 : vector<34x32xf32>
    %283 = vector.extract_strided_slice %23 {offsets = [2, 0], sizes = [1, 32], strides = [1, 1]} : vector<4x32xf32> to vector<1x32xf32>
    %284 = vector.extract_strided_slice %23 {offsets = [3, 0], sizes = [1, 32], strides = [1, 1]} : vector<4x32xf32> to vector<1x32xf32>
    %cst_117 = arith.constant dense<0.000000e+00> : vector<34xf32>
    %285 = vector.multi_reduction <add>, %282, %cst_117 [1] : vector<34x32xf32> to vector<34xf32>
    %286 = vector.shape_cast %285 : vector<34xf32> to vector<34x1xf32>
    %cst_118 = arith.constant 3.200000e+01 : f32
    %287 = vector.broadcast %cst_118 : f32 to vector<34x1xf32>
    %288 = arith.divf %286, %287 : vector<34x1xf32>
    %289 = vector.broadcast %288 : vector<34x1xf32> to vector<34x32xf32>
    %290 = arith.subf %282, %289 : vector<34x32xf32>
    %291 = arith.mulf %290, %290 : vector<34x32xf32>
    %cst_119 = arith.constant dense<0.000000e+00> : vector<34xf32>
    %292 = vector.multi_reduction <add>, %291, %cst_119 [1] : vector<34x32xf32> to vector<34xf32>
    %293 = vector.shape_cast %292 : vector<34xf32> to vector<34x1xf32>
    %cst_120 = arith.constant 3.200000e+01 : f32
    %294 = vector.broadcast %cst_120 : f32 to vector<34x1xf32>
    %295 = arith.divf %293, %294 : vector<34x1xf32>
    %296 = vector.broadcast %288 : vector<34x1xf32> to vector<34x32xf32>
    %297 = arith.subf %282, %296 : vector<34x32xf32>
    %cst_121 = arith.constant 9.99999997E-7 : f32
    %298 = vector.broadcast %cst_121 : f32 to vector<34x1xf32>
    %299 = arith.addf %295, %298 : vector<34x1xf32>
    %300 = math.rsqrt %299 : vector<34x1xf32>
    %301 = vector.broadcast %300 : vector<34x1xf32> to vector<34x32xf32>
    %302 = arith.mulf %297, %301 : vector<34x32xf32>
    %303 = vector.broadcast %283 : vector<1x32xf32> to vector<34x32xf32>
    %304 = arith.mulf %302, %303 : vector<34x32xf32>
    %305 = vector.broadcast %284 : vector<1x32xf32> to vector<34x32xf32>
    %306 = arith.addf %304, %305 : vector<34x32xf32>
    %c0_122 = arith.constant 0 : index
    %c0_123 = arith.constant 0 : index
    %c0_124 = arith.constant 0 : index
    %307 = vector.load %arg10[%c0_122, %c0_123, %c0_124] : memref<2x32x64xf32, #tpu.memory_space<vmem>>, vector<1x32x64xf32>
    %308 = vector.shape_cast %307 : vector<1x32x64xf32> to vector<32x64xf32>
    %309 = arith.truncf %306 : vector<34x32xf32> to vector<34x32xbf16>
    %310 = arith.truncf %308 : vector<32x64xf32> to vector<32x64xbf16>
    %cst_125 = arith.constant dense<0.000000e+00> : vector<34x64xf32>
    %311 = tpu.matmul %309, %310, %cst_125 {dimension_numbers = #tpu.dot_dimension_numbers<[1], [0], [0], [1], [0, 0, 1, 1], [], []>} : vector<34x32xbf16>, vector<32x64xbf16>, vector<34x64xf32> -> vector<34x64xf32>
    %c0_126 = arith.constant 0 : index
    %c0_127 = arith.constant 0 : index
    %c0_128 = arith.constant 0 : index
    %312 = vector.load %arg11[%c0_126, %c0_127, %c0_128] : memref<2x1x64xf32, #tpu.memory_space<vmem>>, vector<1x1x64xf32>
    %313 = vector.shape_cast %312 : vector<1x1x64xf32> to vector<1x64xf32>
    %314 = vector.broadcast %313 : vector<1x64xf32> to vector<34x64xf32>
    %315 = arith.addf %311, %314 : vector<34x64xf32>
    %cst_129 = arith.constant 5.000000e-01 : f32
    %316 = vector.broadcast %cst_129 : f32 to vector<34x64xf32>
    %317 = arith.mulf %316, %315 : vector<34x64xf32>
    %cst_130 = arith.constant 0.707106769 : f32
    %318 = vector.broadcast %cst_130 : f32 to vector<34x64xf32>
    %319 = arith.mulf %315, %318 : vector<34x64xf32>
    %320 = math.absf %319 : vector<34x64xf32>
    %cst_131 = arith.constant 0.327591091 : f32
    %321 = vector.broadcast %cst_131 : f32 to vector<34x64xf32>
    %322 = arith.mulf %321, %320 : vector<34x64xf32>
    %cst_132 = arith.constant 1.000000e+00 : f32
    %323 = vector.broadcast %cst_132 : f32 to vector<34x64xf32>
    %324 = arith.addf %323, %322 : vector<34x64xf32>
    %cst_133 = arith.constant 1.000000e+00 : f32
    %325 = vector.broadcast %cst_133 : f32 to vector<34x64xf32>
    %326 = arith.divf %325, %324 : vector<34x64xf32>
    %cst_134 = arith.constant 1.06140542 : f32
    %327 = vector.broadcast %cst_134 : f32 to vector<34x64xf32>
    %328 = arith.mulf %327, %326 : vector<34x64xf32>
    %cst_135 = arith.constant -1.45315206 : f32
    %329 = vector.broadcast %cst_135 : f32 to vector<34x64xf32>
    %330 = arith.addf %328, %329 : vector<34x64xf32>
    %331 = arith.mulf %330, %326 : vector<34x64xf32>
    %cst_136 = arith.constant 1.42141378 : f32
    %332 = vector.broadcast %cst_136 : f32 to vector<34x64xf32>
    %333 = arith.addf %331, %332 : vector<34x64xf32>
    %334 = arith.mulf %333, %326 : vector<34x64xf32>
    %cst_137 = arith.constant -0.284496725 : f32
    %335 = vector.broadcast %cst_137 : f32 to vector<34x64xf32>
    %336 = arith.addf %334, %335 : vector<34x64xf32>
    %337 = arith.mulf %336, %326 : vector<34x64xf32>
    %cst_138 = arith.constant 0.254829586 : f32
    %338 = vector.broadcast %cst_138 : f32 to vector<34x64xf32>
    %339 = arith.addf %337, %338 : vector<34x64xf32>
    %340 = arith.mulf %339, %326 : vector<34x64xf32>
    %cst_139 = arith.constant 0.000000e+00 : f32
    %341 = vector.broadcast %cst_139 : f32 to vector<34x64xf32>
    %342 = arith.subf %341, %320 : vector<34x64xf32>
    %343 = arith.mulf %342, %320 : vector<34x64xf32>
    %344 = math.exp %343 : vector<34x64xf32>
    %345 = arith.mulf %340, %344 : vector<34x64xf32>
    %cst_140 = arith.constant 1.000000e+00 : f32
    %346 = vector.broadcast %cst_140 : f32 to vector<34x64xf32>
    %347 = arith.subf %346, %345 : vector<34x64xf32>
    %cst_141 = arith.constant 0.000000e+00 : f32
    %348 = vector.broadcast %cst_141 : f32 to vector<34x64xf32>
    %349 = arith.cmpf oge, %319, %348 : vector<34x64xf32>
    %cst_142 = arith.constant 0.000000e+00 : f32
    %350 = vector.broadcast %cst_142 : f32 to vector<34x64xf32>
    %351 = arith.subf %350, %347 : vector<34x64xf32>
    %352 = arith.select %349, %347, %351 : vector<34x64xi1>, vector<34x64xf32>
    %cst_143 = arith.constant 1.000000e+00 : f32
    %353 = vector.broadcast %cst_143 : f32 to vector<34x64xf32>
    %354 = arith.addf %353, %352 : vector<34x64xf32>
    %355 = arith.mulf %317, %354 : vector<34x64xf32>
    %c0_144 = arith.constant 0 : index
    %c0_145 = arith.constant 0 : index
    %c0_146 = arith.constant 0 : index
    %356 = vector.load %arg12[%c0_144, %c0_145, %c0_146] : memref<2x64x32xf32, #tpu.memory_space<vmem>>, vector<1x64x32xf32>
    %357 = vector.shape_cast %356 : vector<1x64x32xf32> to vector<64x32xf32>
    %358 = arith.truncf %355 : vector<34x64xf32> to vector<34x64xbf16>
    %359 = arith.truncf %357 : vector<64x32xf32> to vector<64x32xbf16>
    %cst_147 = arith.constant dense<0.000000e+00> : vector<34x32xf32>
    %360 = tpu.matmul %358, %359, %cst_147 {dimension_numbers = #tpu.dot_dimension_numbers<[1], [0], [0], [1], [0, 0, 1, 1], [], []>} : vector<34x64xbf16>, vector<64x32xbf16>, vector<34x32xf32> -> vector<34x32xf32>
    %361 = arith.addf %282, %360 : vector<34x32xf32>
    %c0_148 = arith.constant 0 : index
    %c0_149 = arith.constant 0 : index
    %c0_150 = arith.constant 0 : index
    %362 = vector.load %arg13[%c0_148, %c0_149, %c0_150] : memref<2x1x32xf32, #tpu.memory_space<vmem>>, vector<1x1x32xf32>
    %363 = vector.shape_cast %362 : vector<1x1x32xf32> to vector<1x32xf32>
    %364 = vector.broadcast %363 : vector<1x32xf32> to vector<34x32xf32>
    %365 = arith.addf %361, %364 : vector<34x32xf32>
    %c1_151 = arith.constant 1 : index
    %c0_152 = arith.constant 0 : index
    %c0_153 = arith.constant 0 : index
    %366 = vector.load %arg5[%c1_151, %c0_152, %c0_153] : memref<2x4x32xf32, #tpu.memory_space<vmem>>, vector<1x4x32xf32>
    %367 = vector.shape_cast %366 : vector<1x4x32xf32> to vector<4x32xf32>
    %368 = vector.extract_strided_slice %367 {offsets = [0, 0], sizes = [1, 32], strides = [1, 1]} : vector<4x32xf32> to vector<1x32xf32>
    %369 = vector.extract_strided_slice %367 {offsets = [1, 0], sizes = [1, 32], strides = [1, 1]} : vector<4x32xf32> to vector<1x32xf32>
    %cst_154 = arith.constant dense<0.000000e+00> : vector<34xf32>
    %370 = vector.multi_reduction <add>, %365, %cst_154 [1] : vector<34x32xf32> to vector<34xf32>
    %371 = vector.shape_cast %370 : vector<34xf32> to vector<34x1xf32>
    %cst_155 = arith.constant 3.200000e+01 : f32
    %372 = vector.broadcast %cst_155 : f32 to vector<34x1xf32>
    %373 = arith.divf %371, %372 : vector<34x1xf32>
    %374 = vector.broadcast %373 : vector<34x1xf32> to vector<34x32xf32>
    %375 = arith.subf %365, %374 : vector<34x32xf32>
    %376 = arith.mulf %375, %375 : vector<34x32xf32>
    %cst_156 = arith.constant dense<0.000000e+00> : vector<34xf32>
    %377 = vector.multi_reduction <add>, %376, %cst_156 [1] : vector<34x32xf32> to vector<34xf32>
    %378 = vector.shape_cast %377 : vector<34xf32> to vector<34x1xf32>
    %cst_157 = arith.constant 3.200000e+01 : f32
    %379 = vector.broadcast %cst_157 : f32 to vector<34x1xf32>
    %380 = arith.divf %378, %379 : vector<34x1xf32>
    %381 = vector.broadcast %373 : vector<34x1xf32> to vector<34x32xf32>
    %382 = arith.subf %365, %381 : vector<34x32xf32>
    %cst_158 = arith.constant 9.99999997E-7 : f32
    %383 = vector.broadcast %cst_158 : f32 to vector<34x1xf32>
    %384 = arith.addf %380, %383 : vector<34x1xf32>
    %385 = math.rsqrt %384 : vector<34x1xf32>
    %386 = vector.broadcast %385 : vector<34x1xf32> to vector<34x32xf32>
    %387 = arith.mulf %382, %386 : vector<34x32xf32>
    %388 = vector.broadcast %368 : vector<1x32xf32> to vector<34x32xf32>
    %389 = arith.mulf %387, %388 : vector<34x32xf32>
    %390 = vector.broadcast %369 : vector<1x32xf32> to vector<34x32xf32>
    %391 = arith.addf %389, %390 : vector<34x32xf32>
    %c1_159 = arith.constant 1 : index
    %c0_160 = arith.constant 0 : index
    %c0_161 = arith.constant 0 : index
    %392 = vector.load %arg6[%c1_159, %c0_160, %c0_161] : memref<2x32x96xf32, #tpu.memory_space<vmem>>, vector<1x32x96xf32>
    %393 = vector.shape_cast %392 : vector<1x32x96xf32> to vector<32x96xf32>
    %394 = arith.truncf %391 : vector<34x32xf32> to vector<34x32xbf16>
    %395 = arith.truncf %393 : vector<32x96xf32> to vector<32x96xbf16>
    %cst_162 = arith.constant dense<0.000000e+00> : vector<34x96xf32>
    %396 = tpu.matmul %394, %395, %cst_162 {dimension_numbers = #tpu.dot_dimension_numbers<[1], [0], [0], [1], [0, 0, 1, 1], [], []>} : vector<34x32xbf16>, vector<32x96xbf16>, vector<34x96xf32> -> vector<34x96xf32>
    %c1_163 = arith.constant 1 : index
    %c0_164 = arith.constant 0 : index
    %c0_165 = arith.constant 0 : index
    %397 = vector.load %arg7[%c1_163, %c0_164, %c0_165] : memref<2x1x96xf32, #tpu.memory_space<vmem>>, vector<1x1x96xf32>
    %398 = vector.shape_cast %397 : vector<1x1x96xf32> to vector<1x96xf32>
    %399 = vector.broadcast %398 : vector<1x96xf32> to vector<34x96xf32>
    %400 = arith.addf %396, %399 : vector<34x96xf32>
    %401 = vector.extract_strided_slice %400 {offsets = [0, 0], sizes = [34, 32], strides = [1, 1]} : vector<34x96xf32> to vector<34x32xf32>
    %402 = vector.extract_strided_slice %400 {offsets = [0, 32], sizes = [34, 32], strides = [1, 1]} : vector<34x96xf32> to vector<34x32xf32>
    %403 = vector.extract_strided_slice %400 {offsets = [0, 64], sizes = [34, 32], strides = [1, 1]} : vector<34x96xf32> to vector<34x32xf32>
    %404 = vector.extract_strided_slice %401 {offsets = [0, 0], sizes = [17, 8], strides = [1, 1]} : vector<34x32xf32> to vector<17x8xf32>
    %405 = vector.extract_strided_slice %402 {offsets = [0, 0], sizes = [17, 8], strides = [1, 1]} : vector<34x32xf32> to vector<17x8xf32>
    %406 = vector.extract_strided_slice %403 {offsets = [0, 0], sizes = [17, 8], strides = [1, 1]} : vector<34x32xf32> to vector<17x8xf32>
    %407 = arith.truncf %404 : vector<17x8xf32> to vector<17x8xbf16>
    %408 = arith.truncf %405 : vector<17x8xf32> to vector<17x8xbf16>
    %cst_166 = arith.constant dense<0.000000e+00> : vector<17x17xf32>
    %409 = tpu.matmul %407, %408, %cst_166 {dimension_numbers = #tpu.dot_dimension_numbers<[1], [1], [0], [0], [0, 0, 1, 0], [], []>} : vector<17x8xbf16>, vector<17x8xbf16>, vector<17x17xf32> -> vector<17x17xf32>
    %cst_167 = arith.constant 0.353553385 : f32
    %410 = vector.broadcast %cst_167 : f32 to vector<17x17xf32>
    %411 = arith.mulf %409, %410 : vector<17x17xf32>
    %cst_168 = arith.constant dense<0xFF800000> : vector<17xf32>
    %412 = vector.multi_reduction <maximumf>, %411, %cst_168 [1] : vector<17x17xf32> to vector<17xf32>
    %413 = vector.shape_cast %412 : vector<17xf32> to vector<17x1xf32>
    %414 = vector.broadcast %413 : vector<17x1xf32> to vector<17x17xf32>
    %415 = arith.subf %411, %414 : vector<17x17xf32>
    %416 = math.exp %415 : vector<17x17xf32>
    %cst_169 = arith.constant dense<0.000000e+00> : vector<17xf32>
    %417 = vector.multi_reduction <add>, %416, %cst_169 [1] : vector<17x17xf32> to vector<17xf32>
    %418 = vector.shape_cast %417 : vector<17xf32> to vector<17x1xf32>
    %419 = vector.broadcast %418 : vector<17x1xf32> to vector<17x17xf32>
    %420 = arith.divf %416, %419 : vector<17x17xf32>
    %c8_170 = arith.constant 8 : index
    %c0_171 = arith.constant 0 : index
    %c0_172 = arith.constant 0 : index
    %421 = vector.load %arg18[%c8_170, %c0_171, %c0_172] : memref<16x17x17xf32, #tpu.memory_space<vmem>>, vector<1x17x17xf32>
    %422 = vector.shape_cast %421 : vector<1x17x17xf32> to vector<17x17xf32>
    %423 = vector.shape_cast %420 : vector<17x17xf32> to vector<1x17x17xf32>
    tpu.vector_store %arg18[%c8_170, %c0_171, %c0_172], %423 {strides = array<i32>} : memref<16x17x17xf32, #tpu.memory_space<vmem>>, vector<1x17x17xf32>,
    %424 = arith.truncf %420 : vector<17x17xf32> to vector<17x17xbf16>
    %425 = arith.truncf %406 : vector<17x8xf32> to vector<17x8xbf16>
    %cst_173 = arith.constant dense<0.000000e+00> : vector<17x8xf32>
    %426 = tpu.matmul %424, %425, %cst_173 {dimension_numbers = #tpu.dot_dimension_numbers<[1], [0], [0], [1], [0, 0, 1, 1], [], []>} : vector<17x17xbf16>, vector<17x8xbf16>, vector<17x8xf32> -> vector<17x8xf32>
    %c0_174 = arith.constant 0 : index
    %c0_175 = arith.constant 0 : index
    %c0_176 = arith.constant 0 : index
    %427 = vector.load %arg19[%c0_174, %c0_175, %c0_176] : memref<2x17x32xf32, #tpu.memory_space<vmem>>, vector<1x17x8xf32>
    %428 = vector.shape_cast %427 : vector<1x17x8xf32> to vector<17x8xf32>
    %429 = vector.shape_cast %426 : vector<17x8xf32> to vector<1x17x8xf32>
    tpu.vector_store %arg19[%c0_174, %c0_175, %c0_176], %429 {strides = array<i32>} : memref<2x17x32xf32, #tpu.memory_space<vmem>>, vector<1x17x8xf32>,
    %430 = vector.extract_strided_slice %401 {offsets = [0, 8], sizes = [17, 8], strides = [1, 1]} : vector<34x32xf32> to vector<17x8xf32>
    %431 = vector.extract_strided_slice %402 {offsets = [0, 8], sizes = [17, 8], strides = [1, 1]} : vector<34x32xf32> to vector<17x8xf32>
    %432 = vector.extract_strided_slice %403 {offsets = [0, 8], sizes = [17, 8], strides = [1, 1]} : vector<34x32xf32> to vector<17x8xf32>
    %433 = arith.truncf %430 : vector<17x8xf32> to vector<17x8xbf16>
    %434 = arith.truncf %431 : vector<17x8xf32> to vector<17x8xbf16>
    %cst_177 = arith.constant dense<0.000000e+00> : vector<17x17xf32>
    %435 = tpu.matmul %433, %434, %cst_177 {dimension_numbers = #tpu.dot_dimension_numbers<[1], [1], [0], [0], [0, 0, 1, 0], [], []>} : vector<17x8xbf16>, vector<17x8xbf16>, vector<17x17xf32> -> vector<17x17xf32>
    %cst_178 = arith.constant 0.353553385 : f32
    %436 = vector.broadcast %cst_178 : f32 to vector<17x17xf32>
    %437 = arith.mulf %435, %436 : vector<17x17xf32>
    %cst_179 = arith.constant dense<0xFF800000> : vector<17xf32>
    %438 = vector.multi_reduction <maximumf>, %437, %cst_179 [1] : vector<17x17xf32> to vector<17xf32>
    %439 = vector.shape_cast %438 : vector<17xf32> to vector<17x1xf32>
    %440 = vector.broadcast %439 : vector<17x1xf32> to vector<17x17xf32>
    %441 = arith.subf %437, %440 : vector<17x17xf32>
    %442 = math.exp %441 : vector<17x17xf32>
    %cst_180 = arith.constant dense<0.000000e+00> : vector<17xf32>
    %443 = vector.multi_reduction <add>, %442, %cst_180 [1] : vector<17x17xf32> to vector<17xf32>
    %444 = vector.shape_cast %443 : vector<17xf32> to vector<17x1xf32>
    %445 = vector.broadcast %444 : vector<17x1xf32> to vector<17x17xf32>
    %446 = arith.divf %442, %445 : vector<17x17xf32>
    %c9 = arith.constant 9 : index
    %c0_181 = arith.constant 0 : index
    %c0_182 = arith.constant 0 : index
    %447 = vector.load %arg18[%c9, %c0_181, %c0_182] : memref<16x17x17xf32, #tpu.memory_space<vmem>>, vector<1x17x17xf32>
    %448 = vector.shape_cast %447 : vector<1x17x17xf32> to vector<17x17xf32>
    %449 = vector.shape_cast %446 : vector<17x17xf32> to vector<1x17x17xf32>
    tpu.vector_store %arg18[%c9, %c0_181, %c0_182], %449 {strides = array<i32>} : memref<16x17x17xf32, #tpu.memory_space<vmem>>, vector<1x17x17xf32>,
    %450 = arith.truncf %446 : vector<17x17xf32> to vector<17x17xbf16>
    %451 = arith.truncf %432 : vector<17x8xf32> to vector<17x8xbf16>
    %cst_183 = arith.constant dense<0.000000e+00> : vector<17x8xf32>
    %452 = tpu.matmul %450, %451, %cst_183 {dimension_numbers = #tpu.dot_dimension_numbers<[1], [0], [0], [1], [0, 0, 1, 1], [], []>} : vector<17x17xbf16>, vector<17x8xbf16>, vector<17x8xf32> -> vector<17x8xf32>
    %c0_184 = arith.constant 0 : index
    %c0_185 = arith.constant 0 : index
    %c8_186 = arith.constant 8 : index
    %453 = vector.load %arg19[%c0_184, %c0_185, %c8_186] : memref<2x17x32xf32, #tpu.memory_space<vmem>>, vector<1x17x8xf32>
    %454 = vector.shape_cast %453 : vector<1x17x8xf32> to vector<17x8xf32>
    %455 = vector.shape_cast %452 : vector<17x8xf32> to vector<1x17x8xf32>
    tpu.vector_store %arg19[%c0_184, %c0_185, %c8_186], %455 {strides = array<i32>} : memref<2x17x32xf32, #tpu.memory_space<vmem>>, vector<1x17x8xf32>,
    %456 = vector.extract_strided_slice %401 {offsets = [0, 16], sizes = [17, 8], strides = [1, 1]} : vector<34x32xf32> to vector<17x8xf32>
    %457 = vector.extract_strided_slice %402 {offsets = [0, 16], sizes = [17, 8], strides = [1, 1]} : vector<34x32xf32> to vector<17x8xf32>
    %458 = vector.extract_strided_slice %403 {offsets = [0, 16], sizes = [17, 8], strides = [1, 1]} : vector<34x32xf32> to vector<17x8xf32>
    %459 = arith.truncf %456 : vector<17x8xf32> to vector<17x8xbf16>
    %460 = arith.truncf %457 : vector<17x8xf32> to vector<17x8xbf16>
    %cst_187 = arith.constant dense<0.000000e+00> : vector<17x17xf32>
    %461 = tpu.matmul %459, %460, %cst_187 {dimension_numbers = #tpu.dot_dimension_numbers<[1], [1], [0], [0], [0, 0, 1, 0], [], []>} : vector<17x8xbf16>, vector<17x8xbf16>, vector<17x17xf32> -> vector<17x17xf32>
    %cst_188 = arith.constant 0.353553385 : f32
    %462 = vector.broadcast %cst_188 : f32 to vector<17x17xf32>
    %463 = arith.mulf %461, %462 : vector<17x17xf32>
    %cst_189 = arith.constant dense<0xFF800000> : vector<17xf32>
    %464 = vector.multi_reduction <maximumf>, %463, %cst_189 [1] : vector<17x17xf32> to vector<17xf32>
    %465 = vector.shape_cast %464 : vector<17xf32> to vector<17x1xf32>
    %466 = vector.broadcast %465 : vector<17x1xf32> to vector<17x17xf32>
    %467 = arith.subf %463, %466 : vector<17x17xf32>
    %468 = math.exp %467 : vector<17x17xf32>
    %cst_190 = arith.constant dense<0.000000e+00> : vector<17xf32>
    %469 = vector.multi_reduction <add>, %468, %cst_190 [1] : vector<17x17xf32> to vector<17xf32>
    %470 = vector.shape_cast %469 : vector<17xf32> to vector<17x1xf32>
    %471 = vector.broadcast %470 : vector<17x1xf32> to vector<17x17xf32>
    %472 = arith.divf %468, %471 : vector<17x17xf32>
    %c10 = arith.constant 10 : index
    %c0_191 = arith.constant 0 : index
    %c0_192 = arith.constant 0 : index
    %473 = vector.load %arg18[%c10, %c0_191, %c0_192] : memref<16x17x17xf32, #tpu.memory_space<vmem>>, vector<1x17x17xf32>
    %474 = vector.shape_cast %473 : vector<1x17x17xf32> to vector<17x17xf32>
    %475 = vector.shape_cast %472 : vector<17x17xf32> to vector<1x17x17xf32>
    tpu.vector_store %arg18[%c10, %c0_191, %c0_192], %475 {strides = array<i32>} : memref<16x17x17xf32, #tpu.memory_space<vmem>>, vector<1x17x17xf32>,
    %476 = arith.truncf %472 : vector<17x17xf32> to vector<17x17xbf16>
    %477 = arith.truncf %458 : vector<17x8xf32> to vector<17x8xbf16>
    %cst_193 = arith.constant dense<0.000000e+00> : vector<17x8xf32>
    %478 = tpu.matmul %476, %477, %cst_193 {dimension_numbers = #tpu.dot_dimension_numbers<[1], [0], [0], [1], [0, 0, 1, 1], [], []>} : vector<17x17xbf16>, vector<17x8xbf16>, vector<17x8xf32> -> vector<17x8xf32>
    %c0_194 = arith.constant 0 : index
    %c0_195 = arith.constant 0 : index
    %c16_196 = arith.constant 16 : index
    %479 = vector.load %arg19[%c0_194, %c0_195, %c16_196] : memref<2x17x32xf32, #tpu.memory_space<vmem>>, vector<1x17x8xf32>
    %480 = vector.shape_cast %479 : vector<1x17x8xf32> to vector<17x8xf32>
    %481 = vector.shape_cast %478 : vector<17x8xf32> to vector<1x17x8xf32>
    tpu.vector_store %arg19[%c0_194, %c0_195, %c16_196], %481 {strides = array<i32>} : memref<2x17x32xf32, #tpu.memory_space<vmem>>, vector<1x17x8xf32>,
    %482 = vector.extract_strided_slice %401 {offsets = [0, 24], sizes = [17, 8], strides = [1, 1]} : vector<34x32xf32> to vector<17x8xf32>
    %483 = vector.extract_strided_slice %402 {offsets = [0, 24], sizes = [17, 8], strides = [1, 1]} : vector<34x32xf32> to vector<17x8xf32>
    %484 = vector.extract_strided_slice %403 {offsets = [0, 24], sizes = [17, 8], strides = [1, 1]} : vector<34x32xf32> to vector<17x8xf32>
    %485 = arith.truncf %482 : vector<17x8xf32> to vector<17x8xbf16>
    %486 = arith.truncf %483 : vector<17x8xf32> to vector<17x8xbf16>
    %cst_197 = arith.constant dense<0.000000e+00> : vector<17x17xf32>
    %487 = tpu.matmul %485, %486, %cst_197 {dimension_numbers = #tpu.dot_dimension_numbers<[1], [1], [0], [0], [0, 0, 1, 0], [], []>} : vector<17x8xbf16>, vector<17x8xbf16>, vector<17x17xf32> -> vector<17x17xf32>
    %cst_198 = arith.constant 0.353553385 : f32
    %488 = vector.broadcast %cst_198 : f32 to vector<17x17xf32>
    %489 = arith.mulf %487, %488 : vector<17x17xf32>
    %cst_199 = arith.constant dense<0xFF800000> : vector<17xf32>
    %490 = vector.multi_reduction <maximumf>, %489, %cst_199 [1] : vector<17x17xf32> to vector<17xf32>
    %491 = vector.shape_cast %490 : vector<17xf32> to vector<17x1xf32>
    %492 = vector.broadcast %491 : vector<17x1xf32> to vector<17x17xf32>
    %493 = arith.subf %489, %492 : vector<17x17xf32>
    %494 = math.exp %493 : vector<17x17xf32>
    %cst_200 = arith.constant dense<0.000000e+00> : vector<17xf32>
    %495 = vector.multi_reduction <add>, %494, %cst_200 [1] : vector<17x17xf32> to vector<17xf32>
    %496 = vector.shape_cast %495 : vector<17xf32> to vector<17x1xf32>
    %497 = vector.broadcast %496 : vector<17x1xf32> to vector<17x17xf32>
    %498 = arith.divf %494, %497 : vector<17x17xf32>
    %c11 = arith.constant 11 : index
    %c0_201 = arith.constant 0 : index
    %c0_202 = arith.constant 0 : index
    %499 = vector.load %arg18[%c11, %c0_201, %c0_202] : memref<16x17x17xf32, #tpu.memory_space<vmem>>, vector<1x17x17xf32>
    %500 = vector.shape_cast %499 : vector<1x17x17xf32> to vector<17x17xf32>
    %501 = vector.shape_cast %498 : vector<17x17xf32> to vector<1x17x17xf32>
    tpu.vector_store %arg18[%c11, %c0_201, %c0_202], %501 {strides = array<i32>} : memref<16x17x17xf32, #tpu.memory_space<vmem>>, vector<1x17x17xf32>,
    %502 = arith.truncf %498 : vector<17x17xf32> to vector<17x17xbf16>
    %503 = arith.truncf %484 : vector<17x8xf32> to vector<17x8xbf16>
    %cst_203 = arith.constant dense<0.000000e+00> : vector<17x8xf32>
    %504 = tpu.matmul %502, %503, %cst_203 {dimension_numbers = #tpu.dot_dimension_numbers<[1], [0], [0], [1], [0, 0, 1, 1], [], []>} : vector<17x17xbf16>, vector<17x8xbf16>, vector<17x8xf32> -> vector<17x8xf32>
    %c0_204 = arith.constant 0 : index
    %c0_205 = arith.constant 0 : index
    %c24_206 = arith.constant 24 : index
    %505 = vector.load %arg19[%c0_204, %c0_205, %c24_206] : memref<2x17x32xf32, #tpu.memory_space<vmem>>, vector<1x17x8xf32>
    %506 = vector.shape_cast %505 : vector<1x17x8xf32> to vector<17x8xf32>
    %507 = vector.shape_cast %504 : vector<17x8xf32> to vector<1x17x8xf32>
    tpu.vector_store %arg19[%c0_204, %c0_205, %c24_206], %507 {strides = array<i32>} : memref<2x17x32xf32, #tpu.memory_space<vmem>>, vector<1x17x8xf32>,
    %508 = vector.extract_strided_slice %401 {offsets = [17, 0], sizes = [17, 8], strides = [1, 1]} : vector<34x32xf32> to vector<17x8xf32>
    %509 = vector.extract_strided_slice %402 {offsets = [17, 0], sizes = [17, 8], strides = [1, 1]} : vector<34x32xf32> to vector<17x8xf32>
    %510 = vector.extract_strided_slice %403 {offsets = [17, 0], sizes = [17, 8], strides = [1, 1]} : vector<34x32xf32> to vector<17x8xf32>
    %511 = arith.truncf %508 : vector<17x8xf32> to vector<17x8xbf16>
    %512 = arith.truncf %509 : vector<17x8xf32> to vector<17x8xbf16>
    %cst_207 = arith.constant dense<0.000000e+00> : vector<17x17xf32>
    %513 = tpu.matmul %511, %512, %cst_207 {dimension_numbers = #tpu.dot_dimension_numbers<[1], [1], [0], [0], [0, 0, 1, 0], [], []>} : vector<17x8xbf16>, vector<17x8xbf16>, vector<17x17xf32> -> vector<17x17xf32>
    %cst_208 = arith.constant 0.353553385 : f32
    %514 = vector.broadcast %cst_208 : f32 to vector<17x17xf32>
    %515 = arith.mulf %513, %514 : vector<17x17xf32>
    %cst_209 = arith.constant dense<0xFF800000> : vector<17xf32>
    %516 = vector.multi_reduction <maximumf>, %515, %cst_209 [1] : vector<17x17xf32> to vector<17xf32>
    %517 = vector.shape_cast %516 : vector<17xf32> to vector<17x1xf32>
    %518 = vector.broadcast %517 : vector<17x1xf32> to vector<17x17xf32>
    %519 = arith.subf %515, %518 : vector<17x17xf32>
    %520 = math.exp %519 : vector<17x17xf32>
    %cst_210 = arith.constant dense<0.000000e+00> : vector<17xf32>
    %521 = vector.multi_reduction <add>, %520, %cst_210 [1] : vector<17x17xf32> to vector<17xf32>
    %522 = vector.shape_cast %521 : vector<17xf32> to vector<17x1xf32>
    %523 = vector.broadcast %522 : vector<17x1xf32> to vector<17x17xf32>
    %524 = arith.divf %520, %523 : vector<17x17xf32>
    %c12 = arith.constant 12 : index
    %c0_211 = arith.constant 0 : index
    %c0_212 = arith.constant 0 : index
    %525 = vector.load %arg18[%c12, %c0_211, %c0_212] : memref<16x17x17xf32, #tpu.memory_space<vmem>>, vector<1x17x17xf32>
    %526 = vector.shape_cast %525 : vector<1x17x17xf32> to vector<17x17xf32>
    %527 = vector.shape_cast %524 : vector<17x17xf32> to vector<1x17x17xf32>
    tpu.vector_store %arg18[%c12, %c0_211, %c0_212], %527 {strides = array<i32>} : memref<16x17x17xf32, #tpu.memory_space<vmem>>, vector<1x17x17xf32>,
    %528 = arith.truncf %524 : vector<17x17xf32> to vector<17x17xbf16>
    %529 = arith.truncf %510 : vector<17x8xf32> to vector<17x8xbf16>
    %cst_213 = arith.constant dense<0.000000e+00> : vector<17x8xf32>
    %530 = tpu.matmul %528, %529, %cst_213 {dimension_numbers = #tpu.dot_dimension_numbers<[1], [0], [0], [1], [0, 0, 1, 1], [], []>} : vector<17x17xbf16>, vector<17x8xbf16>, vector<17x8xf32> -> vector<17x8xf32>
    %c1_214 = arith.constant 1 : index
    %c0_215 = arith.constant 0 : index
    %c0_216 = arith.constant 0 : index
    %531 = vector.load %arg19[%c1_214, %c0_215, %c0_216] : memref<2x17x32xf32, #tpu.memory_space<vmem>>, vector<1x17x8xf32>
    %532 = vector.shape_cast %531 : vector<1x17x8xf32> to vector<17x8xf32>
    %533 = vector.shape_cast %530 : vector<17x8xf32> to vector<1x17x8xf32>
    tpu.vector_store %arg19[%c1_214, %c0_215, %c0_216], %533 {strides = array<i32>} : memref<2x17x32xf32, #tpu.memory_space<vmem>>, vector<1x17x8xf32>,
    %534 = vector.extract_strided_slice %401 {offsets = [17, 8], sizes = [17, 8], strides = [1, 1]} : vector<34x32xf32> to vector<17x8xf32>
    %535 = vector.extract_strided_slice %402 {offsets = [17, 8], sizes = [17, 8], strides = [1, 1]} : vector<34x32xf32> to vector<17x8xf32>
    %536 = vector.extract_strided_slice %403 {offsets = [17, 8], sizes = [17, 8], strides = [1, 1]} : vector<34x32xf32> to vector<17x8xf32>
    %537 = arith.truncf %534 : vector<17x8xf32> to vector<17x8xbf16>
    %538 = arith.truncf %535 : vector<17x8xf32> to vector<17x8xbf16>
    %cst_217 = arith.constant dense<0.000000e+00> : vector<17x17xf32>
    %539 = tpu.matmul %537, %538, %cst_217 {dimension_numbers = #tpu.dot_dimension_numbers<[1], [1], [0], [0], [0, 0, 1, 0], [], []>} : vector<17x8xbf16>, vector<17x8xbf16>, vector<17x17xf32> -> vector<17x17xf32>
    %cst_218 = arith.constant 0.353553385 : f32
    %540 = vector.broadcast %cst_218 : f32 to vector<17x17xf32>
    %541 = arith.mulf %539, %540 : vector<17x17xf32>
    %cst_219 = arith.constant dense<0xFF800000> : vector<17xf32>
    %542 = vector.multi_reduction <maximumf>, %541, %cst_219 [1] : vector<17x17xf32> to vector<17xf32>
    %543 = vector.shape_cast %542 : vector<17xf32> to vector<17x1xf32>
    %544 = vector.broadcast %543 : vector<17x1xf32> to vector<17x17xf32>
    %545 = arith.subf %541, %544 : vector<17x17xf32>
    %546 = math.exp %545 : vector<17x17xf32>
    %cst_220 = arith.constant dense<0.000000e+00> : vector<17xf32>
    %547 = vector.multi_reduction <add>, %546, %cst_220 [1] : vector<17x17xf32> to vector<17xf32>
    %548 = vector.shape_cast %547 : vector<17xf32> to vector<17x1xf32>
    %549 = vector.broadcast %548 : vector<17x1xf32> to vector<17x17xf32>
    %550 = arith.divf %546, %549 : vector<17x17xf32>
    %c13 = arith.constant 13 : index
    %c0_221 = arith.constant 0 : index
    %c0_222 = arith.constant 0 : index
    %551 = vector.load %arg18[%c13, %c0_221, %c0_222] : memref<16x17x17xf32, #tpu.memory_space<vmem>>, vector<1x17x17xf32>
    %552 = vector.shape_cast %551 : vector<1x17x17xf32> to vector<17x17xf32>
    %553 = vector.shape_cast %550 : vector<17x17xf32> to vector<1x17x17xf32>
    tpu.vector_store %arg18[%c13, %c0_221, %c0_222], %553 {strides = array<i32>} : memref<16x17x17xf32, #tpu.memory_space<vmem>>, vector<1x17x17xf32>,
    %554 = arith.truncf %550 : vector<17x17xf32> to vector<17x17xbf16>
    %555 = arith.truncf %536 : vector<17x8xf32> to vector<17x8xbf16>
    %cst_223 = arith.constant dense<0.000000e+00> : vector<17x8xf32>
    %556 = tpu.matmul %554, %555, %cst_223 {dimension_numbers = #tpu.dot_dimension_numbers<[1], [0], [0], [1], [0, 0, 1, 1], [], []>} : vector<17x17xbf16>, vector<17x8xbf16>, vector<17x8xf32> -> vector<17x8xf32>
    %c1_224 = arith.constant 1 : index
    %c0_225 = arith.constant 0 : index
    %c8_226 = arith.constant 8 : index
    %557 = vector.load %arg19[%c1_224, %c0_225, %c8_226] : memref<2x17x32xf32, #tpu.memory_space<vmem>>, vector<1x17x8xf32>
    %558 = vector.shape_cast %557 : vector<1x17x8xf32> to vector<17x8xf32>
    %559 = vector.shape_cast %556 : vector<17x8xf32> to vector<1x17x8xf32>
    tpu.vector_store %arg19[%c1_224, %c0_225, %c8_226], %559 {strides = array<i32>} : memref<2x17x32xf32, #tpu.memory_space<vmem>>, vector<1x17x8xf32>,
    %560 = vector.extract_strided_slice %401 {offsets = [17, 16], sizes = [17, 8], strides = [1, 1]} : vector<34x32xf32> to vector<17x8xf32>
    %561 = vector.extract_strided_slice %402 {offsets = [17, 16], sizes = [17, 8], strides = [1, 1]} : vector<34x32xf32> to vector<17x8xf32>
    %562 = vector.extract_strided_slice %403 {offsets = [17, 16], sizes = [17, 8], strides = [1, 1]} : vector<34x32xf32> to vector<17x8xf32>
    %563 = arith.truncf %560 : vector<17x8xf32> to vector<17x8xbf16>
    %564 = arith.truncf %561 : vector<17x8xf32> to vector<17x8xbf16>
    %cst_227 = arith.constant dense<0.000000e+00> : vector<17x17xf32>
    %565 = tpu.matmul %563, %564, %cst_227 {dimension_numbers = #tpu.dot_dimension_numbers<[1], [1], [0], [0], [0, 0, 1, 0], [], []>} : vector<17x8xbf16>, vector<17x8xbf16>, vector<17x17xf32> -> vector<17x17xf32>
    %cst_228 = arith.constant 0.353553385 : f32
    %566 = vector.broadcast %cst_228 : f32 to vector<17x17xf32>
    %567 = arith.mulf %565, %566 : vector<17x17xf32>
    %cst_229 = arith.constant dense<0xFF800000> : vector<17xf32>
    %568 = vector.multi_reduction <maximumf>, %567, %cst_229 [1] : vector<17x17xf32> to vector<17xf32>
    %569 = vector.shape_cast %568 : vector<17xf32> to vector<17x1xf32>
    %570 = vector.broadcast %569 : vector<17x1xf32> to vector<17x17xf32>
    %571 = arith.subf %567, %570 : vector<17x17xf32>
    %572 = math.exp %571 : vector<17x17xf32>
    %cst_230 = arith.constant dense<0.000000e+00> : vector<17xf32>
    %573 = vector.multi_reduction <add>, %572, %cst_230 [1] : vector<17x17xf32> to vector<17xf32>
    %574 = vector.shape_cast %573 : vector<17xf32> to vector<17x1xf32>
    %575 = vector.broadcast %574 : vector<17x1xf32> to vector<17x17xf32>
    %576 = arith.divf %572, %575 : vector<17x17xf32>
    %c14 = arith.constant 14 : index
    %c0_231 = arith.constant 0 : index
    %c0_232 = arith.constant 0 : index
    %577 = vector.load %arg18[%c14, %c0_231, %c0_232] : memref<16x17x17xf32, #tpu.memory_space<vmem>>, vector<1x17x17xf32>
    %578 = vector.shape_cast %577 : vector<1x17x17xf32> to vector<17x17xf32>
    %579 = vector.shape_cast %576 : vector<17x17xf32> to vector<1x17x17xf32>
    tpu.vector_store %arg18[%c14, %c0_231, %c0_232], %579 {strides = array<i32>} : memref<16x17x17xf32, #tpu.memory_space<vmem>>, vector<1x17x17xf32>,
    %580 = arith.truncf %576 : vector<17x17xf32> to vector<17x17xbf16>
    %581 = arith.truncf %562 : vector<17x8xf32> to vector<17x8xbf16>
    %cst_233 = arith.constant dense<0.000000e+00> : vector<17x8xf32>
    %582 = tpu.matmul %580, %581, %cst_233 {dimension_numbers = #tpu.dot_dimension_numbers<[1], [0], [0], [1], [0, 0, 1, 1], [], []>} : vector<17x17xbf16>, vector<17x8xbf16>, vector<17x8xf32> -> vector<17x8xf32>
    %c1_234 = arith.constant 1 : index
    %c0_235 = arith.constant 0 : index
    %c16_236 = arith.constant 16 : index
    %583 = vector.load %arg19[%c1_234, %c0_235, %c16_236] : memref<2x17x32xf32, #tpu.memory_space<vmem>>, vector<1x17x8xf32>
    %584 = vector.shape_cast %583 : vector<1x17x8xf32> to vector<17x8xf32>
    %585 = vector.shape_cast %582 : vector<17x8xf32> to vector<1x17x8xf32>
    tpu.vector_store %arg19[%c1_234, %c0_235, %c16_236], %585 {strides = array<i32>} : memref<2x17x32xf32, #tpu.memory_space<vmem>>, vector<1x17x8xf32>,
    %586 = vector.extract_strided_slice %401 {offsets = [17, 24], sizes = [17, 8], strides = [1, 1]} : vector<34x32xf32> to vector<17x8xf32>
    %587 = vector.extract_strided_slice %402 {offsets = [17, 24], sizes = [17, 8], strides = [1, 1]} : vector<34x32xf32> to vector<17x8xf32>
    %588 = vector.extract_strided_slice %403 {offsets = [17, 24], sizes = [17, 8], strides = [1, 1]} : vector<34x32xf32> to vector<17x8xf32>
    %589 = arith.truncf %586 : vector<17x8xf32> to vector<17x8xbf16>
    %590 = arith.truncf %587 : vector<17x8xf32> to vector<17x8xbf16>
    %cst_237 = arith.constant dense<0.000000e+00> : vector<17x17xf32>
    %591 = tpu.matmul %589, %590, %cst_237 {dimension_numbers = #tpu.dot_dimension_numbers<[1], [1], [0], [0], [0, 0, 1, 0], [], []>} : vector<17x8xbf16>, vector<17x8xbf16>, vector<17x17xf32> -> vector<17x17xf32>
    %cst_238 = arith.constant 0.353553385 : f32
    %592 = vector.broadcast %cst_238 : f32 to vector<17x17xf32>
    %593 = arith.mulf %591, %592 : vector<17x17xf32>
    %cst_239 = arith.constant dense<0xFF800000> : vector<17xf32>
    %594 = vector.multi_reduction <maximumf>, %593, %cst_239 [1] : vector<17x17xf32> to vector<17xf32>
    %595 = vector.shape_cast %594 : vector<17xf32> to vector<17x1xf32>
    %596 = vector.broadcast %595 : vector<17x1xf32> to vector<17x17xf32>
    %597 = arith.subf %593, %596 : vector<17x17xf32>
    %598 = math.exp %597 : vector<17x17xf32>
    %cst_240 = arith.constant dense<0.000000e+00> : vector<17xf32>
    %599 = vector.multi_reduction <add>, %598, %cst_240 [1] : vector<17x17xf32> to vector<17xf32>
    %600 = vector.shape_cast %599 : vector<17xf32> to vector<17x1xf32>
    %601 = vector.broadcast %600 : vector<17x1xf32> to vector<17x17xf32>
    %602 = arith.divf %598, %601 : vector<17x17xf32>
    %c15 = arith.constant 15 : index
    %c0_241 = arith.constant 0 : index
    %c0_242 = arith.constant 0 : index
    %603 = vector.load %arg18[%c15, %c0_241, %c0_242] : memref<16x17x17xf32, #tpu.memory_space<vmem>>, vector<1x17x17xf32>
    %604 = vector.shape_cast %603 : vector<1x17x17xf32> to vector<17x17xf32>
    %605 = vector.shape_cast %602 : vector<17x17xf32> to vector<1x17x17xf32>
    tpu.vector_store %arg18[%c15, %c0_241, %c0_242], %605 {strides = array<i32>} : memref<16x17x17xf32, #tpu.memory_space<vmem>>, vector<1x17x17xf32>,
    %606 = arith.truncf %602 : vector<17x17xf32> to vector<17x17xbf16>
    %607 = arith.truncf %588 : vector<17x8xf32> to vector<17x8xbf16>
    %cst_243 = arith.constant dense<0.000000e+00> : vector<17x8xf32>
    %608 = tpu.matmul %606, %607, %cst_243 {dimension_numbers = #tpu.dot_dimension_numbers<[1], [0], [0], [1], [0, 0, 1, 1], [], []>} : vector<17x17xbf16>, vector<17x8xbf16>, vector<17x8xf32> -> vector<17x8xf32>
    %c1_244 = arith.constant 1 : index
    %c0_245 = arith.constant 0 : index
    %c24_246 = arith.constant 24 : index
    %609 = vector.load %arg19[%c1_244, %c0_245, %c24_246] : memref<2x17x32xf32, #tpu.memory_space<vmem>>, vector<1x17x8xf32>
    %610 = vector.shape_cast %609 : vector<1x17x8xf32> to vector<17x8xf32>
    %611 = vector.shape_cast %608 : vector<17x8xf32> to vector<1x17x8xf32>
    tpu.vector_store %arg19[%c1_244, %c0_245, %c24_246], %611 {strides = array<i32>} : memref<2x17x32xf32, #tpu.memory_space<vmem>>, vector<1x17x8xf32>,
    %c0_247 = arith.constant 0 : index
    %c0_248 = arith.constant 0 : index
    %c0_249 = arith.constant 0 : index
    %612 = vector.load %arg19[%c0_247, %c0_248, %c0_249] : memref<2x17x32xf32, #tpu.memory_space<vmem>>, vector<1x17x32xf32>
    %613 = vector.shape_cast %612 : vector<1x17x32xf32> to vector<17x32xf32>
    %c1_250 = arith.constant 1 : index
    %c0_251 = arith.constant 0 : index
    %c0_252 = arith.constant 0 : index
    %614 = vector.load %arg19[%c1_250, %c0_251, %c0_252] : memref<2x17x32xf32, #tpu.memory_space<vmem>>, vector<1x17x32xf32>
    %615 = vector.shape_cast %614 : vector<1x17x32xf32> to vector<17x32xf32>
    %616 = tpu.concatenate %613, %615 in 0 : vector<17x32xf32>, vector<17x32xf32> -> vector<34x32xf32>
    %c1_253 = arith.constant 1 : index
    %c0_254 = arith.constant 0 : index
    %c0_255 = arith.constant 0 : index
    %617 = vector.load %arg8[%c1_253, %c0_254, %c0_255] : memref<2x32x32xf32, #tpu.memory_space<vmem>>, vector<1x32x32xf32>
    %618 = vector.shape_cast %617 : vector<1x32x32xf32> to vector<32x32xf32>
    %619 = arith.truncf %616 : vector<34x32xf32> to vector<34x32xbf16>
    %620 = arith.truncf %618 : vector<32x32xf32> to vector<32x32xbf16>
    %cst_256 = arith.constant dense<0.000000e+00> : vector<34x32xf32>
    %621 = tpu.matmul %619, %620, %cst_256 {dimension_numbers = #tpu.dot_dimension_numbers<[1], [0], [0], [1], [0, 0, 1, 1], [], []>} : vector<34x32xbf16>, vector<32x32xbf16>, vector<34x32xf32> -> vector<34x32xf32>
    %622 = arith.addf %365, %621 : vector<34x32xf32>
    %c1_257 = arith.constant 1 : index
    %c0_258 = arith.constant 0 : index
    %c0_259 = arith.constant 0 : index
    %623 = vector.load %arg9[%c1_257, %c0_258, %c0_259] : memref<2x1x32xf32, #tpu.memory_space<vmem>>, vector<1x1x32xf32>
    %624 = vector.shape_cast %623 : vector<1x1x32xf32> to vector<1x32xf32>
    %625 = vector.broadcast %624 : vector<1x32xf32> to vector<34x32xf32>
    %626 = arith.addf %622, %625 : vector<34x32xf32>
    %627 = vector.extract_strided_slice %367 {offsets = [2, 0], sizes = [1, 32], strides = [1, 1]} : vector<4x32xf32> to vector<1x32xf32>
    %628 = vector.extract_strided_slice %367 {offsets = [3, 0], sizes = [1, 32], strides = [1, 1]} : vector<4x32xf32> to vector<1x32xf32>
    %cst_260 = arith.constant dense<0.000000e+00> : vector<34xf32>
    %629 = vector.multi_reduction <add>, %626, %cst_260 [1] : vector<34x32xf32> to vector<34xf32>
    %630 = vector.shape_cast %629 : vector<34xf32> to vector<34x1xf32>
    %cst_261 = arith.constant 3.200000e+01 : f32
    %631 = vector.broadcast %cst_261 : f32 to vector<34x1xf32>
    %632 = arith.divf %630, %631 : vector<34x1xf32>
    %633 = vector.broadcast %632 : vector<34x1xf32> to vector<34x32xf32>
    %634 = arith.subf %626, %633 : vector<34x32xf32>
    %635 = arith.mulf %634, %634 : vector<34x32xf32>
    %cst_262 = arith.constant dense<0.000000e+00> : vector<34xf32>
    %636 = vector.multi_reduction <add>, %635, %cst_262 [1] : vector<34x32xf32> to vector<34xf32>
    %637 = vector.shape_cast %636 : vector<34xf32> to vector<34x1xf32>
    %cst_263 = arith.constant 3.200000e+01 : f32
    %638 = vector.broadcast %cst_263 : f32 to vector<34x1xf32>
    %639 = arith.divf %637, %638 : vector<34x1xf32>
    %640 = vector.broadcast %632 : vector<34x1xf32> to vector<34x32xf32>
    %641 = arith.subf %626, %640 : vector<34x32xf32>
    %cst_264 = arith.constant 9.99999997E-7 : f32
    %642 = vector.broadcast %cst_264 : f32 to vector<34x1xf32>
    %643 = arith.addf %639, %642 : vector<34x1xf32>
    %644 = math.rsqrt %643 : vector<34x1xf32>
    %645 = vector.broadcast %644 : vector<34x1xf32> to vector<34x32xf32>
    %646 = arith.mulf %641, %645 : vector<34x32xf32>
    %647 = vector.broadcast %627 : vector<1x32xf32> to vector<34x32xf32>
    %648 = arith.mulf %646, %647 : vector<34x32xf32>
    %649 = vector.broadcast %628 : vector<1x32xf32> to vector<34x32xf32>
    %650 = arith.addf %648, %649 : vector<34x32xf32>
    %c1_265 = arith.constant 1 : index
    %c0_266 = arith.constant 0 : index
    %c0_267 = arith.constant 0 : index
    %651 = vector.load %arg10[%c1_265, %c0_266, %c0_267] : memref<2x32x64xf32, #tpu.memory_space<vmem>>, vector<1x32x64xf32>
    %652 = vector.shape_cast %651 : vector<1x32x64xf32> to vector<32x64xf32>
    %653 = arith.truncf %650 : vector<34x32xf32> to vector<34x32xbf16>
    %654 = arith.truncf %652 : vector<32x64xf32> to vector<32x64xbf16>
    %cst_268 = arith.constant dense<0.000000e+00> : vector<34x64xf32>
    %655 = tpu.matmul %653, %654, %cst_268 {dimension_numbers = #tpu.dot_dimension_numbers<[1], [0], [0], [1], [0, 0, 1, 1], [], []>} : vector<34x32xbf16>, vector<32x64xbf16>, vector<34x64xf32> -> vector<34x64xf32>
    %c1_269 = arith.constant 1 : index
    %c0_270 = arith.constant 0 : index
    %c0_271 = arith.constant 0 : index
    %656 = vector.load %arg11[%c1_269, %c0_270, %c0_271] : memref<2x1x64xf32, #tpu.memory_space<vmem>>, vector<1x1x64xf32>
    %657 = vector.shape_cast %656 : vector<1x1x64xf32> to vector<1x64xf32>
    %658 = vector.broadcast %657 : vector<1x64xf32> to vector<34x64xf32>
    %659 = arith.addf %655, %658 : vector<34x64xf32>
    %cst_272 = arith.constant 5.000000e-01 : f32
    %660 = vector.broadcast %cst_272 : f32 to vector<34x64xf32>
    %661 = arith.mulf %660, %659 : vector<34x64xf32>
    %cst_273 = arith.constant 0.707106769 : f32
    %662 = vector.broadcast %cst_273 : f32 to vector<34x64xf32>
    %663 = arith.mulf %659, %662 : vector<34x64xf32>
    %664 = math.absf %663 : vector<34x64xf32>
    %cst_274 = arith.constant 0.327591091 : f32
    %665 = vector.broadcast %cst_274 : f32 to vector<34x64xf32>
    %666 = arith.mulf %665, %664 : vector<34x64xf32>
    %cst_275 = arith.constant 1.000000e+00 : f32
    %667 = vector.broadcast %cst_275 : f32 to vector<34x64xf32>
    %668 = arith.addf %667, %666 : vector<34x64xf32>
    %cst_276 = arith.constant 1.000000e+00 : f32
    %669 = vector.broadcast %cst_276 : f32 to vector<34x64xf32>
    %670 = arith.divf %669, %668 : vector<34x64xf32>
    %cst_277 = arith.constant 1.06140542 : f32
    %671 = vector.broadcast %cst_277 : f32 to vector<34x64xf32>
    %672 = arith.mulf %671, %670 : vector<34x64xf32>
    %cst_278 = arith.constant -1.45315206 : f32
    %673 = vector.broadcast %cst_278 : f32 to vector<34x64xf32>
    %674 = arith.addf %672, %673 : vector<34x64xf32>
    %675 = arith.mulf %674, %670 : vector<34x64xf32>
    %cst_279 = arith.constant 1.42141378 : f32
    %676 = vector.broadcast %cst_279 : f32 to vector<34x64xf32>
    %677 = arith.addf %675, %676 : vector<34x64xf32>
    %678 = arith.mulf %677, %670 : vector<34x64xf32>
    %cst_280 = arith.constant -0.284496725 : f32
    %679 = vector.broadcast %cst_280 : f32 to vector<34x64xf32>
    %680 = arith.addf %678, %679 : vector<34x64xf32>
    %681 = arith.mulf %680, %670 : vector<34x64xf32>
    %cst_281 = arith.constant 0.254829586 : f32
    %682 = vector.broadcast %cst_281 : f32 to vector<34x64xf32>
    %683 = arith.addf %681, %682 : vector<34x64xf32>
    %684 = arith.mulf %683, %670 : vector<34x64xf32>
    %cst_282 = arith.constant 0.000000e+00 : f32
    %685 = vector.broadcast %cst_282 : f32 to vector<34x64xf32>
    %686 = arith.subf %685, %664 : vector<34x64xf32>
    %687 = arith.mulf %686, %664 : vector<34x64xf32>
    %688 = math.exp %687 : vector<34x64xf32>
    %689 = arith.mulf %684, %688 : vector<34x64xf32>
    %cst_283 = arith.constant 1.000000e+00 : f32
    %690 = vector.broadcast %cst_283 : f32 to vector<34x64xf32>
    %691 = arith.subf %690, %689 : vector<34x64xf32>
    %cst_284 = arith.constant 0.000000e+00 : f32
    %692 = vector.broadcast %cst_284 : f32 to vector<34x64xf32>
    %693 = arith.cmpf oge, %663, %692 : vector<34x64xf32>
    %cst_285 = arith.constant 0.000000e+00 : f32
    %694 = vector.broadcast %cst_285 : f32 to vector<34x64xf32>
    %695 = arith.subf %694, %691 : vector<34x64xf32>
    %696 = arith.select %693, %691, %695 : vector<34x64xi1>, vector<34x64xf32>
    %cst_286 = arith.constant 1.000000e+00 : f32
    %697 = vector.broadcast %cst_286 : f32 to vector<34x64xf32>
    %698 = arith.addf %697, %696 : vector<34x64xf32>
    %699 = arith.mulf %661, %698 : vector<34x64xf32>
    %c1_287 = arith.constant 1 : index
    %c0_288 = arith.constant 0 : index
    %c0_289 = arith.constant 0 : index
    %700 = vector.load %arg12[%c1_287, %c0_288, %c0_289] : memref<2x64x32xf32, #tpu.memory_space<vmem>>, vector<1x64x32xf32>
    %701 = vector.shape_cast %700 : vector<1x64x32xf32> to vector<64x32xf32>
    %702 = arith.truncf %699 : vector<34x64xf32> to vector<34x64xbf16>
    %703 = arith.truncf %701 : vector<64x32xf32> to vector<64x32xbf16>
    %cst_290 = arith.constant dense<0.000000e+00> : vector<34x32xf32>
    %704 = tpu.matmul %702, %703, %cst_290 {dimension_numbers = #tpu.dot_dimension_numbers<[1], [0], [0], [1], [0, 0, 1, 1], [], []>} : vector<34x64xbf16>, vector<64x32xbf16>, vector<34x32xf32> -> vector<34x32xf32>
    %705 = arith.addf %626, %704 : vector<34x32xf32>
    %c1_291 = arith.constant 1 : index
    %c0_292 = arith.constant 0 : index
    %c0_293 = arith.constant 0 : index
    %706 = vector.load %arg13[%c1_291, %c0_292, %c0_293] : memref<2x1x32xf32, #tpu.memory_space<vmem>>, vector<1x1x32xf32>
    %707 = vector.shape_cast %706 : vector<1x1x32xf32> to vector<1x32xf32>
    %708 = vector.broadcast %707 : vector<1x32xf32> to vector<34x32xf32>
    %709 = arith.addf %705, %708 : vector<34x32xf32>
    %710 = vector.extract_strided_slice %709 {offsets = [0, 0], sizes = [1, 32], strides = [1, 1]} : vector<34x32xf32> to vector<1x32xf32>
    %711 = vector.extract_strided_slice %709 {offsets = [17, 0], sizes = [1, 32], strides = [1, 1]} : vector<34x32xf32> to vector<1x32xf32>
    %712 = tpu.concatenate %710, %711 in 0 : vector<1x32xf32>, vector<1x32xf32> -> vector<2x32xf32>
    %c0_294 = arith.constant 0 : index
    %c0_295 = arith.constant 0 : index
    %713 = vector.load %arg14[%c0_294, %c0_295] : memref<2x32xf32, #tpu.memory_space<vmem>>, vector<1x32xf32>
    %c1_296 = arith.constant 1 : index
    %c0_297 = arith.constant 0 : index
    %714 = vector.load %arg14[%c1_296, %c0_297] : memref<2x32xf32, #tpu.memory_space<vmem>>, vector<1x32xf32>
    %cst_298 = arith.constant dense<0.000000e+00> : vector<2xf32>
    %715 = vector.multi_reduction <add>, %712, %cst_298 [1] : vector<2x32xf32> to vector<2xf32>
    %716 = vector.shape_cast %715 : vector<2xf32> to vector<2x1xf32>
    %cst_299 = arith.constant 3.200000e+01 : f32
    %717 = vector.broadcast %cst_299 : f32 to vector<2x1xf32>
    %718 = arith.divf %716, %717 : vector<2x1xf32>
    %719 = vector.broadcast %718 : vector<2x1xf32> to vector<2x32xf32>
    %720 = arith.subf %712, %719 : vector<2x32xf32>
    %721 = arith.mulf %720, %720 : vector<2x32xf32>
    %cst_300 = arith.constant dense<0.000000e+00> : vector<2xf32>
    %722 = vector.multi_reduction <add>, %721, %cst_300 [1] : vector<2x32xf32> to vector<2xf32>
    %723 = vector.shape_cast %722 : vector<2xf32> to vector<2x1xf32>
    %cst_301 = arith.constant 3.200000e+01 : f32
    %724 = vector.broadcast %cst_301 : f32 to vector<2x1xf32>
    %725 = arith.divf %723, %724 : vector<2x1xf32>
    %726 = vector.broadcast %718 : vector<2x1xf32> to vector<2x32xf32>
    %727 = arith.subf %712, %726 : vector<2x32xf32>
    %cst_302 = arith.constant 9.99999997E-7 : f32
    %728 = vector.broadcast %cst_302 : f32 to vector<2x1xf32>
    %729 = arith.addf %725, %728 : vector<2x1xf32>
    %730 = math.rsqrt %729 : vector<2x1xf32>
    %731 = vector.broadcast %730 : vector<2x1xf32> to vector<2x32xf32>
    %732 = arith.mulf %727, %731 : vector<2x32xf32>
    %733 = vector.broadcast %713 : vector<1x32xf32> to vector<2x32xf32>
    %734 = arith.mulf %732, %733 : vector<2x32xf32>
    %735 = vector.broadcast %714 : vector<1x32xf32> to vector<2x32xf32>
    %736 = arith.addf %734, %735 : vector<2x32xf32>
    %c0_303 = arith.constant 0 : index
    %c0_304 = arith.constant 0 : index
    %737 = vector.load %arg15[%c0_303, %c0_304] : memref<32x16xf32, #tpu.memory_space<vmem>>, vector<32x16xf32>
    %738 = arith.truncf %736 : vector<2x32xf32> to vector<2x32xbf16>
    %739 = arith.truncf %737 : vector<32x16xf32> to vector<32x16xbf16>
    %cst_305 = arith.constant dense<0.000000e+00> : vector<2x16xf32>
    %740 = tpu.matmul %738, %739, %cst_305 {dimension_numbers = #tpu.dot_dimension_numbers<[1], [0], [0], [1], [0, 0, 1, 1], [], []>} : vector<2x32xbf16>, vector<32x16xbf16>, vector<2x16xf32> -> vector<2x16xf32>
    %c0_306 = arith.constant 0 : index
    %c0_307 = arith.constant 0 : index
    %741 = vector.load %arg16[%c0_306, %c0_307] : memref<1x16xf32, #tpu.memory_space<vmem>>, vector<1x16xf32>
    %742 = vector.broadcast %741 : vector<1x16xf32> to vector<2x16xf32>
    %743 = arith.addf %740, %742 : vector<2x16xf32>
    %c0_308 = arith.constant 0 : index
    %c0_309 = arith.constant 0 : index
    %744 = vector.load %arg17[%c0_308, %c0_309] : memref<2x16xf32, #tpu.memory_space<vmem>>, vector<2x16xf32>
    tpu.vector_store %arg17[%c0_308, %c0_309], %743 {strides = array<i32>} : memref<2x16xf32, #tpu.memory_space<vmem>>, vector<2x16xf32>,
    return
  }
}

</mosaic_0001>

<llo_original>
// kernel: vit_forward.1
$region0: #{vit_forward.1}
  #allocation0 [shape = 'u32[]', space=smem, size = 0x4, offset = 0x4, fixed_abs, tag = 'smem constant byte address 0x4 - core index']
  #allocation1 [shape = 'u32[144,128]{1,0:T(1,128)}', space=vmem, size = 0x12000, scoped, tag = 'internal scratch']
  #allocation2 [shape = 'f32[2,17,32]{2,1,0:T(8,128)}', space=vmem, size = 0x6000, scoped, tag = 'scratch operand']
  %s0 = inlined_call_operand.vmem [shape: f32[32,64], index: 0, kind: input, shape index: {}]
  %s1 = inlined_call_operand.vmem [shape: f32[64,32], index: 1, kind: input, shape index: {}]
  %s2 = inlined_call_operand.vmem [shape: f32[1,32], index: 2, kind: input, shape index: {}]
  %s3 = inlined_call_operand.vmem [shape: f32[1,32], index: 3, kind: input, shape index: {}]
  %s4 = inlined_call_operand.vmem [shape: f32[17,32], index: 4, kind: input, shape index: {}]
  %s5 = inlined_call_operand.vmem [shape: f32[2,4,32], index: 5, kind: input, shape index: {}]
  %s6 = inlined_call_operand.vmem [shape: f32[2,32,96], index: 6, kind: input, shape index: {}]
  %s7 = inlined_call_operand.vmem [shape: f32[2,1,96], index: 7, kind: input, shape index: {}]
  %s8 = inlined_call_operand.vmem [shape: f32[2,32,32], index: 8, kind: input, shape index: {}]
  %s9 = inlined_call_operand.vmem [shape: f32[2,1,32], index: 9, kind: input, shape index: {}]
  %s10 = inlined_call_operand.vmem [shape: f32[2,32,64], index: 10, kind: input, shape index: {}]
  %s11 = inlined_call_operand.vmem [shape: f32[2,1,64], index: 11, kind: input, shape index: {}]
  %s12 = inlined_call_operand.vmem [shape: f32[2,64,32], index: 12, kind: input, shape index: {}]
  %s13 = inlined_call_operand.vmem [shape: f32[2,1,32], index: 13, kind: input, shape index: {}]
  %s14 = inlined_call_operand.vmem [shape: f32[2,32], index: 14, kind: input, shape index: {}]
  %s15 = inlined_call_operand.vmem [shape: f32[32,16], index: 15, kind: input, shape index: {}]
  %s16 = inlined_call_operand.vmem [shape: f32[1,16], index: 16, kind: input, shape index: {}]
  %s17 = inlined_call_operand.hbm [shape: f32[2,16], index: 17, kind: output, shape index: {0}]
  %s18 = inlined_call_operand.vmem [shape: f32[16,17,17], index: 18, kind: output, shape index: {1}]
  %19 = xla_tuple %s17, %s18
  %s20 = sld [smem:[#allocation0]]
  $region86: #{vit_forward.1} parent=0
    _
  %s22 = ssub.s32 1, %s20
  %s23 = scalar_select 0, %s22, %s20
  $region1: #{vit_forward.1} parent=0
    #allocation3 [shape = 'u8[1024]{0}', space=vmem, size = 0x400, scoped, tag = 'output window, operand 0, single buffered']
    #allocation4 [shape = 's32[1]{0}', space=sflag, size = 0x4, scoped, tag = 'scoped memory for vit_forward.1']
    %24 = vsyncpa [#allocation4], 0
    // Predicated region
    $region2: #{vit_forward.1} parent=1 // pred_check
      _
    $region3: #{vit_forward.1} parent=1 // pred_check_branch
      %26 = sbr.rel (0) target = $region5
    $region4: #{vit_forward.1} parent=1 // pred_region
      _
    $region5: #{vit_forward.1} parent=1 // pred_fallthru
      _
    // Predicated region
    $region6: #{vit_forward.1} parent=1 // pred_check
      _
    $region7: #{vit_forward.1} parent=1 // pred_check_branch
      %28 = sbr.rel (0) target = $region9
    $region8: #{vit_forward.1} parent=1 // pred_region
      _
    $region9: #{vit_forward.1} parent=1 // pred_fallthru
      _
    // Predicated region
    $region10: #{vit_forward.1} parent=1 // pred_check
      _
    $region11: #{vit_forward.1} parent=1 // pred_check_branch
      %30 = sbr.rel (0) target = $region13
    $region12: #{vit_forward.1} parent=1 // pred_region
      _
    $region13: #{vit_forward.1} parent=1 // pred_fallthru
      _
    // Predicated region
    $region14: #{vit_forward.1} parent=1 // pred_check
      _
    $region15: #{vit_forward.1} parent=1 // pred_check_branch
      %32 = sbr.rel (0) target = $region17
    $region16: #{vit_forward.1} parent=1 // pred_region
      _
    $region17: #{vit_forward.1} parent=1 // pred_fallthru
      _
    // Predicated region
    $region18: #{vit_forward.1} parent=1 // pred_check
      _
    $region19: #{vit_forward.1} parent=1 // pred_check_branch
      %34 = sbr.rel (0) target = $region21
    $region20: #{vit_forward.1} parent=1 // pred_region
      _
    $region21: #{vit_forward.1} parent=1 // pred_fallthru
      _
    // Predicated region
    $region22: #{vit_forward.1} parent=1 // pred_check
      _
    $region23: #{vit_forward.1} parent=1 // pred_check_branch
      %36 = sbr.rel (0) target = $region25
    $region24: #{vit_forward.1} parent=1 // pred_region
      _
    $region25: #{vit_forward.1} parent=1 // pred_fallthru
      _
    // Predicated region
    $region26: #{vit_forward.1} parent=1 // pred_check
      _
    $region27: #{vit_forward.1} parent=1 // pred_check_branch
      %38 = sbr.rel (0) target = $region29
    $region28: #{vit_forward.1} parent=1 // pred_region
      _
    $region29: #{vit_forward.1} parent=1 // pred_fallthru
      _
    // Predicated region
    $region30: #{vit_forward.1} parent=1 // pred_check
      _
    $region31: #{vit_forward.1} parent=1 // pred_check_branch
      %40 = sbr.rel (0) target = $region33
    $region32: #{vit_forward.1} parent=1 // pred_region
      _
    $region33: #{vit_forward.1} parent=1 // pred_fallthru
      _
    // Predicated region
    $region34: #{vit_forward.1} parent=1 // pred_check
      _
    $region35: #{vit_forward.1} parent=1 // pred_check_branch
      %42 = sbr.rel (0) target = $region37
    $region36: #{vit_forward.1} parent=1 // pred_region
      _
    $region37: #{vit_forward.1} parent=1 // pred_fallthru
      _
    // Predicated region
    $region38: #{vit_forward.1} parent=1 // pred_check
      _
    $region39: #{vit_forward.1} parent=1 // pred_check_branch
      %44 = sbr.rel (0) target = $region41
    $region40: #{vit_forward.1} parent=1 // pred_region
      _
    $region41: #{vit_forward.1} parent=1 // pred_fallthru
      _
    // Predicated region
    $region42: #{vit_forward.1} parent=1 // pred_check
      _
    $region43: #{vit_forward.1} parent=1 // pred_check_branch
      %46 = sbr.rel (0) target = $region45
    $region44: #{vit_forward.1} parent=1 // pred_region
      _
    $region45: #{vit_forward.1} parent=1 // pred_fallthru
      _
    // Predicated region
    $region46: #{vit_forward.1} parent=1 // pred_check
      _
    $region47: #{vit_forward.1} parent=1 // pred_check_branch
      %48 = sbr.rel (0) target = $region49
    $region48: #{vit_forward.1} parent=1 // pred_region
      _
    $region49: #{vit_forward.1} parent=1 // pred_fallthru
      _
    // Predicated region
    $region50: #{vit_forward.1} parent=1 // pred_check
      _
    $region51: #{vit_forward.1} parent=1 // pred_check_branch
      %50 = sbr.rel (0) target = $region53
    $region52: #{vit_forward.1} parent=1 // pred_region
      _
    $region53: #{vit_forward.1} parent=1 // pred_fallthru
      _
    // Predicated region
    $region54: #{vit_forward.1} parent=1 // pred_check
      _
    $region55: #{vit_forward.1} parent=1 // pred_check_branch
      %52 = sbr.rel (0) target = $region57
    $region56: #{vit_forward.1} parent=1 // pred_region
      _
    $region57: #{vit_forward.1} parent=1 // pred_fallthru
      _
    // Predicated region
    $region58: #{vit_forward.1} parent=1 // pred_check
      _
    $region59: #{vit_forward.1} parent=1 // pred_check_branch
      %54 = sbr.rel (0) target = $region61
    $region60: #{vit_forward.1} parent=1 // pred_region
      _
    $region61: #{vit_forward.1} parent=1 // pred_fallthru
      _
    // Predicated region
    $region62: #{vit_forward.1} parent=1 // pred_check
      _
    $region63: #{vit_forward.1} parent=1 // pred_check_branch
      %56 = sbr.rel (0) target = $region65
    $region64: #{vit_forward.1} parent=1 // pred_region
      _
    $region65: #{vit_forward.1} parent=1 // pred_fallthru
      _
    // Predicated region
    $region66: #{vit_forward.1} parent=1 // pred_check
      _
    $region67: #{vit_forward.1} parent=1 // pred_check_branch
      %58 = sbr.rel (0) target = $region69
    $region68: #{vit_forward.1} parent=1 // pred_region
      _
    $region69: #{vit_forward.1} parent=1 // pred_fallthru
      _
    %v60 = vld [vmem:[%s0] sm:$0xff]
    %v61 = vld [vmem:[%s0 + $0x8] sm:$0xff]
    %v62 = vld [vmem:[%s0 + $0x10] sm:$0xff]
    %v63 = vld [vmem:[%s0 + $0x18] sm:$0xff]
    %v64 = vld [vmem:[%s1] sm:$0xff]
    %v65 = vld [vmem:[%s1 + $0x8] sm:$0xff]
    %v66 = vld [vmem:[%s1 + $0x10] sm:$0xff]
    %v67 = vld [vmem:[%s1 + $0x18] sm:$0xff]
    %v68 = vld [vmem:[%s1 + $0x20] sm:$0xff]
    %v69 = vld [vmem:[%s1 + $0x28] sm:$0xff]
    %v70 = vld [vmem:[%s1 + $0x30] sm:$0xff]
    %v71 = vld [vmem:[%s1 + $0x38] sm:$0xff]
    %v72 = vpack.c.bf16 %v61, %v60
    %v73 = vpack.c.bf16 %v63, %v62
    %v74 = vpack.c.bf16 %v65, %v64
    %v75 = vpack.c.bf16 %v67, %v66
    %v76 = vpack.c.bf16 %v69, %v68
    %v77 = vpack.c.bf16 %v71, %v70
    %v78 = vld [vmem:[%s2] sm:$0x1]
    %v80 = vlaneseq
    %v81 = vshrl.u32 %v80, 7
    %v82 = vsub.s32 0, %v81
    %v83 = vrot.slane %v78, %v82
    %vm85 = vcmask 523264
    %v87 = vsel %vm85, %v72, 0
    %v90 = vsel %vm85, %v73, 0
    %92 = vmatprep.subr.bf16.mxu0 0
    %93 = vmatpush1.bf16.msra.mxu0 %v74
    %94 = vmatprep.subr.bf16.mxu0 0
    %95 = vmatpush1.bf16.msra.mxu0 %v75
    %96 = vmatprep.subr.bf16.mxu0 0
    %97 = vmatpush1.bf16.msra.mxu0 %v76
    %98 = vmatprep.subr.bf16.mxu0 0
    %99 = vmatpush1.bf16.msra.mxu0 %v77
    %100 = vmatprep.subr.bf16.mxu0 0
    %101 = vmatpush1.bf16.msra.mxu0 0
    %102 = vmatprep.subr.bf16.mxu0 0
    %103 = vmatpush1.bf16.msra.mxu0 0
    %104 = vmatprep.subr.bf16.mxu0 0
    %105 = vmatpush1.bf16.msra.mxu0 0
    %106 = vmatprep.subr.bf16.mxu0 0
    %107 = vmatpush1.bf16.msra.mxu0 0
    %108 = vmatprep.subr.bf16.mxu0 0
    %109 = vmatpush1.bf16.msra.mxu0 0
    %110 = vmatprep.subr.bf16.mxu0 0
    %111 = vmatpush1.bf16.msra.mxu0 0
    %112 = vmatprep.subr.bf16.mxu0 0
    %113 = vmatpush1.bf16.msra.mxu0 0
    %114 = vmatprep.subr.bf16.mxu0 0
    %115 = vmatpush1.bf16.msra.mxu0 0
    %116 = vmatprep.subr.bf16.mxu0 0
    %117 = vmatpush1.bf16.msra.mxu0 0
    %118 = vmatprep.subr.bf16.mxu0 0
    %119 = vmatpush1.bf16.msra.mxu0 0
    %120 = vmatprep.subr.bf16.mxu0 0
    %121 = vmatpush1.bf16.msra.mxu0 0
    %122 = vmatprep.subr.bf16.mxu0 0
    %123 = vmatpush1.bf16.msra.mxu0 0
    %124 = vmatprep.mubr.bf16.mxu0 0
    %125 = vmatmul.mubr.bf16.gmra.mrb[0].mxu0 %v87
    %v126 = vpop.f32.mrb[0].mxu0
    %v127 = vadd.f32 %v83, %v126
    %v128 = vpop.f32.mrb[0].mxu0
    %v129 = vpop.f32.mrb[0].mxu0
    %v130 = vadd.f32 %v83, %v129
    %v131 = vpop.f32.mrb[0].mxu0
    %132 = vmatprep.mubr.bf16.mxu0 0
    %133 = vmatmul.mubr.bf16.gmra.mrb[0].mxu0 %v90
    %v134 = vpop.f32.mrb[0].mxu0
    %v135 = vadd.f32 %v83, %v134
    %v136 = vpop.f32.mrb[0].mxu0
    %v137 = vpop.f32.mrb[0].mxu0
    %v138 = vadd.f32 %v83, %v137
    %v139 = vpop.f32.mrb[0].mxu0
    %140 = vdwg.mxu0
    %v141 = vld [vmem:[%s4] sm:$0xff]
    %v142 = vld [vmem:[%s4 + $0x8] sm:$0xff]
    %v143 = vld [vmem:[%s4 + $0x10] sm:$0x1]
    %v144 = vld [vmem:[%s3] sm:$0x1]
    %v145 = vadd.f32 %v144, %v141
    %vm149 = vcmask 1046528
    %v150 = vrot.slane %v141, 1
    %v151 = vrot.slane %v142, 1
    %v152 = vsel %vm149, %v150, %v151
    %v153 = vrot.slane %v143, 1
    %v154 = vsel %vm149, %v151, %v153
    %v157 = vadd.f32 %v127, %v152
    %v158 = vadd.f32 %v130, %v154
    %v159 = vadd.f32 %v135, %v152
    %v160 = vadd.f32 %v138, %v154
    %vm163 = vcmask 1040384
    %v164 = vrot.slane %v157, 7
    %v165 = vrot.slane %v158, 7
    %v166 = vsel %vm163, %v164, %v165
    %v171 = vlaneseq
    %v172 = vshrl.u32 %v171, 7
    %v173 = vsub.s32 0, %v172
    %v174 = vrot.slane %v145, %v173
    %vm178 = vcmask 1041408
    %v179 = vrot.slane %v159, 6
    %v180 = vrot.slane %v160, 6
    %v181 = vsel %vm178, %v179, %v180
    %v185 = vsel %vm163, %v145, %v164
    %v186 = vsel %vm163, %v165, %v174
    %v187 = vsel %vm178, %v186, %v179
    %v188 = vld [vmem:[%s5] sm:$0xf]
    %vm189 = vcmask 261120
    %v190 = vsel %vm189, %v185, 0.0
    %191 = vadd.xlane.f32.xlu0 %v190
    %v192 = vpop.xlane.xlu0 %191
    %v193 = vsel %vm189, %v166, 0.0
    %194 = vadd.xlane.f32.xlu0 %v193
    %v195 = vpop.xlane.xlu0 %194
    %v196 = vsel %vm189, %v187, 0.0
    %197 = vadd.xlane.f32.xlu0 %v196
    %v198 = vpop.xlane.xlu0 %197
    %v199 = vsel %vm189, %v181, 0.0
    %200 = vadd.xlane.f32.xlu0 %v199
    %v201 = vpop.xlane.xlu0 %200
    %vm202 = vcmask 254976
    %v203 = vsel %vm202, %v180, 0.0
    %204 = vadd.xlane.f32.xlu0 %v203
    %v205 = vpop.xlane.xlu0 %204
    %v206 = vrcp.pop 32.0
    %v207 = vmul.f32 %v192, %v206
    %v208 = vmul.f32 %v195, %v206
    %v209 = vmul.f32 %v198, %v206
    %v210 = vmul.f32 %v201, %v206
    %v211 = vmul.f32 %v205, %v206
    %v212 = vsub.f32 %v185, %v207
    %v213 = vsub.f32 %v166, %v208
    %v214 = vsub.f32 %v187, %v209
    %v215 = vsub.f32 %v181, %v210
    %v216 = vsub.f32 %v180, %v211
    %v217 = vmul.f32 %v212, %v212
    %v218 = vmul.f32 %v213, %v213
    %v219 = vmul.f32 %v214, %v214
    %v220 = vmul.f32 %v215, %v215
    %v221 = vmul.f32 %v216, %v216
    %v222 = vsel %vm189, %v217, 0.0
    %223 = vadd.xlane.f32.xlu0 %v222
    %v224 = vpop.xlane.xlu0 %223
    %v225 = vsel %vm189, %v218, 0.0
    %226 = vadd.xlane.f32.xlu0 %v225
    %v227 = vpop.xlane.xlu0 %226
    %v228 = vsel %vm189, %v219, 0.0
    %229 = vadd.xlane.f32.xlu0 %v228
    %v230 = vpop.xlane.xlu0 %229
    %v231 = vsel %vm189, %v220, 0.0
    %232 = vadd.xlane.f32.xlu0 %v231
    %v233 = vpop.xlane.xlu0 %232
    %v234 = vsel %vm202, %v221, 0.0
    %235 = vadd.xlane.f32.xlu0 %v234
    %v236 = vpop.xlane.xlu0 %235
    %v237 = vmul.f32 %v224, %v206
    %v238 = vmul.f32 %v227, %v206
    %v239 = vmul.f32 %v230, %v206
    %v240 = vmul.f32 %v233, %v206
    %v241 = vmul.f32 %v236, %v206
    %v242 = vadd.f32 %v237, 1e-06
    %v243 = vadd.f32 %v238, 1e-06
    %v244 = vadd.f32 %v239, 1e-06
    %v245 = vadd.f32 %v240, 1e-06
    %v246 = vadd.f32 %v241, 1e-06
    %v247 = vrsqrt.pop %v242
    %v248 = vrsqrt.pop %v243
    %v249 = vrsqrt.pop %v244
    %v250 = vrsqrt.pop %v245
    %v251 = vrsqrt.pop %v246
    %v252 = vmul.f32 %v212, %v247
    %v253 = vmul.f32 %v213, %v248
    %v254 = vmul.f32 %v214, %v249
    %v255 = vmul.f32 %v215, %v250
    %v256 = vmul.f32 %v216, %v251
    %v257 = vlaneseq
    %v258 = vshrl.u32 %v257, 7
    %v259 = vsub.s32 0, %v258
    %v260 = vrot.slane %v188, %v259
    %v261 = vmul.f32 %v252, %v260
    %v262 = vmul.f32 %v253, %v260
    %v263 = vmul.f32 %v254, %v260
    %v264 = vmul.f32 %v255, %v260
    %v265 = vmul.f32 %v256, %v260
    %v266 = vlaneseq
    %v267 = vshrl.u32 %v266, 7
    %v268 = vsub.s32 1, %v267
    %v269 = vrot.slane %v188, %v268
    %v270 = vadd.f32 %v261, %v269
    %v271 = vadd.f32 %v262, %v269
    %v272 = vadd.f32 %v263, %v269
    %v273 = vadd.f32 %v264, %v269
    %v274 = vadd.f32 %v265, %v269
    %v275 = vld [vmem:[%s6] sm:$0xff]
    %v276 = vld [vmem:[%s6 + $0x8] sm:$0xff]
    %v277 = vld [vmem:[%s6 + $0x10] sm:$0xff]
    %v278 = vld [vmem:[%s6 + $0x18] sm:$0xff]
    %v279 = vpack.c.bf16 %v271, %v270
    %v280 = vpack.c.bf16 %v273, %v272
    %v281 = vpack.c.bf16 %v274, %v274
    %v282 = vpack.c.bf16 %v276, %v275
    %v283 = vpack.c.bf16 %v278, %v277
    %v284 = vld [vmem:[%s7] sm:$0x1]
    %v286 = vlaneseq
    %v287 = vshrl.u32 %v286, 7
    %v288 = vsub.s32 0, %v287
    %v289 = vrot.slane %v284, %v288
    %v292 = vsel %vm189, %v279, 0
    %v295 = vsel %vm189, %v280, 0
    %v298 = vsel %vm189, %v281, 0
    %300 = vmatprep.subr.bf16.mxu0 0
    %301 = vmatpush1.bf16.msra.mxu0 %v282
    %302 = vmatprep.subr.bf16.mxu0 0
    %303 = vmatpush1.bf16.msra.mxu0 %v283
    %304 = vmatprep.subr.bf16.mxu0 0
    %305 = vmatpush1.bf16.msra.mxu0 0
    %306 = vmatprep.subr.bf16.mxu0 0
    %307 = vmatpush1.bf16.msra.mxu0 0
    %308 = vmatprep.subr.bf16.mxu0 0
    %309 = vmatpush1.bf16.msra.mxu0 0
    %310 = vmatprep.subr.bf16.mxu0 0
    %311 = vmatpush1.bf16.msra.mxu0 0
    %312 = vmatprep.subr.bf16.mxu0 0
    %313 = vmatpush1.bf16.msra.mxu0 0
    %314 = vmatprep.subr.bf16.mxu0 0
    %315 = vmatpush1.bf16.msra.mxu0 0
    %316 = vmatprep.subr.bf16.mxu0 0
    %317 = vmatpush1.bf16.msra.mxu0 0
    %318 = vmatprep.subr.bf16.mxu0 0
    %319 = vmatpush1.bf16.msra.mxu0 0
    %320 = vmatprep.subr.bf16.mxu0 0
    %321 = vmatpush1.bf16.msra.mxu0 0
    %322 = vmatprep.subr.bf16.mxu0 0
    %323 = vmatpush1.bf16.msra.mxu0 0
    %324 = vmatprep.subr.bf16.mxu0 0
    %325 = vmatpush1.bf16.msra.mxu0 0
    %326 = vmatprep.subr.bf16.mxu0 0
    %327 = vmatpush1.bf16.msra.mxu0 0
    %328 = vmatprep.subr.bf16.mxu0 0
    %329 = vmatpush1.bf16.msra.mxu0 0
    %330 = vmatprep.subr.bf16.mxu0 0
    %331 = vmatpush1.bf16.msra.mxu0 0
    %332 = vmatprep.mubr.bf16.mxu0 0
    %333 = vmatmul.mubr.bf16.gmra.mrb[0].mxu0 %v292
    %v334 = vpop.f32.mrb[0].mxu0
    %v335 = vadd.f32 %v289, %v334
    %v336 = vpop.f32.mrb[0].mxu0
    %v337 = vpop.f32.mrb[0].mxu0
    %v338 = vadd.f32 %v289, %v337
    %v339 = vpop.f32.mrb[0].mxu0
    %340 = vmatprep.mubr.bf16.mxu0 0
    %341 = vmatmul.mubr.bf16.gmra.mrb[0].mxu0 %v295
    %v342 = vpop.f32.mrb[0].mxu0
    %v343 = vadd.f32 %v289, %v342
    %v344 = vpop.f32.mrb[0].mxu0
    %v345 = vpop.f32.mrb[0].mxu0
    %v346 = vadd.f32 %v289, %v345
    %v347 = vpop.f32.mrb[0].mxu0
    %348 = vmatprep.mubr.bf16.mxu0 0
    %349 = vmatmul.mubr.bf16.gmra.mrb[0].mxu0 %v298
    %v350 = vpop.f32.mrb[0].mxu0
    %v351 = vadd.f32 %v289, %v350
    %v352 = vpop.f32.mrb[0].mxu0
    %v353 = vpop.f32.mrb[0].mxu0
    %v354 = vpop.f32.mrb[0].mxu0
    %355 = vdwg.mxu0
    %v356 = vpack.c.bf16 %v338, %v335
    %v357 = vpack.c.bf16 %v343, %v343
    %360 = vrot.lane.b32.xlu0 %v356, 96
    %v361 = vpop.permute.xlu0 %360
    %362 = vrot.lane.b32.xlu0 %v357, 96
    %v363 = vpop.permute.xlu0 %362
    %vm364 = vcmask 64512
    %v366 = vsel %vm364, %v356, 0
    %v369 = vsel %vm364, %v357, 0
    %v372 = vsel %vm364, %v361, 0
    %v375 = vsel %vm364, %v363, 0
    %377 = vmatprep.subr.bf16.mxu0 0
    %378 = vmatpush1.bf16.xpose.msra.mxu0 %v372
    %379 = vmatprep.subr.bf16.mxu0 0
    %380 = vmatpush1.bf16.xpose.msra.mxu0 %v375
    %381 = vmatprep.subr.bf16.mxu0 0
    %382 = vmatpush1.bf16.xpose.msra.mxu0 0
    %383 = vmatprep.subr.bf16.mxu0 0
    %384 = vmatpush1.bf16.xpose.msra.mxu0 0
    %385 = vmatprep.subr.bf16.mxu0 0
    %386 = vmatpush1.bf16.xpose.msra.mxu0 0
    %387 = vmatprep.subr.bf16.mxu0 0
    %388 = vmatpush1.bf16.xpose.msra.mxu0 0
    %389 = vmatprep.subr.bf16.mxu0 0
    %390 = vmatpush1.bf16.xpose.msra.mxu0 0
    %391 = vmatprep.subr.bf16.mxu0 0
    %392 = vmatpush1.bf16.xpose.msra.mxu0 0
    %393 = vmatprep.subr.bf16.mxu0 0
    %394 = vmatpush1.bf16.xpose.msra.mxu0 0
    %395 = vmatprep.subr.bf16.mxu0 0
    %396 = vmatpush1.bf16.xpose.msra.mxu0 0
    %397 = vmatprep.subr.bf16.mxu0 0
    %398 = vmatpush1.bf16.xpose.msra.mxu0 0
    %399 = vmatprep.subr.bf16.mxu0 0
    %400 = vmatpush1.bf16.xpose.msra.mxu0 0
    %401 = vmatprep.subr.bf16.mxu0 0
    %402 = vmatpush1.bf16.xpose.msra.mxu0 0
    %403 = vmatprep.subr.bf16.mxu0 0
    %404 = vmatpush1.bf16.xpose.msra.mxu0 0
    %405 = vmatprep.subr.bf16.mxu0 0
    %406 = vmatpush1.bf16.xpose.msra.mxu0 0
    %407 = vmatprep.subr.bf16.mxu0 0
    %408 = vmatpush1.bf16.xpose.msra.mxu0 0
    %409 = vmatprep.mubr.bf16.mxu0 0
    %410 = vmatmul.mubr.bf16.gmra.mrb[0].mxu0 %v366
    %v411 = vpop.f32.mrb[0].mxu0
    %v412 = vadd.f32 0.0, %v411
    %v413 = vpop.f32.mrb[0].mxu0
    %v414 = vpop.f32.mrb[0].mxu0
    %v415 = vadd.f32 0.0, %v414
    %v416 = vpop.f32.mrb[0].mxu0
    %417 = vmatprep.mubr.bf16.mxu0 0
    %418 = vmatmul.mubr.bf16.gmra.mrb[0].mxu0 %v369
    %v419 = vpop.f32.mrb[0].mxu0
    %v420 = vadd.f32 0.0, %v419
    %v421 = vpop.f32.mrb[0].mxu0
    %v422 = vpop.f32.mrb[0].mxu0
    %v423 = vpop.f32.mrb[0].mxu0
    %424 = vdwg.mxu0
    %v425 = vmul.f32 %v412, 0.35355338
    %v426 = vmul.f32 %v415, 0.35355338
    %v427 = vmul.f32 %v420, 0.35355338
    %vm428 = vcmask 138240
    %v429 = vsel %vm428, %v425, -inf
    %430 = vmax.xlane.f32.xlu0 %v429
    %v431 = vpop.xlane.xlu0 %430
    %v432 = vsel %vm428, %v426, -inf
    %433 = vmax.xlane.f32.xlu0 %v432
    %v434 = vpop.xlane.xlu0 %433
    %vm435 = vcmask 131072
    %v436 = vsel %vm435, %v427, -inf
    %437 = vmax.xlane.f32.xlu0 %v436
    %v438 = vpop.xlane.xlu0 %437
    %v439 = vsub.f32 %v425, %v431
    %v440 = vsub.f32 %v426, %v434
    %v441 = vsub.f32 %v427, %v438
    %v442 = vmul.f32 %v439, 1.442695
    %v443 = vpow.pop %v442
    %v444 = vmul.f32 %v440, 1.442695
    %v445 = vpow.pop %v444
    %v446 = vmul.f32 %v441, 1.442695
    %v447 = vpow.pop %v446
    %v448 = vsel %vm428, %v443, 0.0
    %449 = vadd.xlane.f32.xlu0 %v448
    %v450 = vpop.xlane.xlu0 %449
    %v451 = vsel %vm428, %v445, 0.0
    %452 = vadd.xlane.f32.xlu0 %v451
    %v453 = vpop.xlane.xlu0 %452
    %v454 = vsel %vm435, %v447, 0.0
    %455 = vadd.xlane.f32.xlu0 %v454
    %v456 = vpop.xlane.xlu0 %455
    %v457 = vrcp.pop %v450
    %v458 = vmul.f32 %v443, %v457
    %v459 = vrcp.pop %v453
    %v460 = vmul.f32 %v445, %v459
    %v461 = vrcp.pop %v456
    %v462 = vmul.f32 %v447, %v461
    %463 = vst.msk [vmem:[%s18] sm:$0xff] %vm428, %v458
    %464 = vst.msk [vmem:[%s18 + $0x8] sm:$0xff] %vm428, %v460
    %465 = vst.msk [vmem:[%s18 + $0x10] sm:$0x1] %vm435, %v462
    %v466 = vpack.c.bf16 %v460, %v458
    %v467 = vpack.c.bf16 %v462, %v462
    %468 = vrot.lane.b32.xlu0 %v356, 64
    %v469 = vpop.permute.xlu0 %468
    %470 = vrot.lane.b32.xlu0 %v357, 64
    %v471 = vpop.permute.xlu0 %470
    %v474 = vsel %vm428, %v466, 0
    %v477 = vsel %vm428, %v467, 0
    %v479 = vsel 0, 4294967295, 65535
    %v480 = vsel %vm163, %v479, 0
    %v482 = vand.u32 %v471, %v480
    %484 = vmatprep.subr.bf16.mxu0 0
    %485 = vmatpush1.bf16.msra.mxu0 %v469
    %486 = vmatprep.subr.bf16.mxu0 0
    %487 = vmatpush1.bf16.msra.mxu0 %v482
    %488 = vmatprep.subr.bf16.mxu0 0
    %489 = vmatpush1.bf16.msra.mxu0 0
    %490 = vmatprep.subr.bf16.mxu0 0
    %491 = vmatpush1.bf16.msra.mxu0 0
    %492 = vmatprep.subr.bf16.mxu0 0
    %493 = vmatpush1.bf16.msra.mxu0 0
    %494 = vmatprep.subr.bf16.mxu0 0
    %495 = vmatpush1.bf16.msra.mxu0 0
    %496 = vmatprep.subr.bf16.mxu0 0
    %497 = vmatpush1.bf16.msra.mxu0 0
    %498 = vmatprep.subr.bf16.mxu0 0
    %499 = vmatpush1.bf16.msra.mxu0 0
    %500 = vmatprep.subr.bf16.mxu0 0
    %501 = vmatpush1.bf16.msra.mxu0 0
    %502 = vmatprep.subr.bf16.mxu0 0
    %503 = vmatpush1.bf16.msra.mxu0 0
    %504 = vmatprep.subr.bf16.mxu0 0
    %505 = vmatpush1.bf16.msra.mxu0 0
    %506 = vmatprep.subr.bf16.mxu0 0
    %507 = vmatpush1.bf16.msra.mxu0 0
    %508 = vmatprep.subr.bf16.mxu0 0
    %509 = vmatpush1.bf16.msra.mxu0 0
    %510 = vmatprep.subr.bf16.mxu0 0
    %511 = vmatpush1.bf16.msra.mxu0 0
    %512 = vmatprep.subr.bf16.mxu0 0
    %513 = vmatpush1.bf16.msra.mxu0 0
    %514 = vmatprep.subr.bf16.mxu0 0
    %515 = vmatpush1.bf16.msra.mxu0 0
    %516 = vmatprep.mubr.bf16.mxu0 0
    %517 = vmatmul.mubr.bf16.gmra.mrb[0].mxu0 %v474
    %v518 = vpop.f32.mrb[0].mxu0
    %v519 = vadd.f32 0.0, %v518
    %v520 = vpop.f32.mrb[0].mxu0
    %v521 = vpop.f32.mrb[0].mxu0
    %v522 = vadd.f32 0.0, %v521
    %v523 = vpop.f32.mrb[0].mxu0
    %524 = vmatprep.mubr.bf16.mxu0 0
    %525 = vmatmul.mubr.bf16.gmra.mrb[0].mxu0 %v477
    %v526 = vpop.f32.mrb[0].mxu0
    %v527 = vadd.f32 0.0, %v526
    %v528 = vpop.f32.mrb[0].mxu0
    %v529 = vpop.f32.mrb[0].mxu0
    %v530 = vpop.f32.mrb[0].mxu0
    %531 = vdwg.mxu0
    %532 = vst.msk [vmem:[#allocation2] sm:$0xff] %vm364, %v519
    %533 = vst.msk [vmem:[#allocation2 + $0x8] sm:$0xff] %vm364, %v522
    %vm534 = vcmask 57344
    %535 = vst.msk [vmem:[#allocation2 + $0x10] sm:$0x1] %vm534, %v527
    %536 = vrot.lane.b32.xlu0 %v356, 120
    %v537 = vpop.permute.xlu0 %536
    %538 = vrot.lane.b32.xlu0 %v357, 120
    %v539 = vpop.permute.xlu0 %538
    %540 = vrot.lane.b32.xlu0 %v356, 88
    %v541 = vpop.permute.xlu0 %540
    %542 = vrot.lane.b32.xlu0 %v357, 88
    %v543 = vpop.permute.xlu0 %542
    %v545 = vsel %vm364, %v537, 0
    %v548 = vsel %vm364, %v539, 0
    %v551 = vsel %vm364, %v541, 0
    %v554 = vsel %vm364, %v543, 0
    %556 = vmatprep.subr.bf16.mxu0 0
    %557 = vmatpush1.bf16.xpose.msra.mxu0 %v551
    %558 = vmatprep.subr.bf16.mxu0 0
    %559 = vmatpush1.bf16.xpose.msra.mxu0 %v554
    %560 = vmatprep.subr.bf16.mxu0 0
    %561 = vmatpush1.bf16.xpose.msra.mxu0 0
    %562 = vmatprep.subr.bf16.mxu0 0
    %563 = vmatpush1.bf16.xpose.msra.mxu0 0
    %564 = vmatprep.subr.bf16.mxu0 0
    %565 = vmatpush1.bf16.xpose.msra.mxu0 0
    %566 = vmatprep.subr.bf16.mxu0 0
    %567 = vmatpush1.bf16.xpose.msra.mxu0 0
    %568 = vmatprep.subr.bf16.mxu0 0
    %569 = vmatpush1.bf16.xpose.msra.mxu0 0
    %570 = vmatprep.subr.bf16.mxu0 0
    %571 = vmatpush1.bf16.xpose.msra.mxu0 0
    %572 = vmatprep.subr.bf16.mxu0 0
    %573 = vmatpush1.bf16.xpose.msra.mxu0 0
    %574 = vmatprep.subr.bf16.mxu0 0
    %575 = vmatpush1.bf16.xpose.msra.mxu0 0
    %576 = vmatprep.subr.bf16.mxu0 0
    %577 = vmatpush1.bf16.xpose.msra.mxu0 0
    %578 = vmatprep.subr.bf16.mxu0 0
    %579 = vmatpush1.bf16.xpose.msra.mxu0 0
    %580 = vmatprep.subr.bf16.mxu0 0
    %581 = vmatpush1.bf16.xpose.msra.mxu0 0
    %582 = vmatprep.subr.bf16.mxu0 0
    %583 = vmatpush1.bf16.xpose.msra.mxu0 0
    %584 = vmatprep.subr.bf16.mxu0 0
    %585 = vmatpush1.bf16.xpose.msra.mxu0 0
    %586 = vmatprep.subr.bf16.mxu0 0
    %587 = vmatpush1.bf16.xpose.msra.mxu0 0
    %588 = vmatprep.mubr.bf16.mxu0 0
    %589 = vmatmul.mubr.bf16.gmra.mrb[0].mxu0 %v545
    %v590 = vpop.f32.mrb[0].mxu0
    %v591 = vadd.f32 0.0, %v590
    %v592 = vpop.f32.mrb[0].mxu0
    %v593 = vpop.f32.mrb[0].mxu0
    %v594 = vadd.f32 0.0, %v593
    %v595 = vpop.f32.mrb[0].mxu0
    %596 = vmatprep.mubr.bf16.mxu0 0
    %597 = vmatmul.mubr.bf16.gmra.mrb[0].mxu0 %v548
    %v598 = vpop.f32.mrb[0].mxu0
    %v599 = vadd.f32 0.0, %v598
    %v600 = vpop.f32.mrb[0].mxu0
    %v601 = vpop.f32.mrb[0].mxu0
    %v602 = vpop.f32.mrb[0].mxu0
    %603 = vdwg.mxu0
    %v604 = vmul.f32 %v591, 0.35355338
    %v605 = vmul.f32 %v594, 0.35355338
    %v606 = vmul.f32 %v599, 0.35355338
    %v607 = vsel %vm428, %v604, -inf
    %608 = vmax.xlane.f32.xlu0 %v607
    %v609 = vpop.xlane.xlu0 %608
    %v610 = vsel %vm428, %v605, -inf
    %611 = vmax.xlane.f32.xlu0 %v610
    %v612 = vpop.xlane.xlu0 %611
    %v613 = vsel %vm435, %v606, -inf
    %614 = vmax.xlane.f32.xlu0 %v613
    %v615 = vpop.xlane.xlu0 %614
    %v616 = vsub.f32 %v604, %v609
    %v617 = vsub.f32 %v605, %v612
    %v618 = vsub.f32 %v606, %v615
    %v619 = vmul.f32 %v616, 1.442695
    %v620 = vpow.pop %v619
    %v621 = vmul.f32 %v617, 1.442695
    %v622 = vpow.pop %v621
    %v623 = vmul.f32 %v618, 1.442695
    %v624 = vpow.pop %v623
    %v625 = vsel %vm428, %v620, 0.0
    %626 = vadd.xlane.f32.xlu0 %v625
    %v627 = vpop.xlane.xlu0 %626
    %v628 = vsel %vm428, %v622, 0.0
    %629 = vadd.xlane.f32.xlu0 %v628
    %v630 = vpop.xlane.xlu0 %629
    %v631 = vsel %vm435, %v624, 0.0
    %632 = vadd.xlane.f32.xlu0 %v631
    %v633 = vpop.xlane.xlu0 %632
    %v634 = vrcp.pop %v627
    %v635 = vmul.f32 %v620, %v634
    %v636 = vrcp.pop %v630
    %v637 = vmul.f32 %v622, %v636
    %v638 = vrcp.pop %v633
    %v639 = vmul.f32 %v624, %v638
    %s640 = scalar_lea.vmem %s18, 24
    %641 = vst.msk [vmem:[%s640] sm:$0xff] %vm428, %v635
    %642 = vst.msk [vmem:[%s640 + $0x8] sm:$0xff] %vm428, %v637
    %643 = vst.msk [vmem:[%s640 + $0x10] sm:$0x1] %vm435, %v639
    %v644 = vpack.c.bf16 %v637, %v635
    %v645 = vpack.c.bf16 %v639, %v639
    %646 = vrot.lane.b32.xlu0 %v356, 56
    %v647 = vpop.permute.xlu0 %646
    %648 = vrot.lane.b32.xlu0 %v357, 56
    %v649 = vpop.permute.xlu0 %648
    %v652 = vsel %vm428, %v644, 0
    %v655 = vsel %vm428, %v645, 0
    %v658 = vand.u32 %v649, %v480
    %660 = vmatprep.subr.bf16.mxu0 0
    %661 = vmatpush1.bf16.msra.mxu0 %v647
    %662 = vmatprep.subr.bf16.mxu0 0
    %663 = vmatpush1.bf16.msra.mxu0 %v658
    %664 = vmatprep.subr.bf16.mxu0 0
    %665 = vmatpush1.bf16.msra.mxu0 0
    %666 = vmatprep.subr.bf16.mxu0 0
    %667 = vmatpush1.bf16.msra.mxu0 0
    %668 = vmatprep.subr.bf16.mxu0 0
    %669 = vmatpush1.bf16.msra.mxu0 0
    %670 = vmatprep.subr.bf16.mxu0 0
    %671 = vmatpush1.bf16.msra.mxu0 0
    %672 = vmatprep.subr.bf16.mxu0 0
    %673 = vmatpush1.bf16.msra.mxu0 0
    %674 = vmatprep.subr.bf16.mxu0 0
    %675 = vmatpush1.bf16.msra.mxu0 0
    %676 = vmatprep.subr.bf16.mxu0 0
    %677 = vmatpush1.bf16.msra.mxu0 0
    %678 = vmatprep.subr.bf16.mxu0 0
    %679 = vmatpush1.bf16.msra.mxu0 0
    %680 = vmatprep.subr.bf16.mxu0 0
    %681 = vmatpush1.bf16.msra.mxu0 0
    %682 = vmatprep.subr.bf16.mxu0 0
    %683 = vmatpush1.bf16.msra.mxu0 0
    %684 = vmatprep.subr.bf16.mxu0 0
    %685 = vmatpush1.bf16.msra.mxu0 0
    %686 = vmatprep.subr.bf16.mxu0 0
    %687 = vmatpush1.bf16.msra.mxu0 0
    %688 = vmatprep.subr.bf16.mxu0 0
    %689 = vmatpush1.bf16.msra.mxu0 0
    %690 = vmatprep.subr.bf16.mxu0 0
    %691 = vmatpush1.bf16.msra.mxu0 0
    %692 = vmatprep.mubr.bf16.mxu0 0
    %693 = vmatmul.mubr.bf16.gmra.mrb[0].mxu0 %v652
    %v694 = vpop.f32.mrb[0].mxu0
    %v695 = vadd.f32 0.0, %v694
    %v696 = vpop.f32.mrb[0].mxu0
    %v697 = vpop.f32.mrb[0].mxu0
    %v698 = vadd.f32 0.0, %v697
    %v699 = vpop.f32.mrb[0].mxu0
    %700 = vmatprep.mubr.bf16.mxu0 0
    %701 = vmatmul.mubr.bf16.gmra.mrb[0].mxu0 %v655
    %v702 = vpop.f32.mrb[0].mxu0
    %v703 = vadd.f32 0.0, %v702
    %v704 = vpop.f32.mrb[0].mxu0
    %v705 = vpop.f32.mrb[0].mxu0
    %v706 = vpop.f32.mrb[0].mxu0
    %707 = vdwg.mxu0
    %711 = vrot.lane.b32.xlu0 %v695, 8
    %v712 = vpop.permute.xlu0 %711
    %713 = vrot.lane.b32.xlu0 %v698, 8
    %v714 = vpop.permute.xlu0 %713
    %715 = vrot.lane.b32.xlu0 %v703, 8
    %v716 = vpop.permute.xlu0 %715
    %vm720 = vcmask 130112
    %721 = vst.msk [vmem:[#allocation2] sm:$0xff] %vm720, %v712
    %722 = vst.msk [vmem:[#allocation2 + $0x8] sm:$0xff] %vm720, %v714
    %vm723 = vcmask 122944
    %724 = vst.msk [vmem:[#allocation2 + $0x10] sm:$0x1] %vm723, %v716
    %725 = vrot.lane.b32.xlu0 %v356, 112
    %v726 = vpop.permute.xlu0 %725
    %727 = vrot.lane.b32.xlu0 %v357, 112
    %v728 = vpop.permute.xlu0 %727
    %729 = vrot.lane.b32.xlu0 %v356, 80
    %v730 = vpop.permute.xlu0 %729
    %731 = vrot.lane.b32.xlu0 %v357, 80
    %v732 = vpop.permute.xlu0 %731
    %v734 = vsel %vm364, %v726, 0
    %v737 = vsel %vm364, %v728, 0
    %v740 = vsel %vm364, %v730, 0
    %v743 = vsel %vm364, %v732, 0
    %745 = vmatprep.subr.bf16.mxu0 0
    %746 = vmatpush1.bf16.xpose.msra.mxu0 %v740
    %747 = vmatprep.subr.bf16.mxu0 0
    %748 = vmatpush1.bf16.xpose.msra.mxu0 %v743
    %749 = vmatprep.subr.bf16.mxu0 0
    %750 = vmatpush1.bf16.xpose.msra.mxu0 0
    %751 = vmatprep.subr.bf16.mxu0 0
    %752 = vmatpush1.bf16.xpose.msra.mxu0 0
    %753 = vmatprep.subr.bf16.mxu0 0
    %754 = vmatpush1.bf16.xpose.msra.mxu0 0
    %755 = vmatprep.subr.bf16.mxu0 0
    %756 = vmatpush1.bf16.xpose.msra.mxu0 0
    %757 = vmatprep.subr.bf16.mxu0 0
    %758 = vmatpush1.bf16.xpose.msra.mxu0 0
    %759 = vmatprep.subr.bf16.mxu0 0
    %760 = vmatpush1.bf16.xpose.msra.mxu0 0
    %761 = vmatprep.subr.bf16.mxu0 0
    %762 = vmatpush1.bf16.xpose.msra.mxu0 0
    %763 = vmatprep.subr.bf16.mxu0 0
    %764 = vmatpush1.bf16.xpose.msra.mxu0 0
    %765 = vmatprep.subr.bf16.mxu0 0
    %766 = vmatpush1.bf16.xpose.msra.mxu0 0
    %767 = vmatprep.subr.bf16.mxu0 0
    %768 = vmatpush1.bf16.xpose.msra.mxu0 0
    %769 = vmatprep.subr.bf16.mxu0 0
    %770 = vmatpush1.bf16.xpose.msra.mxu0 0
    %771 = vmatprep.subr.bf16.mxu0 0
    %772 = vmatpush1.bf16.xpose.msra.mxu0 0
    %773 = vmatprep.subr.bf16.mxu0 0
    %774 = vmatpush1.bf16.xpose.msra.mxu0 0
    %775 = vmatprep.subr.bf16.mxu0 0
    %776 = vmatpush1.bf16.xpose.msra.mxu0 0
    %777 = vmatprep.mubr.bf16.mxu0 0
    %778 = vmatmul.mubr.bf16.gmra.mrb[0].mxu0 %v734
    %v779 = vpop.f32.mrb[0].mxu0
    %v780 = vadd.f32 0.0, %v779
    %v781 = vpop.f32.mrb[0].mxu0
    %v782 = vpop.f32.mrb[0].mxu0
    %v783 = vadd.f32 0.0, %v782
    %v784 = vpop.f32.mrb[0].mxu0
    %785 = vmatprep.mubr.bf16.mxu0 0
    %786 = vmatmul.mubr.bf16.gmra.mrb[0].mxu0 %v737
    %v787 = vpop.f32.mrb[0].mxu0
    %v788 = vadd.f32 0.0, %v787
    %v789 = vpop.f32.mrb[0].mxu0
    %v790 = vpop.f32.mrb[0].mxu0
    %v791 = vpop.f32.mrb[0].mxu0
    %792 = vdwg.mxu0
    %v793 = vmul.f32 %v780, 0.35355338
    %v794 = vmul.f32 %v783, 0.35355338
    %v795 = vmul.f32 %v788, 0.35355338
    %v796 = vsel %vm428, %v793, -inf
    %797 = vmax.xlane.f32.xlu0 %v796
    %v798 = vpop.xlane.xlu0 %797
    %v799 = vsel %vm428, %v794, -inf
    %800 = vmax.xlane.f32.xlu0 %v799
    %v801 = vpop.xlane.xlu0 %800
    %v802 = vsel %vm435, %v795, -inf
    %803 = vmax.xlane.f32.xlu0 %v802
    %v804 = vpop.xlane.xlu0 %803
    %v805 = vsub.f32 %v793, %v798
    %v806 = vsub.f32 %v794, %v801
    %v807 = vsub.f32 %v795, %v804
    %v808 = vmul.f32 %v805, 1.442695
    %v809 = vpow.pop %v808
    %v810 = vmul.f32 %v806, 1.442695
    %v811 = vpow.pop %v810
    %v812 = vmul.f32 %v807, 1.442695
    %v813 = vpow.pop %v812
    %v814 = vsel %vm428, %v809, 0.0
    %815 = vadd.xlane.f32.xlu0 %v814
    %v816 = vpop.xlane.xlu0 %815
    %v817 = vsel %vm428, %v811, 0.0
    %818 = vadd.xlane.f32.xlu0 %v817
    %v819 = vpop.xlane.xlu0 %818
    %v820 = vsel %vm435, %v813, 0.0
    %821 = vadd.xlane.f32.xlu0 %v820
    %v822 = vpop.xlane.xlu0 %821
    %v823 = vrcp.pop %v816
    %v824 = vmul.f32 %v809, %v823
    %v825 = vrcp.pop %v819
    %v826 = vmul.f32 %v811, %v825
    %v827 = vrcp.pop %v822
    %v828 = vmul.f32 %v813, %v827
    %s829 = scalar_lea.vmem %s18, 48
    %830 = vst.msk [vmem:[%s829] sm:$0xff] %vm428, %v824
    %831 = vst.msk [vmem:[%s829 + $0x8] sm:$0xff] %vm428, %v826
    %832 = vst.msk [vmem:[%s829 + $0x10] sm:$0x1] %vm435, %v828
    %v833 = vpack.c.bf16 %v826, %v824
    %v834 = vpack.c.bf16 %v828, %v828
    %835 = vrot.lane.b32.xlu0 %v356, 48
    %v836 = vpop.permute.xlu0 %835
    %837 = vrot.lane.b32.xlu0 %v357, 48
    %v838 = vpop.permute.xlu0 %837
    %v841 = vsel %vm428, %v833, 0
    %v844 = vsel %vm428, %v834, 0
    %v847 = vand.u32 %v838, %v480
    %849 = vmatprep.subr.bf16.mxu0 0
    %850 = vmatpush1.bf16.msra.mxu0 %v836
    %851 = vmatprep.subr.bf16.mxu0 0
    %852 = vmatpush1.bf16.msra.mxu0 %v847
    %853 = vmatprep.subr.bf16.mxu0 0
    %854 = vmatpush1.bf16.msra.mxu0 0
    %855 = vmatprep.subr.bf16.mxu0 0
    %856 = vmatpush1.bf16.msra.mxu0 0
    %857 = vmatprep.subr.bf16.mxu0 0
    %858 = vmatpush1.bf16.msra.mxu0 0
    %859 = vmatprep.subr.bf16.mxu0 0
    %860 = vmatpush1.bf16.msra.mxu0 0
    %861 = vmatprep.subr.bf16.mxu0 0
    %862 = vmatpush1.bf16.msra.mxu0 0
    %863 = vmatprep.subr.bf16.mxu0 0
    %864 = vmatpush1.bf16.msra.mxu0 0
    %865 = vmatprep.subr.bf16.mxu0 0
    %866 = vmatpush1.bf16.msra.mxu0 0
    %867 = vmatprep.subr.bf16.mxu0 0
    %868 = vmatpush1.bf16.msra.mxu0 0
    %869 = vmatprep.subr.bf16.mxu0 0
    %870 = vmatpush1.bf16.msra.mxu0 0
    %871 = vmatprep.subr.bf16.mxu0 0
    %872 = vmatpush1.bf16.msra.mxu0 0
    %873 = vmatprep.subr.bf16.mxu0 0
    %874 = vmatpush1.bf16.msra.mxu0 0
    %875 = vmatprep.subr.bf16.mxu0 0
    %876 = vmatpush1.bf16.msra.mxu0 0
    %877 = vmatprep.subr.bf16.mxu0 0
    %878 = vmatpush1.bf16.msra.mxu0 0
    %879 = vmatprep.subr.bf16.mxu0 0
    %880 = vmatpush1.bf16.msra.mxu0 0
    %881 = vmatprep.mubr.bf16.mxu0 0
    %882 = vmatmul.mubr.bf16.gmra.mrb[0].mxu0 %v841
    %v883 = vpop.f32.mrb[0].mxu0
    %v884 = vadd.f32 0.0, %v883
    %v885 = vpop.f32.mrb[0].mxu0
    %v886 = vpop.f32.mrb[0].mxu0
    %v887 = vadd.f32 0.0, %v886
    %v888 = vpop.f32.mrb[0].mxu0
    %889 = vmatprep.mubr.bf16.mxu0 0
    %890 = vmatmul.mubr.bf16.gmra.mrb[0].mxu0 %v844
    %v891 = vpop.f32.mrb[0].mxu0
    %v892 = vadd.f32 0.0, %v891
    %v893 = vpop.f32.mrb[0].mxu0
    %v894 = vpop.f32.mrb[0].mxu0
    %v895 = vpop.f32.mrb[0].mxu0
    %896 = vdwg.mxu0
    %900 = vrot.lane.b32.xlu0 %v884, 16
    %v901 = vpop.permute.xlu0 %900
    %902 = vrot.lane.b32.xlu0 %v887, 16
    %v903 = vpop.permute.xlu0 %902
    %904 = vrot.lane.b32.xlu0 %v892, 16
    %v905 = vpop.permute.xlu0 %904
    %vm909 = vcmask 195712
    %910 = vst.msk [vmem:[#allocation2] sm:$0xff] %vm909, %v901
    %911 = vst.msk [vmem:[#allocation2 + $0x8] sm:$0xff] %vm909, %v903
    %vm912 = vcmask 188544
    %913 = vst.msk [vmem:[#allocation2 + $0x10] sm:$0x1] %vm912, %v905
    %914 = vrot.lane.b32.xlu0 %v356, 104
    %v915 = vpop.permute.xlu0 %914
    %916 = vrot.lane.b32.xlu0 %v357, 104
    %v917 = vpop.permute.xlu0 %916
    %918 = vrot.lane.b32.xlu0 %v356, 72
    %v919 = vpop.permute.xlu0 %918
    %920 = vrot.lane.b32.xlu0 %v357, 72
    %v921 = vpop.permute.xlu0 %920
    %v923 = vsel %vm364, %v915, 0
    %v926 = vsel %vm364, %v917, 0
    %v929 = vsel %vm364, %v919, 0
    %v932 = vsel %vm364, %v921, 0
    %934 = vmatprep.subr.bf16.mxu0 0
    %935 = vmatpush1.bf16.xpose.msra.mxu0 %v929
    %936 = vmatprep.subr.bf16.mxu0 0
    %937 = vmatpush1.bf16.xpose.msra.mxu0 %v932
    %938 = vmatprep.subr.bf16.mxu0 0
    %939 = vmatpush1.bf16.xpose.msra.mxu0 0
    %940 = vmatprep.subr.bf16.mxu0 0
    %941 = vmatpush1.bf16.xpose.msra.mxu0 0
    %942 = vmatprep.subr.bf16.mxu0 0
    %943 = vmatpush1.bf16.xpose.msra.mxu0 0
    %944 = vmatprep.subr.bf16.mxu0 0
    %945 = vmatpush1.bf16.xpose.msra.mxu0 0
    %946 = vmatprep.subr.bf16.mxu0 0
    %947 = vmatpush1.bf16.xpose.msra.mxu0 0
    %948 = vmatprep.subr.bf16.mxu0 0
    %949 = vmatpush1.bf16.xpose.msra.mxu0 0
    %950 = vmatprep.subr.bf16.mxu0 0
    %951 = vmatpush1.bf16.xpose.msra.mxu0 0
    %952 = vmatprep.subr.bf16.mxu0 0
    %953 = vmatpush1.bf16.xpose.msra.mxu0 0
    %954 = vmatprep.subr.bf16.mxu0 0
    %955 = vmatpush1.bf16.xpose.msra.mxu0 0
    %956 = vmatprep.subr.bf16.mxu0 0
    %957 = vmatpush1.bf16.xpose.msra.mxu0 0
    %958 = vmatprep.subr.bf16.mxu0 0
    %959 = vmatpush1.bf16.xpose.msra.mxu0 0
    %960 = vmatprep.subr.bf16.mxu0 0
    %961 = vmatpush1.bf16.xpose.msra.mxu0 0
    %962 = vmatprep.subr.bf16.mxu0 0
    %963 = vmatpush1.bf16.xpose.msra.mxu0 0
    %964 = vmatprep.subr.bf16.mxu0 0
    %965 = vmatpush1.bf16.xpose.msra.mxu0 0
    %966 = vmatprep.mubr.bf16.mxu0 0
    %967 = vmatmul.mubr.bf16.gmra.mrb[0].mxu0 %v923
    %v968 = vpop.f32.mrb[0].mxu0
    %v969 = vadd.f32 0.0, %v968
    %v970 = vpop.f32.mrb[0].mxu0
    %v971 = vpop.f32.mrb[0].mxu0
    %v972 = vadd.f32 0.0, %v971
    %v973 = vpop.f32.mrb[0].mxu0
    %974 = vmatprep.mubr.bf16.mxu0 0
    %975 = vmatmul.mubr.bf16.gmra.mrb[0].mxu0 %v926
    %v976 = vpop.f32.mrb[0].mxu0
    %v977 = vadd.f32 0.0, %v976
    %v978 = vpop.f32.mrb[0].mxu0
    %v979 = vpop.f32.mrb[0].mxu0
    %v980 = vpop.f32.mrb[0].mxu0
    %981 = vdwg.mxu0
    %v982 = vmul.f32 %v969, 0.35355338
    %v983 = vmul.f32 %v972, 0.35355338
    %v984 = vmul.f32 %v977, 0.35355338
    %v985 = vsel %vm428, %v982, -inf
    %986 = vmax.xlane.f32.xlu0 %v985
    %v987 = vpop.xlane.xlu0 %986
    %v988 = vsel %vm428, %v983, -inf
    %989 = vmax.xlane.f32.xlu0 %v988
    %v990 = vpop.xlane.xlu0 %989
    %v991 = vsel %vm435, %v984, -inf
    %992 = vmax.xlane.f32.xlu0 %v991
    %v993 = vpop.xlane.xlu0 %992
    %v994 = vsub.f32 %v982, %v987
    %v995 = vsub.f32 %v983, %v990
    %v996 = vsub.f32 %v984, %v993
    %v997 = vmul.f32 %v994, 1.442695
    %v998 = vpow.pop %v997
    %v999 = vmul.f32 %v995, 1.442695
    %v1000 = vpow.pop %v999
    %v1001 = vmul.f32 %v996, 1.442695
    %v1002 = vpow.pop %v1001
    %v1003 = vsel %vm428, %v998, 0.0
    %1004 = vadd.xlane.f32.xlu0 %v1003
    %v1005 = vpop.xlane.xlu0 %1004
    %v1006 = vsel %vm428, %v1000, 0.0
    %1007 = vadd.xlane.f32.xlu0 %v1006
    %v1008 = vpop.xlane.xlu0 %1007
    %v1009 = vsel %vm435, %v1002, 0.0
    %1010 = vadd.xlane.f32.xlu0 %v1009
    %v1011 = vpop.xlane.xlu0 %1010
    %v1012 = vrcp.pop %v1005
    %v1013 = vmul.f32 %v998, %v1012
    %v1014 = vrcp.pop %v1008
    %v1015 = vmul.f32 %v1000, %v1014
    %v1016 = vrcp.pop %v1011
    %v1017 = vmul.f32 %v1002, %v1016
    %s1018 = scalar_lea.vmem %s18, 72
    %1019 = vst.msk [vmem:[%s1018] sm:$0xff] %vm428, %v1013
    %1020 = vst.msk [vmem:[%s1018 + $0x8] sm:$0xff] %vm428, %v1015
    %1021 = vst.msk [vmem:[%s1018 + $0x10] sm:$0x1] %vm435, %v1017
    %v1022 = vpack.c.bf16 %v1015, %v1013
    %v1023 = vpack.c.bf16 %v1017, %v1017
    %1024 = vrot.lane.b32.xlu0 %v356, 40
    %v1025 = vpop.permute.xlu0 %1024
    %1026 = vrot.lane.b32.xlu0 %v357, 40
    %v1027 = vpop.permute.xlu0 %1026
    %v1030 = vsel %vm428, %v1022, 0
    %v1033 = vsel %vm428, %v1023, 0
    %v1036 = vand.u32 %v1027, %v480
    %1038 = vmatprep.subr.bf16.mxu0 0
    %1039 = vmatpush1.bf16.msra.mxu0 %v1025
    %1040 = vmatprep.subr.bf16.mxu0 0
    %1041 = vmatpush1.bf16.msra.mxu0 %v1036
    %1042 = vmatprep.subr.bf16.mxu0 0
    %1043 = vmatpush1.bf16.msra.mxu0 0
    %1044 = vmatprep.subr.bf16.mxu0 0
    %1045 = vmatpush1.bf16.msra.mxu0 0
    %1046 = vmatprep.subr.bf16.mxu0 0
    %1047 = vmatpush1.bf16.msra.mxu0 0
    %1048 = vmatprep.subr.bf16.mxu0 0
    %1049 = vmatpush1.bf16.msra.mxu0 0
    %1050 = vmatprep.subr.bf16.mxu0 0
    %1051 = vmatpush1.bf16.msra.mxu0 0
    %1052 = vmatprep.subr.bf16.mxu0 0
    %1053 = vmatpush1.bf16.msra.mxu0 0
    %1054 = vmatprep.subr.bf16.mxu0 0
    %1055 = vmatpush1.bf16.msra.mxu0 0
    %1056 = vmatprep.subr.bf16.mxu0 0
    %1057 = vmatpush1.bf16.msra.mxu0 0
    %1058 = vmatprep.subr.bf16.mxu0 0
    %1059 = vmatpush1.bf16.msra.mxu0 0
    %1060 = vmatprep.subr.bf16.mxu0 0
    %1061 = vmatpush1.bf16.msra.mxu0 0
    %1062 = vmatprep.subr.bf16.mxu0 0
    %1063 = vmatpush1.bf16.msra.mxu0 0
    %1064 = vmatprep.subr.bf16.mxu0 0
    %1065 = vmatpush1.bf16.msra.mxu0 0
    %1066 = vmatprep.subr.bf16.mxu0 0
    %1067 = vmatpush1.bf16.msra.mxu0 0
    %1068 = vmatprep.subr.bf16.mxu0 0
    %1069 = vmatpush1.bf16.msra.mxu0 0
    %1070 = vmatprep.mubr.bf16.mxu0 0
    %1071 = vmatmul.mubr.bf16.gmra.mrb[0].mxu0 %v1030
    %v1072 = vpop.f32.mrb[0].mxu0
    %v1073 = vadd.f32 0.0, %v1072
    %v1074 = vpop.f32.mrb[0].mxu0
    %v1075 = vpop.f32.mrb[0].mxu0
    %v1076 = vadd.f32 0.0, %v1075
    %v1077 = vpop.f32.mrb[0].mxu0
    %1078 = vmatprep.mubr.bf16.mxu0 0
    %1079 = vmatmul.mubr.bf16.gmra.mrb[0].mxu0 %v1033
    %v1080 = vpop.f32.mrb[0].mxu0
    %v1081 = vadd.f32 0.0, %v1080
    %v1082 = vpop.f32.mrb[0].mxu0
    %v1083 = vpop.f32.mrb[0].mxu0
    %v1084 = vpop.f32.mrb[0].mxu0
    %1085 = vdwg.mxu0
    %1089 = vrot.lane.b32.xlu0 %v1073, 24
    %v1090 = vpop.permute.xlu0 %1089
    %1091 = vrot.lane.b32.xlu0 %v1076, 24
    %v1092 = vpop.permute.xlu0 %1091
    %1093 = vrot.lane.b32.xlu0 %v1081, 24
    %v1094 = vpop.permute.xlu0 %1093
    %vm1098 = vcmask 261312
    %1099 = vst.msk [vmem:[#allocation2] sm:$0xff] %vm1098, %v1090
    %1100 = vst.msk [vmem:[#allocation2 + $0x8] sm:$0xff] %vm1098, %v1092
    %vm1101 = vcmask 254144
    %1102 = vst.msk [vmem:[#allocation2 + $0x10] sm:$0x1] %vm1101, %v1094
    %v1103 = vpack.c.bf16 %v346, %v343
    %v1104 = vpack.c.bf16 %v351, %v351
    %vm1105 = vsmask.f32 7424
    %v1107 = vshrl.u32 %v1103, 16
    %v1109 = vshll.u32 %v1103, 16
    %v1111 = vrot.slane %v1109, 1
    %v1112 = vor.u32 %v1107, %v1111
    %v1114 = vshll.u32 %v1104, 16
    %v1116 = vrot.slane %v1114, 1
    %v1117 = vsel %vm1105, %v1112, %v1116
    %v1118 = vshrl.u32 %v1104, 16
    %1120 = vrot.lane.b32.xlu0 %v1117, 96
    %v1121 = vpop.permute.xlu0 %1120
    %1122 = vrot.lane.b32.xlu0 %v1118, 96
    %v1123 = vpop.permute.xlu0 %1122
    %v1125 = vsel %vm364, %v1117, 0
    %v1128 = vsel %vm364, %v1118, 0
    %v1131 = vsel %vm364, %v1121, 0
    %v1134 = vsel %vm364, %v1123, 0
    %1136 = vmatprep.subr.bf16.mxu0 0
    %1137 = vmatpush1.bf16.xpose.msra.mxu0 %v1131
    %1138 = vmatprep.subr.bf16.mxu0 0
    %1139 = vmatpush1.bf16.xpose.msra.mxu0 %v1134
    %1140 = vmatprep.subr.bf16.mxu0 0
    %1141 = vmatpush1.bf16.xpose.msra.mxu0 0
    %1142 = vmatprep.subr.bf16.mxu0 0
    %1143 = vmatpush1.bf16.xpose.msra.mxu0 0
    %1144 = vmatprep.subr.bf16.mxu0 0
    %1145 = vmatpush1.bf16.xpose.msra.mxu0 0
    %1146 = vmatprep.subr.bf16.mxu0 0
    %1147 = vmatpush1.bf16.xpose.msra.mxu0 0
    %1148 = vmatprep.subr.bf16.mxu0 0
    %1149 = vmatpush1.bf16.xpose.msra.mxu0 0
    %1150 = vmatprep.subr.bf16.mxu0 0
    %1151 = vmatpush1.bf16.xpose.msra.mxu0 0
    %1152 = vmatprep.subr.bf16.mxu0 0
    %1153 = vmatpush1.bf16.xpose.msra.mxu0 0
    %1154 = vmatprep.subr.bf16.mxu0 0
    %1155 = vmatpush1.bf16.xpose.msra.mxu0 0
    %1156 = vmatprep.subr.bf16.mxu0 0
    %1157 = vmatpush1.bf16.xpose.msra.mxu0 0
    %1158 = vmatprep.subr.bf16.mxu0 0
    %1159 = vmatpush1.bf16.xpose.msra.mxu0 0
    %1160 = vmatprep.subr.bf16.mxu0 0
    %1161 = vmatpush1.bf16.xpose.msra.mxu0 0
    %1162 = vmatprep.subr.bf16.mxu0 0
    %1163 = vmatpush1.bf16.xpose.msra.mxu0 0
    %1164 = vmatprep.subr.bf16.mxu0 0
    %1165 = vmatpush1.bf16.xpose.msra.mxu0 0
    %1166 = vmatprep.subr.bf16.mxu0 0
    %1167 = vmatpush1.bf16.xpose.msra.mxu0 0
    %1168 = vmatprep.mubr.bf16.mxu0 0
    %1169 = vmatmul.mubr.bf16.gmra.mrb[0].mxu0 %v1125
    %v1170 = vpop.f32.mrb[0].mxu0
    %v1171 = vadd.f32 0.0, %v1170
    %v1172 = vpop.f32.mrb[0].mxu0
    %v1173 = vpop.f32.mrb[0].mxu0
    %v1174 = vadd.f32 0.0, %v1173
    %v1175 = vpop.f32.mrb[0].mxu0
    %1176 = vmatprep.mubr.bf16.mxu0 0
    %1177 = vmatmul.mubr.bf16.gmra.mrb[0].mxu0 %v1128
    %v1178 = vpop.f32.mrb[0].mxu0
    %v1179 = vadd.f32 0.0, %v1178
    %v1180 = vpop.f32.mrb[0].mxu0
    %v1181 = vpop.f32.mrb[0].mxu0
    %v1182 = vpop.f32.mrb[0].mxu0
    %1183 = vdwg.mxu0
    %v1184 = vmul.f32 %v1171, 0.35355338
    %v1185 = vmul.f32 %v1174, 0.35355338
    %v1186 = vmul.f32 %v1179, 0.35355338
    %v1187 = vsel %vm428, %v1184, -inf
    %1188 = vmax.xlane.f32.xlu0 %v1187
    %v1189 = vpop.xlane.xlu0 %1188
    %v1190 = vsel %vm428, %v1185, -inf
    %1191 = vmax.xlane.f32.xlu0 %v1190
    %v1192 = vpop.xlane.xlu0 %1191
    %v1193 = vsel %vm435, %v1186, -inf
    %1194 = vmax.xlane.f32.xlu0 %v1193
    %v1195 = vpop.xlane.xlu0 %1194
    %v1196 = vsub.f32 %v1184, %v1189
    %v1197 = vsub.f32 %v1185, %v1192
    %v1198 = vsub.f32 %v1186, %v1195
    %v1199 = vmul.f32 %v1196, 1.442695
    %v1200 = vpow.pop %v1199
    %v1201 = vmul.f32 %v1197, 1.442695
    %v1202 = vpow.pop %v1201
    %v1203 = vmul.f32 %v1198, 1.442695
    %v1204 = vpow.pop %v1203
    %v1205 = vsel %vm428, %v1200, 0.0
    %1206 = vadd.xlane.f32.xlu0 %v1205
    %v1207 = vpop.xlane.xlu0 %1206
    %v1208 = vsel %vm428, %v1202, 0.0
    %1209 = vadd.xlane.f32.xlu0 %v1208
    %v1210 = vpop.xlane.xlu0 %1209
    %v1211 = vsel %vm435, %v1204, 0.0
    %1212 = vadd.xlane.f32.xlu0 %v1211
    %v1213 = vpop.xlane.xlu0 %1212
    %v1214 = vrcp.pop %v1207
    %v1215 = vmul.f32 %v1200, %v1214
    %v1216 = vrcp.pop %v1210
    %v1217 = vmul.f32 %v1202, %v1216
    %v1218 = vrcp.pop %v1213
    %v1219 = vmul.f32 %v1204, %v1218
    %s1220 = scalar_lea.vmem %s18, 96
    %1221 = vst.msk [vmem:[%s1220] sm:$0xff] %vm428, %v1215
    %1222 = vst.msk [vmem:[%s1220 + $0x8] sm:$0xff] %vm428, %v1217
    %1223 = vst.msk [vmem:[%s1220 + $0x10] sm:$0x1] %vm435, %v1219
    %v1224 = vpack.c.bf16 %v1217, %v1215
    %v1225 = vpack.c.bf16 %v1219, %v1219
    %1226 = vrot.lane.b32.xlu0 %v1117, 64
    %v1227 = vpop.permute.xlu0 %1226
    %1228 = vrot.lane.b32.xlu0 %v1118, 64
    %v1229 = vpop.permute.xlu0 %1228
    %v1232 = vsel %vm428, %v1224, 0
    %v1235 = vsel %vm428, %v1225, 0
    %v1238 = vand.u32 %v1229, %v480
    %1240 = vmatprep.subr.bf16.mxu0 0
    %1241 = vmatpush1.bf16.msra.mxu0 %v1227
    %1242 = vmatprep.subr.bf16.mxu0 0
    %1243 = vmatpush1.bf16.msra.mxu0 %v1238
    %1244 = vmatprep.subr.bf16.mxu0 0
    %1245 = vmatpush1.bf16.msra.mxu0 0
    %1246 = vmatprep.subr.bf16.mxu0 0
    %1247 = vmatpush1.bf16.msra.mxu0 0
    %1248 = vmatprep.subr.bf16.mxu0 0
    %1249 = vmatpush1.bf16.msra.mxu0 0
    %1250 = vmatprep.subr.bf16.mxu0 0
    %1251 = vmatpush1.bf16.msra.mxu0 0
    %1252 = vmatprep.subr.bf16.mxu0 0
    %1253 = vmatpush1.bf16.msra.mxu0 0
    %1254 = vmatprep.subr.bf16.mxu0 0
    %1255 = vmatpush1.bf16.msra.mxu0 0
    %1256 = vmatprep.subr.bf16.mxu0 0
    %1257 = vmatpush1.bf16.msra.mxu0 0
    %1258 = vmatprep.subr.bf16.mxu0 0
    %1259 = vmatpush1.bf16.msra.mxu0 0
    %1260 = vmatprep.subr.bf16.mxu0 0
    %1261 = vmatpush1.bf16.msra.mxu0 0
    %1262 = vmatprep.subr.bf16.mxu0 0
    %1263 = vmatpush1.bf16.msra.mxu0 0
    %1264 = vmatprep.subr.bf16.mxu0 0
    %1265 = vmatpush1.bf16.msra.mxu0 0
    %1266 = vmatprep.subr.bf16.mxu0 0
    %1267 = vmatpush1.bf16.msra.mxu0 0
    %1268 = vmatprep.subr.bf16.mxu0 0
    %1269 = vmatpush1.bf16.msra.mxu0 0
    %1270 = vmatprep.subr.bf16.mxu0 0
    %1271 = vmatpush1.bf16.msra.mxu0 0
    %1272 = vmatprep.mubr.bf16.mxu0 0
    %1273 = vmatmul.mubr.bf16.gmra.mrb[0].mxu0 %v1232
    %v1274 = vpop.f32.mrb[0].mxu0
    %v1275 = vadd.f32 0.0, %v1274
    %v1276 = vpop.f32.mrb[0].mxu0
    %v1277 = vpop.f32.mrb[0].mxu0
    %v1278 = vadd.f32 0.0, %v1277
    %v1279 = vpop.f32.mrb[0].mxu0
    %1280 = vmatprep.mubr.bf16.mxu0 0
    %1281 = vmatmul.mubr.bf16.gmra.mrb[0].mxu0 %v1235
    %v1282 = vpop.f32.mrb[0].mxu0
    %v1283 = vadd.f32 0.0, %v1282
    %v1284 = vpop.f32.mrb[0].mxu0
    %v1285 = vpop.f32.mrb[0].mxu0
    %v1286 = vpop.f32.mrb[0].mxu0
    %1287 = vdwg.mxu0
    %s1288 = scalar_lea.vmem [#allocation2], 24
    %1289 = vst.msk [vmem:[%s1288] sm:$0xff] %vm364, %v1275
    %1290 = vst.msk [vmem:[%s1288 + $0x8] sm:$0xff] %vm364, %v1278
    %1291 = vst.msk [vmem:[%s1288 + $0x10] sm:$0x1] %vm534, %v1283
    %1292 = vrot.lane.b32.xlu0 %v1117, 120
    %v1293 = vpop.permute.xlu0 %1292
    %1294 = vrot.lane.b32.xlu0 %v1118, 120
    %v1295 = vpop.permute.xlu0 %1294
    %1296 = vrot.lane.b32.xlu0 %v1117, 88
    %v1297 = vpop.permute.xlu0 %1296
    %1298 = vrot.lane.b32.xlu0 %v1118, 88
    %v1299 = vpop.permute.xlu0 %1298
    %v1301 = vsel %vm364, %v1293, 0
    %v1304 = vsel %vm364, %v1295, 0
    %v1307 = vsel %vm364, %v1297, 0
    %v1310 = vsel %vm364, %v1299, 0
    %1312 = vmatprep.subr.bf16.mxu0 0
    %1313 = vmatpush1.bf16.xpose.msra.mxu0 %v1307
    %1314 = vmatprep.subr.bf16.mxu0 0
    %1315 = vmatpush1.bf16.xpose.msra.mxu0 %v1310
    %1316 = vmatprep.subr.bf16.mxu0 0
    %1317 = vmatpush1.bf16.xpose.msra.mxu0 0
    %1318 = vmatprep.subr.bf16.mxu0 0
    %1319 = vmatpush1.bf16.xpose.msra.mxu0 0
    %1320 = vmatprep.subr.bf16.mxu0 0
    %1321 = vmatpush1.bf16.xpose.msra.mxu0 0
    %1322 = vmatprep.subr.bf16.mxu0 0
    %1323 = vmatpush1.bf16.xpose.msra.mxu0 0
    %1324 = vmatprep.subr.bf16.mxu0 0
    %1325 = vmatpush1.bf16.xpose.msra.mxu0 0
    %1326 = vmatprep.subr.bf16.mxu0 0
    %1327 = vmatpush1.bf16.xpose.msra.mxu0 0
    %1328 = vmatprep.subr.bf16.mxu0 0
    %1329 = vmatpush1.bf16.xpose.msra.mxu0 0
    %1330 = vmatprep.subr.bf16.mxu0 0
    %1331 = vmatpush1.bf16.xpose.msra.mxu0 0
    %1332 = vmatprep.subr.bf16.mxu0 0
    %1333 = vmatpush1.bf16.xpose.msra.mxu0 0
    %1334 = vmatprep.subr.bf16.mxu0 0
    %1335 = vmatpush1.bf16.xpose.msra.mxu0 0
    %1336 = vmatprep.subr.bf16.mxu0 0
    %1337 = vmatpush1.bf16.xpose.msra.mxu0 0
    %1338 = vmatprep.subr.bf16.mxu0 0
    %1339 = vmatpush1.bf16.xpose.msra.mxu0 0
    %1340 = vmatprep.subr.bf16.mxu0 0
    %1341 = vmatpush1.bf16.xpose.msra.mxu0 0
    %1342 = vmatprep.subr.bf16.mxu0 0
    %1343 = vmatpush1.bf16.xpose.msra.mxu0 0
    %1344 = vmatprep.mubr.bf16.mxu0 0
    %1345 = vmatmul.mubr.bf16.gmra.mrb[0].mxu0 %v1301
    %v1346 = vpop.f32.mrb[0].mxu0
    %v1347 = vadd.f32 0.0, %v1346
    %v1348 = vpop.f32.mrb[0].mxu0
    %v1349 = vpop.f32.mrb[0].mxu0
    %v1350 = vadd.f32 0.0, %v1349
    %v1351 = vpop.f32.mrb[0].mxu0
    %1352 = vmatprep.mubr.bf16.mxu0 0
    %1353 = vmatmul.mubr.bf16.gmra.mrb[0].mxu0 %v1304
    %v1354 = vpop.f32.mrb[0].mxu0
    %v1355 = vadd.f32 0.0, %v1354
    %v1356 = vpop.f32.mrb[0].mxu0
    %v1357 = vpop.f32.mrb[0].mxu0
    %v1358 = vpop.f32.mrb[0].mxu0
    %1359 = vdwg.mxu0
    %v1360 = vmul.f32 %v1347, 0.35355338
    %v1361 = vmul.f32 %v1350, 0.35355338
    %v1362 = vmul.f32 %v1355, 0.35355338
    %v1363 = vsel %vm428, %v1360, -inf
    %1364 = vmax.xlane.f32.xlu0 %v1363
    %v1365 = vpop.xlane.xlu0 %1364
    %v1366 = vsel %vm428, %v1361, -inf
    %1367 = vmax.xlane.f32.xlu0 %v1366
    %v1368 = vpop.xlane.xlu0 %1367
    %v1369 = vsel %vm435, %v1362, -inf
    %1370 = vmax.xlane.f32.xlu0 %v1369
    %v1371 = vpop.xlane.xlu0 %1370
    %v1372 = vsub.f32 %v1360, %v1365
    %v1373 = vsub.f32 %v1361, %v1368
    %v1374 = vsub.f32 %v1362, %v1371
    %v1375 = vmul.f32 %v1372, 1.442695
    %v1376 = vpow.pop %v1375
    %v1377 = vmul.f32 %v1373, 1.442695
    %v1378 = vpow.pop %v1377
    %v1379 = vmul.f32 %v1374, 1.442695
    %v1380 = vpow.pop %v1379
    %v1381 = vsel %vm428, %v1376, 0.0
    %1382 = vadd.xlane.f32.xlu0 %v1381
    %v1383 = vpop.xlane.xlu0 %1382
    %v1384 = vsel %vm428, %v1378, 0.0
    %1385 = vadd.xlane.f32.xlu0 %v1384
    %v1386 = vpop.xlane.xlu0 %1385
    %v1387 = vsel %vm435, %v1380, 0.0
    %1388 = vadd.xlane.f32.xlu0 %v1387
    %v1389 = vpop.xlane.xlu0 %1388
    %v1390 = vrcp.pop %v1383
    %v1391 = vmul.f32 %v1376, %v1390
    %v1392 = vrcp.pop %v1386
    %v1393 = vmul.f32 %v1378, %v1392
    %v1394 = vrcp.pop %v1389
    %v1395 = vmul.f32 %v1380, %v1394
    %s1396 = scalar_lea.vmem %s18, 120
    %1397 = vst.msk [vmem:[%s1396] sm:$0xff] %vm428, %v1391
    %1398 = vst.msk [vmem:[%s1396 + $0x8] sm:$0xff] %vm428, %v1393
    %1399 = vst.msk [vmem:[%s1396 + $0x10] sm:$0x1] %vm435, %v1395
    %v1400 = vpack.c.bf16 %v1393, %v1391
    %v1401 = vpack.c.bf16 %v1395, %v1395
    %1402 = vrot.lane.b32.xlu0 %v1117, 56
    %v1403 = vpop.permute.xlu0 %1402
    %1404 = vrot.lane.b32.xlu0 %v1118, 56
    %v1405 = vpop.permute.xlu0 %1404
    %v1408 = vsel %vm428, %v1400, 0
    %v1411 = vsel %vm428, %v1401, 0
    %v1414 = vand.u32 %v1405, %v480
    %1416 = vmatprep.subr.bf16.mxu0 0
    %1417 = vmatpush1.bf16.msra.mxu0 %v1403
    %1418 = vmatprep.subr.bf16.mxu0 0
    %1419 = vmatpush1.bf16.msra.mxu0 %v1414
    %1420 = vmatprep.subr.bf16.mxu0 0
    %1421 = vmatpush1.bf16.msra.mxu0 0
    %1422 = vmatprep.subr.bf16.mxu0 0
    %1423 = vmatpush1.bf16.msra.mxu0 0
    %1424 = vmatprep.subr.bf16.mxu0 0
    %1425 = vmatpush1.bf16.msra.mxu0 0
    %1426 = vmatprep.subr.bf16.mxu0 0
    %1427 = vmatpush1.bf16.msra.mxu0 0
    %1428 = vmatprep.subr.bf16.mxu0 0
    %1429 = vmatpush1.bf16.msra.mxu0 0
    %1430 = vmatprep.subr.bf16.mxu0 0
    %1431 = vmatpush1.bf16.msra.mxu0 0
    %1432 = vmatprep.subr.bf16.mxu0 0
    %1433 = vmatpush1.bf16.msra.mxu0 0
    %1434 = vmatprep.subr.bf16.mxu0 0
    %1435 = vmatpush1.bf16.msra.mxu0 0
    %1436 = vmatprep.subr.bf16.mxu0 0
    %1437 = vmatpush1.bf16.msra.mxu0 0
    %1438 = vmatprep.subr.bf16.mxu0 0
    %1439 = vmatpush1.bf16.msra.mxu0 0
    %1440 = vmatprep.subr.bf16.mxu0 0
    %1441 = vmatpush1.bf16.msra.mxu0 0
    %1442 = vmatprep.subr.bf16.mxu0 0
    %1443 = vmatpush1.bf16.msra.mxu0 0
    %1444 = vmatprep.subr.bf16.mxu0 0
    %1445 = vmatpush1.bf16.msra.mxu0 0
    %1446 = vmatprep.subr.bf16.mxu0 0
    %1447 = vmatpush1.bf16.msra.mxu0 0
    %1448 = vmatprep.mubr.bf16.mxu0 0
    %1449 = vmatmul.mubr.bf16.gmra.mrb[0].mxu0 %v1408
    %v1450 = vpop.f32.mrb[0].mxu0
    %v1451 = vadd.f32 0.0, %v1450
    %v1452 = vpop.f32.mrb[0].mxu0
    %v1453 = vpop.f32.mrb[0].mxu0
    %v1454 = vadd.f32 0.0, %v1453
    %v1455 = vpop.f32.mrb[0].mxu0
    %1456 = vmatprep.mubr.bf16.mxu0 0
    %1457 = vmatmul.mubr.bf16.gmra.mrb[0].mxu0 %v1411
    %v1458 = vpop.f32.mrb[0].mxu0
    %v1459 = vadd.f32 0.0, %v1458
    %v1460 = vpop.f32.mrb[0].mxu0
    %v1461 = vpop.f32.mrb[0].mxu0
    %v1462 = vpop.f32.mrb[0].mxu0
    %1463 = vdwg.mxu0
    %1467 = vrot.lane.b32.xlu0 %v1451, 8
    %v1468 = vpop.permute.xlu0 %1467
    %1469 = vrot.lane.b32.xlu0 %v1454, 8
    %v1470 = vpop.permute.xlu0 %1469
    %1471 = vrot.lane.b32.xlu0 %v1459, 8
    %v1472 = vpop.permute.xlu0 %1471
    %1476 = vst.msk [vmem:[%s1288] sm:$0xff] %vm720, %v1468
    %1477 = vst.msk [vmem:[%s1288 + $0x8] sm:$0xff] %vm720, %v1470
    %1478 = vst.msk [vmem:[%s1288 + $0x10] sm:$0x1] %vm723, %v1472
    %1479 = vrot.lane.b32.xlu0 %v1117, 112
    %v1480 = vpop.permute.xlu0 %1479
    %1481 = vrot.lane.b32.xlu0 %v1118, 112
    %v1482 = vpop.permute.xlu0 %1481
    %1483 = vrot.lane.b32.xlu0 %v1117, 80
    %v1484 = vpop.permute.xlu0 %1483
    %1485 = vrot.lane.b32.xlu0 %v1118, 80
    %v1486 = vpop.permute.xlu0 %1485
    %v1488 = vsel %vm364, %v1480, 0
    %v1491 = vsel %vm364, %v1482, 0
    %v1494 = vsel %vm364, %v1484, 0
    %v1497 = vsel %vm364, %v1486, 0
    %1499 = vmatprep.subr.bf16.mxu0 0
    %1500 = vmatpush1.bf16.xpose.msra.mxu0 %v1494
    %1501 = vmatprep.subr.bf16.mxu0 0
    %1502 = vmatpush1.bf16.xpose.msra.mxu0 %v1497
    %1503 = vmatprep.subr.bf16.mxu0 0
    %1504 = vmatpush1.bf16.xpose.msra.mxu0 0
    %1505 = vmatprep.subr.bf16.mxu0 0
    %1506 = vmatpush1.bf16.xpose.msra.mxu0 0
    %1507 = vmatprep.subr.bf16.mxu0 0
    %1508 = vmatpush1.bf16.xpose.msra.mxu0 0
    %1509 = vmatprep.subr.bf16.mxu0 0
    %1510 = vmatpush1.bf16.xpose.msra.mxu0 0
    %1511 = vmatprep.subr.bf16.mxu0 0
    %1512 = vmatpush1.bf16.xpose.msra.mxu0 0
    %1513 = vmatprep.subr.bf16.mxu0 0
    %1514 = vmatpush1.bf16.xpose.msra.mxu0 0
    %1515 = vmatprep.subr.bf16.mxu0 0
    %1516 = vmatpush1.bf16.xpose.msra.mxu0 0
    %1517 = vmatprep.subr.bf16.mxu0 0
    %1518 = vmatpush1.bf16.xpose.msra.mxu0 0
    %1519 = vmatprep.subr.bf16.mxu0 0
    %1520 = vmatpush1.bf16.xpose.msra.mxu0 0
    %1521 = vmatprep.subr.bf16.mxu0 0
    %1522 = vmatpush1.bf16.xpose.msra.mxu0 0
    %1523 = vmatprep.subr.bf16.mxu0 0
    %1524 = vmatpush1.bf16.xpose.msra.mxu0 0
    %1525 = vmatprep.subr.bf16.mxu0 0
    %1526 = vmatpush1.bf16.xpose.msra.mxu0 0
    %1527 = vmatprep.subr.bf16.mxu0 0
    %1528 = vmatpush1.bf16.xpose.msra.mxu0 0
    %1529 = vmatprep.subr.bf16.mxu0 0
    %1530 = vmatpush1.bf16.xpose.msra.mxu0 0
    %1531 = vmatprep.mubr.bf16.mxu0 0
    %1532 = vmatmul.mubr.bf16.gmra.mrb[0].mxu0 %v1488
    %v1533 = vpop.f32.mrb[0].mxu0
    %v1534 = vadd.f32 0.0, %v1533
    %v1535 = vpop.f32.mrb[0].mxu0
    %v1536 = vpop.f32.mrb[0].mxu0
    %v1537 = vadd.f32 0.0, %v1536
    %v1538 = vpop.f32.mrb[0].mxu0
    %1539 = vmatprep.mubr.bf16.mxu0 0
    %1540 = vmatmul.mubr.bf16.gmra.mrb[0].mxu0 %v1491
    %v1541 = vpop.f32.mrb[0].mxu0
    %v1542 = vadd.f32 0.0, %v1541
    %v1543 = vpop.f32.mrb[0].mxu0
    %v1544 = vpop.f32.mrb[0].mxu0
    %v1545 = vpop.f32.mrb[0].mxu0
    %1546 = vdwg.mxu0
    %v1547 = vmul.f32 %v1534, 0.35355338
    %v1548 = vmul.f32 %v1537, 0.35355338
    %v1549 = vmul.f32 %v1542, 0.35355338
    %v1550 = vsel %vm428, %v1547, -inf
    %1551 = vmax.xlane.f32.xlu0 %v1550
    %v1552 = vpop.xlane.xlu0 %1551
    %v1553 = vsel %vm428, %v1548, -inf
    %1554 = vmax.xlane.f32.xlu0 %v1553
    %v1555 = vpop.xlane.xlu0 %1554
    %v1556 = vsel %vm435, %v1549, -inf
    %1557 = vmax.xlane.f32.xlu0 %v1556
    %v1558 = vpop.xlane.xlu0 %1557
    %v1559 = vsub.f32 %v1547, %v1552
    %v1560 = vsub.f32 %v1548, %v1555
    %v1561 = vsub.f32 %v1549, %v1558
    %v1562 = vmul.f32 %v1559, 1.442695
    %v1563 = vpow.pop %v1562
    %v1564 = vmul.f32 %v1560, 1.442695
    %v1565 = vpow.pop %v1564
    %v1566 = vmul.f32 %v1561, 1.442695
    %v1567 = vpow.pop %v1566
    %v1568 = vsel %vm428, %v1563, 0.0
    %1569 = vadd.xlane.f32.xlu0 %v1568
    %v1570 = vpop.xlane.xlu0 %1569
    %v1571 = vsel %vm428, %v1565, 0.0
    %1572 = vadd.xlane.f32.xlu0 %v1571
    %v1573 = vpop.xlane.xlu0 %1572
    %v1574 = vsel %vm435, %v1567, 0.0
    %1575 = vadd.xlane.f32.xlu0 %v1574
    %v1576 = vpop.xlane.xlu0 %1575
    %v1577 = vrcp.pop %v1570
    %v1578 = vmul.f32 %v1563, %v1577
    %v1579 = vrcp.pop %v1573
    %v1580 = vmul.f32 %v1565, %v1579
    %v1581 = vrcp.pop %v1576
    %v1582 = vmul.f32 %v1567, %v1581
    %s1583 = scalar_lea.vmem %s18, 144
    %1584 = vst.msk [vmem:[%s1583] sm:$0xff] %vm428, %v1578
    %1585 = vst.msk [vmem:[%s1583 + $0x8] sm:$0xff] %vm428, %v1580
    %1586 = vst.msk [vmem:[%s1583 + $0x10] sm:$0x1] %vm435, %v1582
    %v1587 = vpack.c.bf16 %v1580, %v1578
    %v1588 = vpack.c.bf16 %v1582, %v1582
    %1589 = vrot.lane.b32.xlu0 %v1117, 48
    %v1590 = vpop.permute.xlu0 %1589
    %1591 = vrot.lane.b32.xlu0 %v1118, 48
    %v1592 = vpop.permute.xlu0 %1591
    %v1595 = vsel %vm428, %v1587, 0
    %v1598 = vsel %vm428, %v1588, 0
    %v1601 = vand.u32 %v1592, %v480
    %1603 = vmatprep.subr.bf16.mxu0 0
    %1604 = vmatpush1.bf16.msra.mxu0 %v1590
    %1605 = vmatprep.subr.bf16.mxu0 0
    %1606 = vmatpush1.bf16.msra.mxu0 %v1601
    %1607 = vmatprep.subr.bf16.mxu0 0
    %1608 = vmatpush1.bf16.msra.mxu0 0
    %1609 = vmatprep.subr.bf16.mxu0 0
    %1610 = vmatpush1.bf16.msra.mxu0 0
    %1611 = vmatprep.subr.bf16.mxu0 0
    %1612 = vmatpush1.bf16.msra.mxu0 0
    %1613 = vmatprep.subr.bf16.mxu0 0
    %1614 = vmatpush1.bf16.msra.mxu0 0
    %1615 = vmatprep.subr.bf16.mxu0 0
    %1616 = vmatpush1.bf16.msra.mxu0 0
    %1617 = vmatprep.subr.bf16.mxu0 0
    %1618 = vmatpush1.bf16.msra.mxu0 0
    %1619 = vmatprep.subr.bf16.mxu0 0
    %1620 = vmatpush1.bf16.msra.mxu0 0
    %1621 = vmatprep.subr.bf16.mxu0 0
    %1622 = vmatpush1.bf16.msra.mxu0 0
    %1623 = vmatprep.subr.bf16.mxu0 0
    %1624 = vmatpush1.bf16.msra.mxu0 0
    %1625 = vmatprep.subr.bf16.mxu0 0
    %1626 = vmatpush1.bf16.msra.mxu0 0
    %1627 = vmatprep.subr.bf16.mxu0 0
    %1628 = vmatpush1.bf16.msra.mxu0 0
    %1629 = vmatprep.subr.bf16.mxu0 0
    %1630 = vmatpush1.bf16.msra.mxu0 0
    %1631 = vmatprep.subr.bf16.mxu0 0
    %1632 = vmatpush1.bf16.msra.mxu0 0
    %1633 = vmatprep.subr.bf16.mxu0 0
    %1634 = vmatpush1.bf16.msra.mxu0 0
    %1635 = vmatprep.mubr.bf16.mxu0 0
    %1636 = vmatmul.mubr.bf16.gmra.mrb[0].mxu0 %v1595
    %v1637 = vpop.f32.mrb[0].mxu0
    %v1638 = vadd.f32 0.0, %v1637
    %v1639 = vpop.f32.mrb[0].mxu0
    %v1640 = vpop.f32.mrb[0].mxu0
    %v1641 = vadd.f32 0.0, %v1640
    %v1642 = vpop.f32.mrb[0].mxu0
    %1643 = vmatprep.mubr.bf16.mxu0 0
    %1644 = vmatmul.mubr.bf16.gmra.mrb[0].mxu0 %v1598
    %v1645 = vpop.f32.mrb[0].mxu0
    %v1646 = vadd.f32 0.0, %v1645
    %v1647 = vpop.f32.mrb[0].mxu0
    %v1648 = vpop.f32.mrb[0].mxu0
    %v1649 = vpop.f32.mrb[0].mxu0
    %1650 = vdwg.mxu0
    %1654 = vrot.lane.b32.xlu0 %v1638, 16
    %v1655 = vpop.permute.xlu0 %1654
    %1656 = vrot.lane.b32.xlu0 %v1641, 16
    %v1657 = vpop.permute.xlu0 %1656
    %1658 = vrot.lane.b32.xlu0 %v1646, 16
    %v1659 = vpop.permute.xlu0 %1658
    %1663 = vst.msk [vmem:[%s1288] sm:$0xff] %vm909, %v1655
    %1664 = vst.msk [vmem:[%s1288 + $0x8] sm:$0xff] %vm909, %v1657
    %1665 = vst.msk [vmem:[%s1288 + $0x10] sm:$0x1] %vm912, %v1659
    %1666 = vrot.lane.b32.xlu0 %v1117, 104
    %v1667 = vpop.permute.xlu0 %1666
    %1668 = vrot.lane.b32.xlu0 %v1118, 104
    %v1669 = vpop.permute.xlu0 %1668
    %1670 = vrot.lane.b32.xlu0 %v1117, 72
    %v1671 = vpop.permute.xlu0 %1670
    %1672 = vrot.lane.b32.xlu0 %v1118, 72
    %v1673 = vpop.permute.xlu0 %1672
    %v1675 = vsel %vm364, %v1667, 0
    %v1678 = vsel %vm364, %v1669, 0
    %v1681 = vsel %vm364, %v1671, 0
    %v1684 = vsel %vm364, %v1673, 0
    %1686 = vmatprep.subr.bf16.mxu0 0
    %1687 = vmatpush1.bf16.xpose.msra.mxu0 %v1681
    %1688 = vmatprep.subr.bf16.mxu0 0
    %1689 = vmatpush1.bf16.xpose.msra.mxu0 %v1684
    %1690 = vmatprep.subr.bf16.mxu0 0
    %1691 = vmatpush1.bf16.xpose.msra.mxu0 0
    %1692 = vmatprep.subr.bf16.mxu0 0
    %1693 = vmatpush1.bf16.xpose.msra.mxu0 0
    %1694 = vmatprep.subr.bf16.mxu0 0
    %1695 = vmatpush1.bf16.xpose.msra.mxu0 0
    %1696 = vmatprep.subr.bf16.mxu0 0
    %1697 = vmatpush1.bf16.xpose.msra.mxu0 0
    %1698 = vmatprep.subr.bf16.mxu0 0
    %1699 = vmatpush1.bf16.xpose.msra.mxu0 0
    %1700 = vmatprep.subr.bf16.mxu0 0
    %1701 = vmatpush1.bf16.xpose.msra.mxu0 0
    %1702 = vmatprep.subr.bf16.mxu0 0
    %1703 = vmatpush1.bf16.xpose.msra.mxu0 0
    %1704 = vmatprep.subr.bf16.mxu0 0
    %1705 = vmatpush1.bf16.xpose.msra.mxu0 0
    %1706 = vmatprep.subr.bf16.mxu0 0
    %1707 = vmatpush1.bf16.xpose.msra.mxu0 0
    %1708 = vmatprep.subr.bf16.mxu0 0
    %1709 = vmatpush1.bf16.xpose.msra.mxu0 0
    %1710 = vmatprep.subr.bf16.mxu0 0
    %1711 = vmatpush1.bf16.xpose.msra.mxu0 0
    %1712 = vmatprep.subr.bf16.mxu0 0
    %1713 = vmatpush1.bf16.xpose.msra.mxu0 0
    %1714 = vmatprep.subr.bf16.mxu0 0
    %1715 = vmatpush1.bf16.xpose.msra.mxu0 0
    %1716 = vmatprep.subr.bf16.mxu0 0
    %1717 = vmatpush1.bf16.xpose.msra.mxu0 0
    %1718 = vmatprep.mubr.bf16.mxu0 0
    %1719 = vmatmul.mubr.bf16.gmra.mrb[0].mxu0 %v1675
    %v1720 = vpop.f32.mrb[0].mxu0
    %v1721 = vadd.f32 0.0, %v1720
    %v1722 = vpop.f32.mrb[0].mxu0
    %v1723 = vpop.f32.mrb[0].mxu0
    %v1724 = vadd.f32 0.0, %v1723
    %v1725 = vpop.f32.mrb[0].mxu0
    %1726 = vmatprep.mubr.bf16.mxu0 0
    %1727 = vmatmul.mubr.bf16.gmra.mrb[0].mxu0 %v1678
    %v1728 = vpop.f32.mrb[0].mxu0
    %v1729 = vadd.f32 0.0, %v1728
    %v1730 = vpop.f32.mrb[0].mxu0
    %v1731 = vpop.f32.mrb[0].mxu0
    %v1732 = vpop.f32.mrb[0].mxu0
    %1733 = vdwg.mxu0
    %v1734 = vmul.f32 %v1721, 0.35355338
    %v1735 = vmul.f32 %v1724, 0.35355338
    %v1736 = vmul.f32 %v1729, 0.35355338
    %v1737 = vsel %vm428, %v1734, -inf
    %1738 = vmax.xlane.f32.xlu0 %v1737
    %v1739 = vpop.xlane.xlu0 %1738
    %v1740 = vsel %vm428, %v1735, -inf
    %1741 = vmax.xlane.f32.xlu0 %v1740
    %v1742 = vpop.xlane.xlu0 %1741
    %v1743 = vsel %vm435, %v1736, -inf
    %1744 = vmax.xlane.f32.xlu0 %v1743
    %v1745 = vpop.xlane.xlu0 %1744
    %v1746 = vsub.f32 %v1734, %v1739
    %v1747 = vsub.f32 %v1735, %v1742
    %v1748 = vsub.f32 %v1736, %v1745
    %v1749 = vmul.f32 %v1746, 1.442695
    %v1750 = vpow.pop %v1749
    %v1751 = vmul.f32 %v1747, 1.442695
    %v1752 = vpow.pop %v1751
    %v1753 = vmul.f32 %v1748, 1.442695
    %v1754 = vpow.pop %v1753
    %v1755 = vsel %vm428, %v1750, 0.0
    %1756 = vadd.xlane.f32.xlu0 %v1755
    %v1757 = vpop.xlane.xlu0 %1756
    %v1758 = vsel %vm428, %v1752, 0.0
    %1759 = vadd.xlane.f32.xlu0 %v1758
    %v1760 = vpop.xlane.xlu0 %1759
    %v1761 = vsel %vm435, %v1754, 0.0
    %1762 = vadd.xlane.f32.xlu0 %v1761
    %v1763 = vpop.xlane.xlu0 %1762
    %v1764 = vrcp.pop %v1757
    %v1765 = vmul.f32 %v1750, %v1764
    %v1766 = vrcp.pop %v1760
    %v1767 = vmul.f32 %v1752, %v1766
    %v1768 = vrcp.pop %v1763
    %v1769 = vmul.f32 %v1754, %v1768
    %s1770 = scalar_lea.vmem %s18, 168
    %1771 = vst.msk [vmem:[%s1770] sm:$0xff] %vm428, %v1765
    %1772 = vst.msk [vmem:[%s1770 + $0x8] sm:$0xff] %vm428, %v1767
    %1773 = vst.msk [vmem:[%s1770 + $0x10] sm:$0x1] %vm435, %v1769
    %v1774 = vpack.c.bf16 %v1767, %v1765
    %v1775 = vpack.c.bf16 %v1769, %v1769
    %1776 = vrot.lane.b32.xlu0 %v1117, 40
    %v1777 = vpop.permute.xlu0 %1776
    %1778 = vrot.lane.b32.xlu0 %v1118, 40
    %v1779 = vpop.permute.xlu0 %1778
    %v1782 = vsel %vm428, %v1774, 0
    %v1785 = vsel %vm428, %v1775, 0
    %v1788 = vand.u32 %v1779, %v480
    %1790 = vmatprep.subr.bf16.mxu0 0
    %1791 = vmatpush1.bf16.msra.mxu0 %v1777
    %1792 = vmatprep.subr.bf16.mxu0 0
    %1793 = vmatpush1.bf16.msra.mxu0 %v1788
    %1794 = vmatprep.subr.bf16.mxu0 0
    %1795 = vmatpush1.bf16.msra.mxu0 0
    %1796 = vmatprep.subr.bf16.mxu0 0
    %1797 = vmatpush1.bf16.msra.mxu0 0
    %1798 = vmatprep.subr.bf16.mxu0 0
    %1799 = vmatpush1.bf16.msra.mxu0 0
    %1800 = vmatprep.subr.bf16.mxu0 0
    %1801 = vmatpush1.bf16.msra.mxu0 0
    %1802 = vmatprep.subr.bf16.mxu0 0
    %1803 = vmatpush1.bf16.msra.mxu0 0
    %1804 = vmatprep.subr.bf16.mxu0 0
    %1805 = vmatpush1.bf16.msra.mxu0 0
    %1806 = vmatprep.subr.bf16.mxu0 0
    %1807 = vmatpush1.bf16.msra.mxu0 0
    %1808 = vmatprep.subr.bf16.mxu0 0
    %1809 = vmatpush1.bf16.msra.mxu0 0
    %1810 = vmatprep.subr.bf16.mxu0 0
    %1811 = vmatpush1.bf16.msra.mxu0 0
    %1812 = vmatprep.subr.bf16.mxu0 0
    %1813 = vmatpush1.bf16.msra.mxu0 0
    %1814 = vmatprep.subr.bf16.mxu0 0
    %1815 = vmatpush1.bf16.msra.mxu0 0
    %1816 = vmatprep.subr.bf16.mxu0 0
    %1817 = vmatpush1.bf16.msra.mxu0 0
    %1818 = vmatprep.subr.bf16.mxu0 0
    %1819 = vmatpush1.bf16.msra.mxu0 0
    %1820 = vmatprep.subr.bf16.mxu0 0
    %1821 = vmatpush1.bf16.msra.mxu0 0
    %1822 = vmatprep.mubr.bf16.mxu0 0
    %1823 = vmatmul.mubr.bf16.gmra.mrb[0].mxu0 %v1782
    %v1824 = vpop.f32.mrb[0].mxu0
    %v1825 = vadd.f32 0.0, %v1824
    %v1826 = vpop.f32.mrb[0].mxu0
    %v1827 = vpop.f32.mrb[0].mxu0
    %v1828 = vadd.f32 0.0, %v1827
    %v1829 = vpop.f32.mrb[0].mxu0
    %1830 = vmatprep.mubr.bf16.mxu0 0
    %1831 = vmatmul.mubr.bf16.gmra.mrb[0].mxu0 %v1785
    %v1832 = vpop.f32.mrb[0].mxu0
    %v1833 = vadd.f32 0.0, %v1832
    %v1834 = vpop.f32.mrb[0].mxu0
    %v1835 = vpop.f32.mrb[0].mxu0
    %v1836 = vpop.f32.mrb[0].mxu0
    %1837 = vdwg.mxu0
    %1841 = vrot.lane.b32.xlu0 %v1825, 24
    %v1842 = vpop.permute.xlu0 %1841
    %1843 = vrot.lane.b32.xlu0 %v1828, 24
    %v1844 = vpop.permute.xlu0 %1843
    %1845 = vrot.lane.b32.xlu0 %v1833, 24
    %v1846 = vpop.permute.xlu0 %1845
    %1850 = vst.msk [vmem:[%s1288] sm:$0xff] %vm1098, %v1842
    %1851 = vst.msk [vmem:[%s1288 + $0x8] sm:$0xff] %vm1098, %v1844
    %1852 = vst.msk [vmem:[%s1288 + $0x10] sm:$0x1] %vm1101, %v1846
    %v1853 = vld [vmem:[#allocation2] sm:$0xff]
    %v1854 = vld [vmem:[#allocation2 + $0x8] sm:$0xff]
    %v1855 = vld [vmem:[#allocation2 + $0x10] sm:$0x1]
    %v1856 = vld [vmem:[%s1288] sm:$0xff]
    %v1857 = vld [vmem:[%s1288 + $0x8] sm:$0xff]
    %v1858 = vld [vmem:[%s1288 + $0x10] sm:$0x1]
    %v1862 = vrot.slane %v1856, 7
    %v1863 = vrot.slane %v1857, 7
    %v1864 = vsel %vm163, %v1862, %v1863
    %v1865 = vrot.slane %v1858, 7
    %v1866 = vsel %vm163, %v1863, %v1865
    %v1870 = vsel %vm163, %v1855, %v1862
    %v1871 = vld [vmem:[%s8] sm:$0xff]
    %v1872 = vld [vmem:[%s8 + $0x8] sm:$0xff]
    %v1873 = vld [vmem:[%s8 + $0x10] sm:$0xff]
    %v1874 = vld [vmem:[%s8 + $0x18] sm:$0xff]
    %v1875 = vpack.c.bf16 %v1854, %v1853
    %v1876 = vpack.c.bf16 %v1864, %v1870
    %v1877 = vpack.c.bf16 %v1866, %v1866
    %v1878 = vpack.c.bf16 %v1872, %v1871
    %v1879 = vpack.c.bf16 %v1874, %v1873
    %v1881 = vsel %vm189, %v1875, 0
    %v1884 = vsel %vm189, %v1876, 0
    %v1887 = vsel %vm189, %v1877, 0
    %1889 = vmatprep.subr.bf16.mxu0 0
    %1890 = vmatpush1.bf16.msra.mxu0 %v1878
    %1891 = vmatprep.subr.bf16.mxu0 0
    %1892 = vmatpush1.bf16.msra.mxu0 %v1879
    %1893 = vmatprep.subr.bf16.mxu0 0
    %1894 = vmatpush1.bf16.msra.mxu0 0
    %1895 = vmatprep.subr.bf16.mxu0 0
    %1896 = vmatpush1.bf16.msra.mxu0 0
    %1897 = vmatprep.subr.bf16.mxu0 0
    %1898 = vmatpush1.bf16.msra.mxu0 0
    %1899 = vmatprep.subr.bf16.mxu0 0
    %1900 = vmatpush1.bf16.msra.mxu0 0
    %1901 = vmatprep.subr.bf16.mxu0 0
    %1902 = vmatpush1.bf16.msra.mxu0 0
    %1903 = vmatprep.subr.bf16.mxu0 0
    %1904 = vmatpush1.bf16.msra.mxu0 0
    %1905 = vmatprep.subr.bf16.mxu0 0
    %1906 = vmatpush1.bf16.msra.mxu0 0
    %1907 = vmatprep.subr.bf16.mxu0 0
    %1908 = vmatpush1.bf16.msra.mxu0 0
    %1909 = vmatprep.subr.bf16.mxu0 0
    %1910 = vmatpush1.bf16.msra.mxu0 0
    %1911 = vmatprep.subr.bf16.mxu0 0
    %1912 = vmatpush1.bf16.msra.mxu0 0
    %1913 = vmatprep.subr.bf16.mxu0 0
    %1914 = vmatpush1.bf16.msra.mxu0 0
    %1915 = vmatprep.subr.bf16.mxu0 0
    %1916 = vmatpush1.bf16.msra.mxu0 0
    %1917 = vmatprep.subr.bf16.mxu0 0
    %1918 = vmatpush1.bf16.msra.mxu0 0
    %1919 = vmatprep.subr.bf16.mxu0 0
    %1920 = vmatpush1.bf16.msra.mxu0 0
    %1921 = vmatprep.mubr.bf16.mxu0 0
    %1922 = vmatmul.mubr.bf16.gmra.mrb[0].mxu0 %v1881
    %v1923 = vpop.f32.mrb[0].mxu0
    %v1924 = vadd.f32 0.0, %v1923
    %v1925 = vpop.f32.mrb[0].mxu0
    %v1926 = vpop.f32.mrb[0].mxu0
    %v1927 = vadd.f32 0.0, %v1926
    %v1928 = vpop.f32.mrb[0].mxu0
    %1929 = vmatprep.mubr.bf16.mxu0 0
    %1930 = vmatmul.mubr.bf16.gmra.mrb[0].mxu0 %v1884
    %v1931 = vpop.f32.mrb[0].mxu0
    %v1932 = vadd.f32 0.0, %v1931
    %v1933 = vpop.f32.mrb[0].mxu0
    %v1934 = vpop.f32.mrb[0].mxu0
    %v1935 = vadd.f32 0.0, %v1934
    %v1936 = vpop.f32.mrb[0].mxu0
    %1937 = vmatprep.mubr.bf16.mxu0 0
    %1938 = vmatmul.mubr.bf16.gmra.mrb[0].mxu0 %v1887
    %v1939 = vpop.f32.mrb[0].mxu0
    %v1940 = vadd.f32 0.0, %v1939
    %v1941 = vpop.f32.mrb[0].mxu0
    %v1942 = vpop.f32.mrb[0].mxu0
    %v1943 = vpop.f32.mrb[0].mxu0
    %1944 = vdwg.mxu0
    %v1945 = vadd.f32 %v185, %v1924
    %v1946 = vadd.f32 %v166, %v1927
    %v1947 = vadd.f32 %v187, %v1932
    %v1948 = vadd.f32 %v181, %v1935
    %v1949 = vadd.f32 %v180, %v1940
    %v1950 = vld [vmem:[%s9] sm:$0x1]
    %v1952 = vlaneseq
    %v1953 = vshrl.u32 %v1952, 7
    %v1954 = vsub.s32 0, %v1953
    %v1955 = vrot.slane %v1950, %v1954
    %v1957 = vadd.f32 %v1945, %v1955
    %v1958 = vadd.f32 %v1946, %v1955
    %v1959 = vadd.f32 %v1947, %v1955
    %v1960 = vadd.f32 %v1948, %v1955
    %v1961 = vadd.f32 %v1949, %v1955
    %v1962 = vsel %vm189, %v1957, 0.0
    %1963 = vadd.xlane.f32.xlu0 %v1962
    %v1964 = vpop.xlane.xlu0 %1963
    %v1965 = vsel %vm189, %v1958, 0.0
    %1966 = vadd.xlane.f32.xlu0 %v1965
    %v1967 = vpop.xlane.xlu0 %1966
    %v1968 = vsel %vm189, %v1959, 0.0
    %1969 = vadd.xlane.f32.xlu0 %v1968
    %v1970 = vpop.xlane.xlu0 %1969
    %v1971 = vsel %vm189, %v1960, 0.0
    %1972 = vadd.xlane.f32.xlu0 %v1971
    %v1973 = vpop.xlane.xlu0 %1972
    %v1974 = vsel %vm202, %v1961, 0.0
    %1975 = vadd.xlane.f32.xlu0 %v1974
    %v1976 = vpop.xlane.xlu0 %1975
    %v1977 = vmul.f32 %v1964, %v206
    %v1978 = vmul.f32 %v1967, %v206
    %v1979 = vmul.f32 %v1970, %v206
    %v1980 = vmul.f32 %v1973, %v206
    %v1981 = vmul.f32 %v1976, %v206
    %v1982 = vsub.f32 %v1957, %v1977
    %v1983 = vsub.f32 %v1958, %v1978
    %v1984 = vsub.f32 %v1959, %v1979
    %v1985 = vsub.f32 %v1960, %v1980
    %v1986 = vsub.f32 %v1961, %v1981
    %v1987 = vmul.f32 %v1982, %v1982
    %v1988 = vmul.f32 %v1983, %v1983
    %v1989 = vmul.f32 %v1984, %v1984
    %v1990 = vmul.f32 %v1985, %v1985
    %v1991 = vmul.f32 %v1986, %v1986
    %v1992 = vsel %vm189, %v1987, 0.0
    %1993 = vadd.xlane.f32.xlu0 %v1992
    %v1994 = vpop.xlane.xlu0 %1993
    %v1995 = vsel %vm189, %v1988, 0.0
    %1996 = vadd.xlane.f32.xlu0 %v1995
    %v1997 = vpop.xlane.xlu0 %1996
    %v1998 = vsel %vm189, %v1989, 0.0
    %1999 = vadd.xlane.f32.xlu0 %v1998
    %v2000 = vpop.xlane.xlu0 %1999
    %v2001 = vsel %vm189, %v1990, 0.0
    %2002 = vadd.xlane.f32.xlu0 %v2001
    %v2003 = vpop.xlane.xlu0 %2002
    %v2004 = vsel %vm202, %v1991, 0.0
    %2005 = vadd.xlane.f32.xlu0 %v2004
    %v2006 = vpop.xlane.xlu0 %2005
    %v2007 = vmul.f32 %v1994, %v206
    %v2008 = vmul.f32 %v1997, %v206
    %v2009 = vmul.f32 %v2000, %v206
    %v2010 = vmul.f32 %v2003, %v206
    %v2011 = vmul.f32 %v2006, %v206
    %v2012 = vadd.f32 %v2007, 1e-06
    %v2013 = vadd.f32 %v2008, 1e-06
    %v2014 = vadd.f32 %v2009, 1e-06
    %v2015 = vadd.f32 %v2010, 1e-06
    %v2016 = vadd.f32 %v2011, 1e-06
    %v2017 = vrsqrt.pop %v2012
    %v2018 = vrsqrt.pop %v2013
    %v2019 = vrsqrt.pop %v2014
    %v2020 = vrsqrt.pop %v2015
    %v2021 = vrsqrt.pop %v2016
    %v2022 = vmul.f32 %v1982, %v2017
    %v2023 = vmul.f32 %v1983, %v2018
    %v2024 = vmul.f32 %v1984, %v2019
    %v2025 = vmul.f32 %v1985, %v2020
    %v2026 = vmul.f32 %v1986, %v2021
    %v2027 = vlaneseq
    %v2028 = vshrl.u32 %v2027, 7
    %v2029 = vsub.s32 2, %v2028
    %v2030 = vrot.slane %v188, %v2029
    %v2031 = vmul.f32 %v2022, %v2030
    %v2032 = vmul.f32 %v2023, %v2030
    %v2033 = vmul.f32 %v2024, %v2030
    %v2034 = vmul.f32 %v2025, %v2030
    %v2035 = vmul.f32 %v2026, %v2030
    %v2036 = vlaneseq
    %v2037 = vshrl.u32 %v2036, 7
    %v2038 = vsub.s32 3, %v2037
    %v2039 = vrot.slane %v188, %v2038
    %v2040 = vadd.f32 %v2031, %v2039
    %v2041 = vadd.f32 %v2032, %v2039
    %v2042 = vadd.f32 %v2033, %v2039
    %v2043 = vadd.f32 %v2034, %v2039
    %v2044 = vadd.f32 %v2035, %v2039
    %v2045 = vld [vmem:[%s10] sm:$0xff]
    %v2046 = vld [vmem:[%s10 + $0x8] sm:$0xff]
    %v2047 = vld [vmem:[%s10 + $0x10] sm:$0xff]
    %v2048 = vld [vmem:[%s10 + $0x18] sm:$0xff]
    %v2049 = vpack.c.bf16 %v2041, %v2040
    %v2050 = vpack.c.bf16 %v2043, %v2042
    %v2051 = vpack.c.bf16 %v2044, %v2044
    %v2052 = vpack.c.bf16 %v2046, %v2045
    %v2053 = vpack.c.bf16 %v2048, %v2047
    %v2054 = vld [vmem:[%s11] sm:$0x1]
    %v2056 = vlaneseq
    %v2057 = vshrl.u32 %v2056, 7
    %v2058 = vsub.s32 0, %v2057
    %v2059 = vrot.slane %v2054, %v2058
    %v2062 = vsel %vm189, %v2049, 0
    %v2065 = vsel %vm189, %v2050, 0
    %v2068 = vsel %vm189, %v2051, 0
    %2070 = vmatprep.subr.bf16.mxu0 0
    %2071 = vmatpush1.bf16.msra.mxu0 %v2052
    %2072 = vmatprep.subr.bf16.mxu0 0
    %2073 = vmatpush1.bf16.msra.mxu0 %v2053
    %2074 = vmatprep.subr.bf16.mxu0 0
    %2075 = vmatpush1.bf16.msra.mxu0 0
    %2076 = vmatprep.subr.bf16.mxu0 0
    %2077 = vmatpush1.bf16.msra.mxu0 0
    %2078 = vmatprep.subr.bf16.mxu0 0
    %2079 = vmatpush1.bf16.msra.mxu0 0
    %2080 = vmatprep.subr.bf16.mxu0 0
    %2081 = vmatpush1.bf16.msra.mxu0 0
    %2082 = vmatprep.subr.bf16.mxu0 0
    %2083 = vmatpush1.bf16.msra.mxu0 0
    %2084 = vmatprep.subr.bf16.mxu0 0
    %2085 = vmatpush1.bf16.msra.mxu0 0
    %2086 = vmatprep.subr.bf16.mxu0 0
    %2087 = vmatpush1.bf16.msra.mxu0 0
    %2088 = vmatprep.subr.bf16.mxu0 0
    %2089 = vmatpush1.bf16.msra.mxu0 0
    %2090 = vmatprep.subr.bf16.mxu0 0
    %2091 = vmatpush1.bf16.msra.mxu0 0
    %2092 = vmatprep.subr.bf16.mxu0 0
    %2093 = vmatpush1.bf16.msra.mxu0 0
    %2094 = vmatprep.subr.bf16.mxu0 0
    %2095 = vmatpush1.bf16.msra.mxu0 0
    %2096 = vmatprep.subr.bf16.mxu0 0
    %2097 = vmatpush1.bf16.msra.mxu0 0
    %2098 = vmatprep.subr.bf16.mxu0 0
    %2099 = vmatpush1.bf16.msra.mxu0 0
    %2100 = vmatprep.subr.bf16.mxu0 0
    %2101 = vmatpush1.bf16.msra.mxu0 0
    %2102 = vmatprep.mubr.bf16.mxu0 0
    %2103 = vmatmul.mubr.bf16.gmra.mrb[0].mxu0 %v2062
    %v2104 = vpop.f32.mrb[0].mxu0
    %v2105 = vadd.f32 %v2059, %v2104
    %v2106 = vpop.f32.mrb[0].mxu0
    %v2107 = vpop.f32.mrb[0].mxu0
    %v2108 = vadd.f32 %v2059, %v2107
    %v2109 = vpop.f32.mrb[0].mxu0
    %2110 = vmatprep.mubr.bf16.mxu0 0
    %2111 = vmatmul.mubr.bf16.gmra.mrb[0].mxu0 %v2065
    %v2112 = vpop.f32.mrb[0].mxu0
    %v2113 = vadd.f32 %v2059, %v2112
    %v2114 = vpop.f32.mrb[0].mxu0
    %v2115 = vpop.f32.mrb[0].mxu0
    %v2116 = vadd.f32 %v2059, %v2115
    %v2117 = vpop.f32.mrb[0].mxu0
    %2118 = vmatprep.mubr.bf16.mxu0 0
    %2119 = vmatmul.mubr.bf16.gmra.mrb[0].mxu0 %v2068
    %v2120 = vpop.f32.mrb[0].mxu0
    %v2121 = vadd.f32 %v2059, %v2120
    %v2122 = vpop.f32.mrb[0].mxu0
    %v2123 = vpop.f32.mrb[0].mxu0
    %v2124 = vpop.f32.mrb[0].mxu0
    %2125 = vdwg.mxu0
    %v2126 = vmul.f32 %v2105, 0.5
    %v2127 = vmul.f32 %v2108, 0.5
    %v2128 = vmul.f32 %v2113, 0.5
    %v2129 = vmul.f32 %v2116, 0.5
    %v2130 = vmul.f32 %v2121, 0.5
    %v2131 = vmul.f32 %v2105, 0.70710677
    %v2132 = vmul.f32 %v2108, 0.70710677
    %v2133 = vmul.f32 %v2113, 0.70710677
    %v2134 = vmul.f32 %v2116, 0.70710677
    %v2135 = vmul.f32 %v2121, 0.70710677
    %v2136 = vand.u32 2147483647, %v2131
    %v2137 = vand.u32 2147483647, %v2132
    %v2138 = vand.u32 2147483647, %v2133
    %v2139 = vand.u32 2147483647, %v2134
    %v2140 = vand.u32 2147483647, %v2135
    %v2141 = vmul.f32 %v2136, 0.3275911
    %v2142 = vmul.f32 %v2137, 0.3275911
    %v2143 = vmul.f32 %v2138, 0.3275911
    %v2144 = vmul.f32 %v2139, 0.3275911
    %v2145 = vmul.f32 %v2140, 0.3275911
    %v2146 = vadd.f32 %v2141, 1.0
    %v2147 = vadd.f32 %v2142, 1.0
    %v2148 = vadd.f32 %v2143, 1.0
    %v2149 = vadd.f32 %v2144, 1.0
    %v2150 = vadd.f32 %v2145, 1.0
    %v2151 = vrcp.pop %v2146
    %v2152 = vmul.f32 1.0, %v2151
    %v2153 = vrcp.pop %v2147
    %v2154 = vmul.f32 1.0, %v2153
    %v2155 = vrcp.pop %v2148
    %v2156 = vmul.f32 1.0, %v2155
    %v2157 = vrcp.pop %v2149
    %v2158 = vmul.f32 1.0, %v2157
    %v2159 = vrcp.pop %v2150
    %v2160 = vmul.f32 1.0, %v2159
    %v2161 = vmul.f32 %v2152, 1.0614054
    %v2162 = vmul.f32 %v2154, 1.0614054
    %v2163 = vmul.f32 %v2156, 1.0614054
    %v2164 = vmul.f32 %v2158, 1.0614054
    %v2165 = vmul.f32 %v2160, 1.0614054
    %v2166 = vadd.f32 %v2161, -1.4531521
    %v2167 = vadd.f32 %v2162, -1.4531521
    %v2168 = vadd.f32 %v2163, -1.4531521
    %v2169 = vadd.f32 %v2164, -1.4531521
    %v2170 = vadd.f32 %v2165, -1.4531521
    %v2171 = vmul.f32 %v2166, %v2152
    %v2172 = vmul.f32 %v2167, %v2154
    %v2173 = vmul.f32 %v2168, %v2156
    %v2174 = vmul.f32 %v2169, %v2158
    %v2175 = vmul.f32 %v2170, %v2160
    %v2176 = vadd.f32 %v2171, 1.4214138
    %v2177 = vadd.f32 %v2172, 1.4214138
    %v2178 = vadd.f32 %v2173, 1.4214138
    %v2179 = vadd.f32 %v2174, 1.4214138
    %v2180 = vadd.f32 %v2175, 1.4214138
    %v2181 = vmul.f32 %v2176, %v2152
    %v2182 = vmul.f32 %v2177, %v2154
    %v2183 = vmul.f32 %v2178, %v2156
    %v2184 = vmul.f32 %v2179, %v2158
    %v2185 = vmul.f32 %v2180, %v2160
    %v2186 = vadd.f32 %v2181, -0.28449672
    %v2187 = vadd.f32 %v2182, -0.28449672
    %v2188 = vadd.f32 %v2183, -0.28449672
    %v2189 = vadd.f32 %v2184, -0.28449672
    %v2190 = vadd.f32 %v2185, -0.28449672
    %v2191 = vmul.f32 %v2186, %v2152
    %v2192 = vmul.f32 %v2187, %v2154
    %v2193 = vmul.f32 %v2188, %v2156
    %v2194 = vmul.f32 %v2189, %v2158
    %v2195 = vmul.f32 %v2190, %v2160
    %v2196 = vadd.f32 %v2191, 0.2548296
    %v2197 = vadd.f32 %v2192, 0.2548296
    %v2198 = vadd.f32 %v2193, 0.2548296
    %v2199 = vadd.f32 %v2194, 0.2548296
    %v2200 = vadd.f32 %v2195, 0.2548296
    %v2201 = vmul.f32 %v2196, %v2152
    %v2202 = vmul.f32 %v2197, %v2154
    %v2203 = vmul.f32 %v2198, %v2156
    %v2204 = vmul.f32 %v2199, %v2158
    %v2205 = vmul.f32 %v2200, %v2160
    %v2206 = vsub.f32 0.0, %v2136
    %v2207 = vsub.f32 0.0, %v2137
    %v2208 = vsub.f32 0.0, %v2138
    %v2209 = vsub.f32 0.0, %v2139
    %v2210 = vsub.f32 0.0, %v2140
    %v2211 = vmul.f32 %v2206, %v2136
    %v2212 = vmul.f32 %v2207, %v2137
    %v2213 = vmul.f32 %v2208, %v2138
    %v2214 = vmul.f32 %v2209, %v2139
    %v2215 = vmul.f32 %v2210, %v2140
    %v2216 = vmul.f32 %v2211, 1.442695
    %v2217 = vpow.pop %v2216
    %v2218 = vmul.f32 %v2212, 1.442695
    %v2219 = vpow.pop %v2218
    %v2220 = vmul.f32 %v2213, 1.442695
    %v2221 = vpow.pop %v2220
    %v2222 = vmul.f32 %v2214, 1.442695
    %v2223 = vpow.pop %v2222
    %v2224 = vmul.f32 %v2215, 1.442695
    %v2225 = vpow.pop %v2224
    %v2226 = vmul.f32 %v2201, %v2217
    %v2227 = vmul.f32 %v2202, %v2219
    %v2228 = vmul.f32 %v2203, %v2221
    %v2229 = vmul.f32 %v2204, %v2223
    %v2230 = vmul.f32 %v2205, %v2225
    %v2231 = vsub.f32 1.0, %v2226
    %v2232 = vsub.f32 1.0, %v2227
    %v2233 = vsub.f32 1.0, %v2228
    %v2234 = vsub.f32 1.0, %v2229
    %v2235 = vsub.f32 1.0, %v2230
    %vm2236 = vcmp.ge.f32.partialorder %v2131, 0.0
    %vm2237 = vcmp.ge.f32.partialorder %v2132, 0.0
    %vm2238 = vcmp.ge.f32.partialorder %v2133, 0.0
    %vm2239 = vcmp.ge.f32.partialorder %v2134, 0.0
    %vm2240 = vcmp.ge.f32.partialorder %v2135, 0.0
    %v2241 = vsub.f32 0.0, %v2231
    %v2242 = vsub.f32 0.0, %v2232
    %v2243 = vsub.f32 0.0, %v2233
    %v2244 = vsub.f32 0.0, %v2234
    %v2245 = vsub.f32 0.0, %v2235
    %v2246 = vsel %vm2236, %v2231, %v2241
    %v2247 = vsel %vm2237, %v2232, %v2242
    %v2248 = vsel %vm2238, %v2233, %v2243
    %v2249 = vsel %vm2239, %v2234, %v2244
    %v2250 = vsel %vm2240, %v2235, %v2245
    %v2251 = vadd.f32 %v2246, 1.0
    %v2252 = vadd.f32 %v2247, 1.0
    %v2253 = vadd.f32 %v2248, 1.0
    %v2254 = vadd.f32 %v2249, 1.0
    %v2255 = vadd.f32 %v2250, 1.0
    %v2256 = vmul.f32 %v2126, %v2251
    %v2257 = vmul.f32 %v2127, %v2252
    %v2258 = vmul.f32 %v2128, %v2253
    %v2259 = vmul.f32 %v2129, %v2254
    %v2260 = vmul.f32 %v2130, %v2255
    %v2261 = vld [vmem:[%s12] sm:$0xff]
    %v2262 = vld [vmem:[%s12 + $0x8] sm:$0xff]
    %v2263 = vld [vmem:[%s12 + $0x10] sm:$0xff]
    %v2264 = vld [vmem:[%s12 + $0x18] sm:$0xff]
    %v2265 = vld [vmem:[%s12 + $0x20] sm:$0xff]
    %v2266 = vld [vmem:[%s12 + $0x28] sm:$0xff]
    %v2267 = vld [vmem:[%s12 + $0x30] sm:$0xff]
    %v2268 = vld [vmem:[%s12 + $0x38] sm:$0xff]
    %v2269 = vpack.c.bf16 %v2257, %v2256
    %v2270 = vpack.c.bf16 %v2259, %v2258
    %v2271 = vpack.c.bf16 %v2260, %v2260
    %v2272 = vpack.c.bf16 %v2262, %v2261
    %v2273 = vpack.c.bf16 %v2264, %v2263
    %v2274 = vpack.c.bf16 %v2266, %v2265
    %v2275 = vpack.c.bf16 %v2268, %v2267
    %v2277 = vsel %vm85, %v2269, 0
    %v2280 = vsel %vm85, %v2270, 0
    %v2283 = vsel %vm85, %v2271, 0
    %2285 = vmatprep.subr.bf16.mxu0 0
    %2286 = vmatpush1.bf16.msra.mxu0 %v2272
    %2287 = vmatprep.subr.bf16.mxu0 0
    %2288 = vmatpush1.bf16.msra.mxu0 %v2273
    %2289 = vmatprep.subr.bf16.mxu0 0
    %2290 = vmatpush1.bf16.msra.mxu0 %v2274
    %2291 = vmatprep.subr.bf16.mxu0 0
    %2292 = vmatpush1.bf16.msra.mxu0 %v2275
    %2293 = vmatprep.subr.bf16.mxu0 0
    %2294 = vmatpush1.bf16.msra.mxu0 0
    %2295 = vmatprep.subr.bf16.mxu0 0
    %2296 = vmatpush1.bf16.msra.mxu0 0
    %2297 = vmatprep.subr.bf16.mxu0 0
    %2298 = vmatpush1.bf16.msra.mxu0 0
    %2299 = vmatprep.subr.bf16.mxu0 0
    %2300 = vmatpush1.bf16.msra.mxu0 0
    %2301 = vmatprep.subr.bf16.mxu0 0
    %2302 = vmatpush1.bf16.msra.mxu0 0
    %2303 = vmatprep.subr.bf16.mxu0 0
    %2304 = vmatpush1.bf16.msra.mxu0 0
    %2305 = vmatprep.subr.bf16.mxu0 0
    %2306 = vmatpush1.bf16.msra.mxu0 0
    %2307 = vmatprep.subr.bf16.mxu0 0
    %2308 = vmatpush1.bf16.msra.mxu0 0
    %2309 = vmatprep.subr.bf16.mxu0 0
    %2310 = vmatpush1.bf16.msra.mxu0 0
    %2311 = vmatprep.subr.bf16.mxu0 0
    %2312 = vmatpush1.bf16.msra.mxu0 0
    %2313 = vmatprep.subr.bf16.mxu0 0
    %2314 = vmatpush1.bf16.msra.mxu0 0
    %2315 = vmatprep.subr.bf16.mxu0 0
    %2316 = vmatpush1.bf16.msra.mxu0 0
    %2317 = vmatprep.mubr.bf16.mxu0 0
    %2318 = vmatmul.mubr.bf16.gmra.mrb[0].mxu0 %v2277
    %v2319 = vpop.f32.mrb[0].mxu0
    %v2320 = vadd.f32 0.0, %v2319
    %v2321 = vpop.f32.mrb[0].mxu0
    %v2322 = vpop.f32.mrb[0].mxu0
    %v2323 = vadd.f32 0.0, %v2322
    %v2324 = vpop.f32.mrb[0].mxu0
    %2325 = vmatprep.mubr.bf16.mxu0 0
    %2326 = vmatmul.mubr.bf16.gmra.mrb[0].mxu0 %v2280
    %v2327 = vpop.f32.mrb[0].mxu0
    %v2328 = vadd.f32 0.0, %v2327
    %v2329 = vpop.f32.mrb[0].mxu0
    %v2330 = vpop.f32.mrb[0].mxu0
    %v2331 = vadd.f32 0.0, %v2330
    %v2332 = vpop.f32.mrb[0].mxu0
    %2333 = vmatprep.mubr.bf16.mxu0 0
    %2334 = vmatmul.mubr.bf16.gmra.mrb[0].mxu0 %v2283
    %v2335 = vpop.f32.mrb[0].mxu0
    %v2336 = vadd.f32 0.0, %v2335
    %v2337 = vpop.f32.mrb[0].mxu0
    %v2338 = vpop.f32.mrb[0].mxu0
    %v2339 = vpop.f32.mrb[0].mxu0
    %2340 = vdwg.mxu0
    %v2341 = vadd.f32 %v1957, %v2320
    %v2342 = vadd.f32 %v1958, %v2323
    %v2343 = vadd.f32 %v1959, %v2328
    %v2344 = vadd.f32 %v1960, %v2331
    %v2345 = vadd.f32 %v1961, %v2336
    %v2346 = vld [vmem:[%s13] sm:$0x1]
    %v2348 = vlaneseq
    %v2349 = vshrl.u32 %v2348, 7
    %v2350 = vsub.s32 0, %v2349
    %v2351 = vrot.slane %v2346, %v2350
    %v2353 = vadd.f32 %v2341, %v2351
    %v2354 = vadd.f32 %v2342, %v2351
    %v2355 = vadd.f32 %v2343, %v2351
    %v2356 = vadd.f32 %v2344, %v2351
    %v2357 = vadd.f32 %v2345, %v2351
    %s2358 = scalar_lea.vmem %s5, 4
    %v2359 = vld [vmem:[%s2358] sm:$0xf]
    %v2360 = vsel %vm189, %v2353, 0.0
    %2361 = vadd.xlane.f32.xlu0 %v2360
    %v2362 = vpop.xlane.xlu0 %2361
    %v2363 = vsel %vm189, %v2354, 0.0
    %2364 = vadd.xlane.f32.xlu0 %v2363
    %v2365 = vpop.xlane.xlu0 %2364
    %v2366 = vsel %vm189, %v2355, 0.0
    %2367 = vadd.xlane.f32.xlu0 %v2366
    %v2368 = vpop.xlane.xlu0 %2367
    %v2369 = vsel %vm189, %v2356, 0.0
    %2370 = vadd.xlane.f32.xlu0 %v2369
    %v2371 = vpop.xlane.xlu0 %2370
    %v2372 = vsel %vm202, %v2357, 0.0
    %2373 = vadd.xlane.f32.xlu0 %v2372
    %v2374 = vpop.xlane.xlu0 %2373
    %v2375 = vmul.f32 %v2362, %v206
    %v2376 = vmul.f32 %v2365, %v206
    %v2377 = vmul.f32 %v2368, %v206
    %v2378 = vmul.f32 %v2371, %v206
    %v2379 = vmul.f32 %v2374, %v206
    %v2380 = vsub.f32 %v2353, %v2375
    %v2381 = vsub.f32 %v2354, %v2376
    %v2382 = vsub.f32 %v2355, %v2377
    %v2383 = vsub.f32 %v2356, %v2378
    %v2384 = vsub.f32 %v2357, %v2379
    %v2385 = vmul.f32 %v2380, %v2380
    %v2386 = vmul.f32 %v2381, %v2381
    %v2387 = vmul.f32 %v2382, %v2382
    %v2388 = vmul.f32 %v2383, %v2383
    %v2389 = vmul.f32 %v2384, %v2384
    %v2390 = vsel %vm189, %v2385, 0.0
    %2391 = vadd.xlane.f32.xlu0 %v2390
    %v2392 = vpop.xlane.xlu0 %2391
    %v2393 = vsel %vm189, %v2386, 0.0
    %2394 = vadd.xlane.f32.xlu0 %v2393
    %v2395 = vpop.xlane.xlu0 %2394
    %v2396 = vsel %vm189, %v2387, 0.0
    %2397 = vadd.xlane.f32.xlu0 %v2396
    %v2398 = vpop.xlane.xlu0 %2397
    %v2399 = vsel %vm189, %v2388, 0.0
    %2400 = vadd.xlane.f32.xlu0 %v2399
    %v2401 = vpop.xlane.xlu0 %2400
    %v2402 = vsel %vm202, %v2389, 0.0
    %2403 = vadd.xlane.f32.xlu0 %v2402
    %v2404 = vpop.xlane.xlu0 %2403
    %v2405 = vmul.f32 %v2392, %v206
    %v2406 = vmul.f32 %v2395, %v206
    %v2407 = vmul.f32 %v2398, %v206
    %v2408 = vmul.f32 %v2401, %v206
    %v2409 = vmul.f32 %v2404, %v206
    %v2410 = vadd.f32 %v2405, 1e-06
    %v2411 = vadd.f32 %v2406, 1e-06
    %v2412 = vadd.f32 %v2407, 1e-06
    %v2413 = vadd.f32 %v2408, 1e-06
    %v2414 = vadd.f32 %v2409, 1e-06
    %v2415 = vrsqrt.pop %v2410
    %v2416 = vrsqrt.pop %v2411
    %v2417 = vrsqrt.pop %v2412
    %v2418 = vrsqrt.pop %v2413
    %v2419 = vrsqrt.pop %v2414
    %v2420 = vmul.f32 %v2380, %v2415
    %v2421 = vmul.f32 %v2381, %v2416
    %v2422 = vmul.f32 %v2382, %v2417
    %v2423 = vmul.f32 %v2383, %v2418
    %v2424 = vmul.f32 %v2384, %v2419
    %v2425 = vlaneseq
    %v2426 = vshrl.u32 %v2425, 7
    %v2427 = vsub.s32 0, %v2426
    %v2428 = vrot.slane %v2359, %v2427
    %v2429 = vmul.f32 %v2420, %v2428
    %v2430 = vmul.f32 %v2421, %v2428
    %v2431 = vmul.f32 %v2422, %v2428
    %v2432 = vmul.f32 %v2423, %v2428
    %v2433 = vmul.f32 %v2424, %v2428
    %v2434 = vlaneseq
    %v2435 = vshrl.u32 %v2434, 7
    %v2436 = vsub.s32 1, %v2435
    %v2437 = vrot.slane %v2359, %v2436
    %v2438 = vadd.f32 %v2429, %v2437
    %v2439 = vadd.f32 %v2430, %v2437
    %v2440 = vadd.f32 %v2431, %v2437
    %v2441 = vadd.f32 %v2432, %v2437
    %v2442 = vadd.f32 %v2433, %v2437
    %s2443 = scalar_lea.vmem %s6, 32
    %v2444 = vld [vmem:[%s2443] sm:$0xff]
    %v2445 = vld [vmem:[%s2443 + $0x8] sm:$0xff]
    %v2446 = vld [vmem:[%s2443 + $0x10] sm:$0xff]
    %v2447 = vld [vmem:[%s2443 + $0x18] sm:$0xff]
    %v2448 = vpack.c.bf16 %v2439, %v2438
    %v2449 = vpack.c.bf16 %v2441, %v2440
    %v2450 = vpack.c.bf16 %v2442, %v2442
    %v2451 = vpack.c.bf16 %v2445, %v2444
    %v2452 = vpack.c.bf16 %v2447, %v2446
    %s2453 = scalar_lea.vmem %s7, 1
    %v2454 = vld [vmem:[%s2453] sm:$0x1]
    %v2456 = vlaneseq
    %v2457 = vshrl.u32 %v2456, 7
    %v2458 = vsub.s32 0, %v2457
    %v2459 = vrot.slane %v2454, %v2458
    %v2462 = vsel %vm189, %v2448, 0
    %v2465 = vsel %vm189, %v2449, 0
    %v2468 = vsel %vm189, %v2450, 0
    %2470 = vmatprep.subr.bf16.mxu0 0
    %2471 = vmatpush1.bf16.msra.mxu0 %v2451
    %2472 = vmatprep.subr.bf16.mxu0 0
    %2473 = vmatpush1.bf16.msra.mxu0 %v2452
    %2474 = vmatprep.subr.bf16.mxu0 0
    %2475 = vmatpush1.bf16.msra.mxu0 0
    %2476 = vmatprep.subr.bf16.mxu0 0
    %2477 = vmatpush1.bf16.msra.mxu0 0
    %2478 = vmatprep.subr.bf16.mxu0 0
    %2479 = vmatpush1.bf16.msra.mxu0 0
    %2480 = vmatprep.subr.bf16.mxu0 0
    %2481 = vmatpush1.bf16.msra.mxu0 0
    %2482 = vmatprep.subr.bf16.mxu0 0
    %2483 = vmatpush1.bf16.msra.mxu0 0
    %2484 = vmatprep.subr.bf16.mxu0 0
    %2485 = vmatpush1.bf16.msra.mxu0 0
    %2486 = vmatprep.subr.bf16.mxu0 0
    %2487 = vmatpush1.bf16.msra.mxu0 0
    %2488 = vmatprep.subr.bf16.mxu0 0
    %2489 = vmatpush1.bf16.msra.mxu0 0
    %2490 = vmatprep.subr.bf16.mxu0 0
    %2491 = vmatpush1.bf16.msra.mxu0 0
    %2492 = vmatprep.subr.bf16.mxu0 0
    %2493 = vmatpush1.bf16.msra.mxu0 0
    %2494 = vmatprep.subr.bf16.mxu0 0
    %2495 = vmatpush1.bf16.msra.mxu0 0
    %2496 = vmatprep.subr.bf16.mxu0 0
    %2497 = vmatpush1.bf16.msra.mxu0 0
    %2498 = vmatprep.subr.bf16.mxu0 0
    %2499 = vmatpush1.bf16.msra.mxu0 0
    %2500 = vmatprep.subr.bf16.mxu0 0
    %2501 = vmatpush1.bf16.msra.mxu0 0
    %2502 = vmatprep.mubr.bf16.mxu0 0
    %2503 = vmatmul.mubr.bf16.gmra.mrb[0].mxu0 %v2462
    %v2504 = vpop.f32.mrb[0].mxu0
    %v2505 = vadd.f32 %v2459, %v2504
    %v2506 = vpop.f32.mrb[0].mxu0
    %v2507 = vpop.f32.mrb[0].mxu0
    %v2508 = vadd.f32 %v2459, %v2507
    %v2509 = vpop.f32.mrb[0].mxu0
    %2510 = vmatprep.mubr.bf16.mxu0 0
    %2511 = vmatmul.mubr.bf16.gmra.mrb[0].mxu0 %v2465
    %v2512 = vpop.f32.mrb[0].mxu0
    %v2513 = vadd.f32 %v2459, %v2512
    %v2514 = vpop.f32.mrb[0].mxu0
    %v2515 = vpop.f32.mrb[0].mxu0
    %v2516 = vadd.f32 %v2459, %v2515
    %v2517 = vpop.f32.mrb[0].mxu0
    %2518 = vmatprep.mubr.bf16.mxu0 0
    %2519 = vmatmul.mubr.bf16.gmra.mrb[0].mxu0 %v2468
    %v2520 = vpop.f32.mrb[0].mxu0
    %v2521 = vadd.f32 %v2459, %v2520
    %v2522 = vpop.f32.mrb[0].mxu0
    %v2523 = vpop.f32.mrb[0].mxu0
    %v2524 = vpop.f32.mrb[0].mxu0
    %2525 = vdwg.mxu0
    %v2526 = vpack.c.bf16 %v2508, %v2505
    %v2527 = vpack.c.bf16 %v2513, %v2513
    %2530 = vrot.lane.b32.xlu0 %v2526, 96
    %v2531 = vpop.permute.xlu0 %2530
    %2532 = vrot.lane.b32.xlu0 %v2527, 96
    %v2533 = vpop.permute.xlu0 %2532
    %v2535 = vsel %vm364, %v2526, 0
    %v2538 = vsel %vm364, %v2527, 0
    %v2541 = vsel %vm364, %v2531, 0
    %v2544 = vsel %vm364, %v2533, 0
    %2546 = vmatprep.subr.bf16.mxu0 0
    %2547 = vmatpush1.bf16.xpose.msra.mxu0 %v2541
    %2548 = vmatprep.subr.bf16.mxu0 0
    %2549 = vmatpush1.bf16.xpose.msra.mxu0 %v2544
    %2550 = vmatprep.subr.bf16.mxu0 0
    %2551 = vmatpush1.bf16.xpose.msra.mxu0 0
    %2552 = vmatprep.subr.bf16.mxu0 0
    %2553 = vmatpush1.bf16.xpose.msra.mxu0 0
    %2554 = vmatprep.subr.bf16.mxu0 0
    %2555 = vmatpush1.bf16.xpose.msra.mxu0 0
    %2556 = vmatprep.subr.bf16.mxu0 0
    %2557 = vmatpush1.bf16.xpose.msra.mxu0 0
    %2558 = vmatprep.subr.bf16.mxu0 0
    %2559 = vmatpush1.bf16.xpose.msra.mxu0 0
    %2560 = vmatprep.subr.bf16.mxu0 0
    %2561 = vmatpush1.bf16.xpose.msra.mxu0 0
    %2562 = vmatprep.subr.bf16.mxu0 0
    %2563 = vmatpush1.bf16.xpose.msra.mxu0 0
    %2564 = vmatprep.subr.bf16.mxu0 0
    %2565 = vmatpush1.bf16.xpose.msra.mxu0 0
    %2566 = vmatprep.subr.bf16.mxu0 0
    %2567 = vmatpush1.bf16.xpose.msra.mxu0 0
    %2568 = vmatprep.subr.bf16.mxu0 0
    %2569 = vmatpush1.bf16.xpose.msra.mxu0 0
    %2570 = vmatprep.subr.bf16.mxu0 0
    %2571 = vmatpush1.bf16.xpose.msra.mxu0 0
    %2572 = vmatprep.subr.bf16.mxu0 0
    %2573 = vmatpush1.bf16.xpose.msra.mxu0 0
    %2574 = vmatprep.subr.bf16.mxu0 0
    %2575 = vmatpush1.bf16.xpose.msra.mxu0 0
    %2576 = vmatprep.subr.bf16.mxu0 0
    %2577 = vmatpush1.bf16.xpose.msra.mxu0 0
    %2578 = vmatprep.mubr.bf16.mxu0 0
    %2579 = vmatmul.mubr.bf16.gmra.mrb[0].mxu0 %v2535
    %v2580 = vpop.f32.mrb[0].mxu0
    %v2581 = vadd.f32 0.0, %v2580
    %v2582 = vpop.f32.mrb[0].mxu0
    %v2583 = vpop.f32.mrb[0].mxu0
    %v2584 = vadd.f32 0.0, %v2583
    %v2585 = vpop.f32.mrb[0].mxu0
    %2586 = vmatprep.mubr.bf16.mxu0 0
    %2587 = vmatmul.mubr.bf16.gmra.mrb[0].mxu0 %v2538
    %v2588 = vpop.f32.mrb[0].mxu0
    %v2589 = vadd.f32 0.0, %v2588
    %v2590 = vpop.f32.mrb[0].mxu0
    %v2591 = vpop.f32.mrb[0].mxu0
    %v2592 = vpop.f32.mrb[0].mxu0
    %2593 = vdwg.mxu0
    %v2594 = vmul.f32 %v2581, 0.35355338
    %v2595 = vmul.f32 %v2584, 0.35355338
    %v2596 = vmul.f32 %v2589, 0.35355338
    %v2597 = vsel %vm428, %v2594, -inf
    %2598 = vmax.xlane.f32.xlu0 %v2597
    %v2599 = vpop.xlane.xlu0 %2598
    %v2600 = vsel %vm428, %v2595, -inf
    %2601 = vmax.xlane.f32.xlu0 %v2600
    %v2602 = vpop.xlane.xlu0 %2601
    %v2603 = vsel %vm435, %v2596, -inf
    %2604 = vmax.xlane.f32.xlu0 %v2603
    %v2605 = vpop.xlane.xlu0 %2604
    %v2606 = vsub.f32 %v2594, %v2599
    %v2607 = vsub.f32 %v2595, %v2602
    %v2608 = vsub.f32 %v2596, %v2605
    %v2609 = vmul.f32 %v2606, 1.442695
    %v2610 = vpow.pop %v2609
    %v2611 = vmul.f32 %v2607, 1.442695
    %v2612 = vpow.pop %v2611
    %v2613 = vmul.f32 %v2608, 1.442695
    %v2614 = vpow.pop %v2613
    %v2615 = vsel %vm428, %v2610, 0.0
    %2616 = vadd.xlane.f32.xlu0 %v2615
    %v2617 = vpop.xlane.xlu0 %2616
    %v2618 = vsel %vm428, %v2612, 0.0
    %2619 = vadd.xlane.f32.xlu0 %v2618
    %v2620 = vpop.xlane.xlu0 %2619
    %v2621 = vsel %vm435, %v2614, 0.0
    %2622 = vadd.xlane.f32.xlu0 %v2621
    %v2623 = vpop.xlane.xlu0 %2622
    %v2624 = vrcp.pop %v2617
    %v2625 = vmul.f32 %v2610, %v2624
    %v2626 = vrcp.pop %v2620
    %v2627 = vmul.f32 %v2612, %v2626
    %v2628 = vrcp.pop %v2623
    %v2629 = vmul.f32 %v2614, %v2628
    %s2630 = scalar_lea.vmem %s18, 192
    %2631 = vst.msk [vmem:[%s2630] sm:$0xff] %vm428, %v2625
    %2632 = vst.msk [vmem:[%s2630 + $0x8] sm:$0xff] %vm428, %v2627
    %2633 = vst.msk [vmem:[%s2630 + $0x10] sm:$0x1] %vm435, %v2629
    %v2634 = vpack.c.bf16 %v2627, %v2625
    %v2635 = vpack.c.bf16 %v2629, %v2629
    %2636 = vrot.lane.b32.xlu0 %v2526, 64
    %v2637 = vpop.permute.xlu0 %2636
    %2638 = vrot.lane.b32.xlu0 %v2527, 64
    %v2639 = vpop.permute.xlu0 %2638
    %v2642 = vsel %vm428, %v2634, 0
    %v2645 = vsel %vm428, %v2635, 0
    %v2648 = vand.u32 %v2639, %v480
    %2650 = vmatprep.subr.bf16.mxu0 0
    %2651 = vmatpush1.bf16.msra.mxu0 %v2637
    %2652 = vmatprep.subr.bf16.mxu0 0
    %2653 = vmatpush1.bf16.msra.mxu0 %v2648
    %2654 = vmatprep.subr.bf16.mxu0 0
    %2655 = vmatpush1.bf16.msra.mxu0 0
    %2656 = vmatprep.subr.bf16.mxu0 0
    %2657 = vmatpush1.bf16.msra.mxu0 0
    %2658 = vmatprep.subr.bf16.mxu0 0
    %2659 = vmatpush1.bf16.msra.mxu0 0
    %2660 = vmatprep.subr.bf16.mxu0 0
    %2661 = vmatpush1.bf16.msra.mxu0 0
    %2662 = vmatprep.subr.bf16.mxu0 0
    %2663 = vmatpush1.bf16.msra.mxu0 0
    %2664 = vmatprep.subr.bf16.mxu0 0
    %2665 = vmatpush1.bf16.msra.mxu0 0
    %2666 = vmatprep.subr.bf16.mxu0 0
    %2667 = vmatpush1.bf16.msra.mxu0 0
    %2668 = vmatprep.subr.bf16.mxu0 0
    %2669 = vmatpush1.bf16.msra.mxu0 0
    %2670 = vmatprep.subr.bf16.mxu0 0
    %2671 = vmatpush1.bf16.msra.mxu0 0
    %2672 = vmatprep.subr.bf16.mxu0 0
    %2673 = vmatpush1.bf16.msra.mxu0 0
    %2674 = vmatprep.subr.bf16.mxu0 0
    %2675 = vmatpush1.bf16.msra.mxu0 0
    %2676 = vmatprep.subr.bf16.mxu0 0
    %2677 = vmatpush1.bf16.msra.mxu0 0
    %2678 = vmatprep.subr.bf16.mxu0 0
    %2679 = vmatpush1.bf16.msra.mxu0 0
    %2680 = vmatprep.subr.bf16.mxu0 0
    %2681 = vmatpush1.bf16.msra.mxu0 0
    %2682 = vmatprep.mubr.bf16.mxu0 0
    %2683 = vmatmul.mubr.bf16.gmra.mrb[0].mxu0 %v2642
    %v2684 = vpop.f32.mrb[0].mxu0
    %v2685 = vadd.f32 0.0, %v2684
    %v2686 = vpop.f32.mrb[0].mxu0
    %v2687 = vpop.f32.mrb[0].mxu0
    %v2688 = vadd.f32 0.0, %v2687
    %v2689 = vpop.f32.mrb[0].mxu0
    %2690 = vmatprep.mubr.bf16.mxu0 0
    %2691 = vmatmul.mubr.bf16.gmra.mrb[0].mxu0 %v2645
    %v2692 = vpop.f32.mrb[0].mxu0
    %v2693 = vadd.f32 0.0, %v2692
    %v2694 = vpop.f32.mrb[0].mxu0
    %v2695 = vpop.f32.mrb[0].mxu0
    %v2696 = vpop.f32.mrb[0].mxu0
    %2697 = vdwg.mxu0
    %2698 = vst.msk [vmem:[#allocation2] sm:$0xff] %vm364, %v2685
    %2699 = vst.msk [vmem:[#allocation2 + $0x8] sm:$0xff] %vm364, %v2688
    %2700 = vst.msk [vmem:[#allocation2 + $0x10] sm:$0x1] %vm534, %v2693
    %2701 = vrot.lane.b32.xlu0 %v2526, 120
    %v2702 = vpop.permute.xlu0 %2701
    %2703 = vrot.lane.b32.xlu0 %v2527, 120
    %v2704 = vpop.permute.xlu0 %2703
    %2705 = vrot.lane.b32.xlu0 %v2526, 88
    %v2706 = vpop.permute.xlu0 %2705
    %2707 = vrot.lane.b32.xlu0 %v2527, 88
    %v2708 = vpop.permute.xlu0 %2707
    %v2710 = vsel %vm364, %v2702, 0
    %v2713 = vsel %vm364, %v2704, 0
    %v2716 = vsel %vm364, %v2706, 0
    %v2719 = vsel %vm364, %v2708, 0
    %2721 = vmatprep.subr.bf16.mxu0 0
    %2722 = vmatpush1.bf16.xpose.msra.mxu0 %v2716
    %2723 = vmatprep.subr.bf16.mxu0 0
    %2724 = vmatpush1.bf16.xpose.msra.mxu0 %v2719
    %2725 = vmatprep.subr.bf16.mxu0 0
    %2726 = vmatpush1.bf16.xpose.msra.mxu0 0
    %2727 = vmatprep.subr.bf16.mxu0 0
    %2728 = vmatpush1.bf16.xpose.msra.mxu0 0
    %2729 = vmatprep.subr.bf16.mxu0 0
    %2730 = vmatpush1.bf16.xpose.msra.mxu0 0
    %2731 = vmatprep.subr.bf16.mxu0 0
    %2732 = vmatpush1.bf16.xpose.msra.mxu0 0
    %2733 = vmatprep.subr.bf16.mxu0 0
    %2734 = vmatpush1.bf16.xpose.msra.mxu0 0
    %2735 = vmatprep.subr.bf16.mxu0 0
    %2736 = vmatpush1.bf16.xpose.msra.mxu0 0
    %2737 = vmatprep.subr.bf16.mxu0 0
    %2738 = vmatpush1.bf16.xpose.msra.mxu0 0
    %2739 = vmatprep.subr.bf16.mxu0 0
    %2740 = vmatpush1.bf16.xpose.msra.mxu0 0
    %2741 = vmatprep.subr.bf16.mxu0 0
    %2742 = vmatpush1.bf16.xpose.msra.mxu0 0
    %2743 = vmatprep.subr.bf16.mxu0 0
    %2744 = vmatpush1.bf16.xpose.msra.mxu0 0
    %2745 = vmatprep.subr.bf16.mxu0 0
    %2746 = vmatpush1.bf16.xpose.msra.mxu0 0
    %2747 = vmatprep.subr.bf16.mxu0 0
    %2748 = vmatpush1.bf16.xpose.msra.mxu0 0
    %2749 = vmatprep.subr.bf16.mxu0 0
    %2750 = vmatpush1.bf16.xpose.msra.mxu0 0
    %2751 = vmatprep.subr.bf16.mxu0 0
    %2752 = vmatpush1.bf16.xpose.msra.mxu0 0
    %2753 = vmatprep.mubr.bf16.mxu0 0
    %2754 = vmatmul.mubr.bf16.gmra.mrb[0].mxu0 %v2710
    %v2755 = vpop.f32.mrb[0].mxu0
    %v2756 = vadd.f32 0.0, %v2755
    %v2757 = vpop.f32.mrb[0].mxu0
    %v2758 = vpop.f32.mrb[0].mxu0
    %v2759 = vadd.f32 0.0, %v2758
    %v2760 = vpop.f32.mrb[0].mxu0
    %2761 = vmatprep.mubr.bf16.mxu0 0
    %2762 = vmatmul.mubr.bf16.gmra.mrb[0].mxu0 %v2713
    %v2763 = vpop.f32.mrb[0].mxu0
    %v2764 = vadd.f32 0.0, %v2763
    %v2765 = vpop.f32.mrb[0].mxu0
    %v2766 = vpop.f32.mrb[0].mxu0
    %v2767 = vpop.f32.mrb[0].mxu0
    %2768 = vdwg.mxu0
    %v2769 = vmul.f32 %v2756, 0.35355338
    %v2770 = vmul.f32 %v2759, 0.35355338
    %v2771 = vmul.f32 %v2764, 0.35355338
    %v2772 = vsel %vm428, %v2769, -inf
    %2773 = vmax.xlane.f32.xlu0 %v2772
    %v2774 = vpop.xlane.xlu0 %2773
    %v2775 = vsel %vm428, %v2770, -inf
    %2776 = vmax.xlane.f32.xlu0 %v2775
    %v2777 = vpop.xlane.xlu0 %2776
    %v2778 = vsel %vm435, %v2771, -inf
    %2779 = vmax.xlane.f32.xlu0 %v2778
    %v2780 = vpop.xlane.xlu0 %2779
    %v2781 = vsub.f32 %v2769, %v2774
    %v2782 = vsub.f32 %v2770, %v2777
    %v2783 = vsub.f32 %v2771, %v2780
    %v2784 = vmul.f32 %v2781, 1.442695
    %v2785 = vpow.pop %v2784
    %v2786 = vmul.f32 %v2782, 1.442695
    %v2787 = vpow.pop %v2786
    %v2788 = vmul.f32 %v2783, 1.442695
    %v2789 = vpow.pop %v2788
    %v2790 = vsel %vm428, %v2785, 0.0
    %2791 = vadd.xlane.f32.xlu0 %v2790
    %v2792 = vpop.xlane.xlu0 %2791
    %v2793 = vsel %vm428, %v2787, 0.0
    %2794 = vadd.xlane.f32.xlu0 %v2793
    %v2795 = vpop.xlane.xlu0 %2794
    %v2796 = vsel %vm435, %v2789, 0.0
    %2797 = vadd.xlane.f32.xlu0 %v2796
    %v2798 = vpop.xlane.xlu0 %2797
    %v2799 = vrcp.pop %v2792
    %v2800 = vmul.f32 %v2785, %v2799
    %v2801 = vrcp.pop %v2795
    %v2802 = vmul.f32 %v2787, %v2801
    %v2803 = vrcp.pop %v2798
    %v2804 = vmul.f32 %v2789, %v2803
    %s2805 = scalar_lea.vmem %s18, 216
    %2806 = vst.msk [vmem:[%s2805] sm:$0xff] %vm428, %v2800
    %2807 = vst.msk [vmem:[%s2805 + $0x8] sm:$0xff] %vm428, %v2802
    %2808 = vst.msk [vmem:[%s2805 + $0x10] sm:$0x1] %vm435, %v2804
    %v2809 = vpack.c.bf16 %v2802, %v2800
    %v2810 = vpack.c.bf16 %v2804, %v2804
    %2811 = vrot.lane.b32.xlu0 %v2526, 56
    %v2812 = vpop.permute.xlu0 %2811
    %2813 = vrot.lane.b32.xlu0 %v2527, 56
    %v2814 = vpop.permute.xlu0 %2813
    %v2817 = vsel %vm428, %v2809, 0
    %v2820 = vsel %vm428, %v2810, 0
    %v2823 = vand.u32 %v2814, %v480
    %2825 = vmatprep.subr.bf16.mxu0 0
    %2826 = vmatpush1.bf16.msra.mxu0 %v2812
    %2827 = vmatprep.subr.bf16.mxu0 0
    %2828 = vmatpush1.bf16.msra.mxu0 %v2823
    %2829 = vmatprep.subr.bf16.mxu0 0
    %2830 = vmatpush1.bf16.msra.mxu0 0
    %2831 = vmatprep.subr.bf16.mxu0 0
    %2832 = vmatpush1.bf16.msra.mxu0 0
    %2833 = vmatprep.subr.bf16.mxu0 0
    %2834 = vmatpush1.bf16.msra.mxu0 0
    %2835 = vmatprep.subr.bf16.mxu0 0
    %2836 = vmatpush1.bf16.msra.mxu0 0
    %2837 = vmatprep.subr.bf16.mxu0 0
    %2838 = vmatpush1.bf16.msra.mxu0 0
    %2839 = vmatprep.subr.bf16.mxu0 0
    %2840 = vmatpush1.bf16.msra.mxu0 0
    %2841 = vmatprep.subr.bf16.mxu0 0
    %2842 = vmatpush1.bf16.msra.mxu0 0
    %2843 = vmatprep.subr.bf16.mxu0 0
    %2844 = vmatpush1.bf16.msra.mxu0 0
    %2845 = vmatprep.subr.bf16.mxu0 0
    %2846 = vmatpush1.bf16.msra.mxu0 0
    %2847 = vmatprep.subr.bf16.mxu0 0
    %2848 = vmatpush1.bf16.msra.mxu0 0
    %2849 = vmatprep.subr.bf16.mxu0 0
    %2850 = vmatpush1.bf16.msra.mxu0 0
    %2851 = vmatprep.subr.bf16.mxu0 0
    %2852 = vmatpush1.bf16.msra.mxu0 0
    %2853 = vmatprep.subr.bf16.mxu0 0
    %2854 = vmatpush1.bf16.msra.mxu0 0
    %2855 = vmatprep.subr.bf16.mxu0 0
    %2856 = vmatpush1.bf16.msra.mxu0 0
    %2857 = vmatprep.mubr.bf16.mxu0 0
    %2858 = vmatmul.mubr.bf16.gmra.mrb[0].mxu0 %v2817
    %v2859 = vpop.f32.mrb[0].mxu0
    %v2860 = vadd.f32 0.0, %v2859
    %v2861 = vpop.f32.mrb[0].mxu0
    %v2862 = vpop.f32.mrb[0].mxu0
    %v2863 = vadd.f32 0.0, %v2862
    %v2864 = vpop.f32.mrb[0].mxu0
    %2865 = vmatprep.mubr.bf16.mxu0 0
    %2866 = vmatmul.mubr.bf16.gmra.mrb[0].mxu0 %v2820
    %v2867 = vpop.f32.mrb[0].mxu0
    %v2868 = vadd.f32 0.0, %v2867
    %v2869 = vpop.f32.mrb[0].mxu0
    %v2870 = vpop.f32.mrb[0].mxu0
    %v2871 = vpop.f32.mrb[0].mxu0
    %2872 = vdwg.mxu0
    %2876 = vrot.lane.b32.xlu0 %v2860, 8
    %v2877 = vpop.permute.xlu0 %2876
    %2878 = vrot.lane.b32.xlu0 %v2863, 8
    %v2879 = vpop.permute.xlu0 %2878
    %2880 = vrot.lane.b32.xlu0 %v2868, 8
    %v2881 = vpop.permute.xlu0 %2880
    %2885 = vst.msk [vmem:[#allocation2] sm:$0xff] %vm720, %v2877
    %2886 = vst.msk [vmem:[#allocation2 + $0x8] sm:$0xff] %vm720, %v2879
    %2887 = vst.msk [vmem:[#allocation2 + $0x10] sm:$0x1] %vm723, %v2881
    %2888 = vrot.lane.b32.xlu0 %v2526, 112
    %v2889 = vpop.permute.xlu0 %2888
    %2890 = vrot.lane.b32.xlu0 %v2527, 112
    %v2891 = vpop.permute.xlu0 %2890
    %2892 = vrot.lane.b32.xlu0 %v2526, 80
    %v2893 = vpop.permute.xlu0 %2892
    %2894 = vrot.lane.b32.xlu0 %v2527, 80
    %v2895 = vpop.permute.xlu0 %2894
    %v2897 = vsel %vm364, %v2889, 0
    %v2900 = vsel %vm364, %v2891, 0
    %v2903 = vsel %vm364, %v2893, 0
    %v2906 = vsel %vm364, %v2895, 0
    %2908 = vmatprep.subr.bf16.mxu0 0
    %2909 = vmatpush1.bf16.xpose.msra.mxu0 %v2903
    %2910 = vmatprep.subr.bf16.mxu0 0
    %2911 = vmatpush1.bf16.xpose.msra.mxu0 %v2906
    %2912 = vmatprep.subr.bf16.mxu0 0
    %2913 = vmatpush1.bf16.xpose.msra.mxu0 0
    %2914 = vmatprep.subr.bf16.mxu0 0
    %2915 = vmatpush1.bf16.xpose.msra.mxu0 0
    %2916 = vmatprep.subr.bf16.mxu0 0
    %2917 = vmatpush1.bf16.xpose.msra.mxu0 0
    %2918 = vmatprep.subr.bf16.mxu0 0
    %2919 = vmatpush1.bf16.xpose.msra.mxu0 0
    %2920 = vmatprep.subr.bf16.mxu0 0
    %2921 = vmatpush1.bf16.xpose.msra.mxu0 0
    %2922 = vmatprep.subr.bf16.mxu0 0
    %2923 = vmatpush1.bf16.xpose.msra.mxu0 0
    %2924 = vmatprep.subr.bf16.mxu0 0
    %2925 = vmatpush1.bf16.xpose.msra.mxu0 0
    %2926 = vmatprep.subr.bf16.mxu0 0
    %2927 = vmatpush1.bf16.xpose.msra.mxu0 0
    %2928 = vmatprep.subr.bf16.mxu0 0
    %2929 = vmatpush1.bf16.xpose.msra.mxu0 0
    %2930 = vmatprep.subr.bf16.mxu0 0
    %2931 = vmatpush1.bf16.xpose.msra.mxu0 0
    %2932 = vmatprep.subr.bf16.mxu0 0
    %2933 = vmatpush1.bf16.xpose.msra.mxu0 0
    %2934 = vmatprep.subr.bf16.mxu0 0
    %2935 = vmatpush1.bf16.xpose.msra.mxu0 0
    %2936 = vmatprep.subr.bf16.mxu0 0
    %2937 = vmatpush1.bf16.xpose.msra.mxu0 0
    %2938 = vmatprep.subr.bf16.mxu0 0
    %2939 = vmatpush1.bf16.xpose.msra.mxu0 0
    %2940 = vmatprep.mubr.bf16.mxu0 0
    %2941 = vmatmul.mubr.bf16.gmra.mrb[0].mxu0 %v2897
    %v2942 = vpop.f32.mrb[0].mxu0
    %v2943 = vadd.f32 0.0, %v2942
    %v2944 = vpop.f32.mrb[0].mxu0
    %v2945 = vpop.f32.mrb[0].mxu0
    %v2946 = vadd.f32 0.0, %v2945
    %v2947 = vpop.f32.mrb[0].mxu0
    %2948 = vmatprep.mubr.bf16.mxu0 0
    %2949 = vmatmul.mubr.bf16.gmra.mrb[0].mxu0 %v2900
    %v2950 = vpop.f32.mrb[0].mxu0
    %v2951 = vadd.f32 0.0, %v2950
    %v2952 = vpop.f32.mrb[0].mxu0
    %v2953 = vpop.f32.mrb[0].mxu0
    %v2954 = vpop.f32.mrb[0].mxu0
    %2955 = vdwg.mxu0
    %v2956 = vmul.f32 %v2943, 0.35355338
    %v2957 = vmul.f32 %v2946, 0.35355338
    %v2958 = vmul.f32 %v2951, 0.35355338
    %v2959 = vsel %vm428, %v2956, -inf
    %2960 = vmax.xlane.f32.xlu0 %v2959
    %v2961 = vpop.xlane.xlu0 %2960
    %v2962 = vsel %vm428, %v2957, -inf
    %2963 = vmax.xlane.f32.xlu0 %v2962
    %v2964 = vpop.xlane.xlu0 %2963
    %v2965 = vsel %vm435, %v2958, -inf
    %2966 = vmax.xlane.f32.xlu0 %v2965
    %v2967 = vpop.xlane.xlu0 %2966
    %v2968 = vsub.f32 %v2956, %v2961
    %v2969 = vsub.f32 %v2957, %v2964
    %v2970 = vsub.f32 %v2958, %v2967
    %v2971 = vmul.f32 %v2968, 1.442695
    %v2972 = vpow.pop %v2971
    %v2973 = vmul.f32 %v2969, 1.442695
    %v2974 = vpow.pop %v2973
    %v2975 = vmul.f32 %v2970, 1.442695
    %v2976 = vpow.pop %v2975
    %v2977 = vsel %vm428, %v2972, 0.0
    %2978 = vadd.xlane.f32.xlu0 %v2977
    %v2979 = vpop.xlane.xlu0 %2978
    %v2980 = vsel %vm428, %v2974, 0.0
    %2981 = vadd.xlane.f32.xlu0 %v2980
    %v2982 = vpop.xlane.xlu0 %2981
    %v2983 = vsel %vm435, %v2976, 0.0
    %2984 = vadd.xlane.f32.xlu0 %v2983
    %v2985 = vpop.xlane.xlu0 %2984
    %v2986 = vrcp.pop %v2979
    %v2987 = vmul.f32 %v2972, %v2986
    %v2988 = vrcp.pop %v2982
    %v2989 = vmul.f32 %v2974, %v2988
    %v2990 = vrcp.pop %v2985
    %v2991 = vmul.f32 %v2976, %v2990
    %s2992 = scalar_lea.vmem %s18, 240
    %2993 = vst.msk [vmem:[%s2992] sm:$0xff] %vm428, %v2987
    %2994 = vst.msk [vmem:[%s2992 + $0x8] sm:$0xff] %vm428, %v2989
    %2995 = vst.msk [vmem:[%s2992 + $0x10] sm:$0x1] %vm435, %v2991
    %v2996 = vpack.c.bf16 %v2989, %v2987
    %v2997 = vpack.c.bf16 %v2991, %v2991
    %2998 = vrot.lane.b32.xlu0 %v2526, 48
    %v2999 = vpop.permute.xlu0 %2998
    %3000 = vrot.lane.b32.xlu0 %v2527, 48
    %v3001 = vpop.permute.xlu0 %3000
    %v3004 = vsel %vm428, %v2996, 0
    %v3007 = vsel %vm428, %v2997, 0
    %v3010 = vand.u32 %v3001, %v480
    %3012 = vmatprep.subr.bf16.mxu0 0
    %3013 = vmatpush1.bf16.msra.mxu0 %v2999
    %3014 = vmatprep.subr.bf16.mxu0 0
    %3015 = vmatpush1.bf16.msra.mxu0 %v3010
    %3016 = vmatprep.subr.bf16.mxu0 0
    %3017 = vmatpush1.bf16.msra.mxu0 0
    %3018 = vmatprep.subr.bf16.mxu0 0
    %3019 = vmatpush1.bf16.msra.mxu0 0
    %3020 = vmatprep.subr.bf16.mxu0 0
    %3021 = vmatpush1.bf16.msra.mxu0 0
    %3022 = vmatprep.subr.bf16.mxu0 0
    %3023 = vmatpush1.bf16.msra.mxu0 0
    %3024 = vmatprep.subr.bf16.mxu0 0
    %3025 = vmatpush1.bf16.msra.mxu0 0
    %3026 = vmatprep.subr.bf16.mxu0 0
    %3027 = vmatpush1.bf16.msra.mxu0 0
    %3028 = vmatprep.subr.bf16.mxu0 0
    %3029 = vmatpush1.bf16.msra.mxu0 0
    %3030 = vmatprep.subr.bf16.mxu0 0
    %3031 = vmatpush1.bf16.msra.mxu0 0
    %3032 = vmatprep.subr.bf16.mxu0 0
    %3033 = vmatpush1.bf16.msra.mxu0 0
    %3034 = vmatprep.subr.bf16.mxu0 0
    %3035 = vmatpush1.bf16.msra.mxu0 0
    %3036 = vmatprep.subr.bf16.mxu0 0
    %3037 = vmatpush1.bf16.msra.mxu0 0
    %3038 = vmatprep.subr.bf16.mxu0 0
    %3039 = vmatpush1.bf16.msra.mxu0 0
    %3040 = vmatprep.subr.bf16.mxu0 0
    %3041 = vmatpush1.bf16.msra.mxu0 0
    %3042 = vmatprep.subr.bf16.mxu0 0
    %3043 = vmatpush1.bf16.msra.mxu0 0
    %3044 = vmatprep.mubr.bf16.mxu0 0
    %3045 = vmatmul.mubr.bf16.gmra.mrb[0].mxu0 %v3004
    %v3046 = vpop.f32.mrb[0].mxu0
    %v3047 = vadd.f32 0.0, %v3046
    %v3048 = vpop.f32.mrb[0].mxu0
    %v3049 = vpop.f32.mrb[0].mxu0
    %v3050 = vadd.f32 0.0, %v3049
    %v3051 = vpop.f32.mrb[0].mxu0
    %3052 = vmatprep.mubr.bf16.mxu0 0
    %3053 = vmatmul.mubr.bf16.gmra.mrb[0].mxu0 %v3007
    %v3054 = vpop.f32.mrb[0].mxu0
    %v3055 = vadd.f32 0.0, %v3054
    %v3056 = vpop.f32.mrb[0].mxu0
    %v3057 = vpop.f32.mrb[0].mxu0
    %v3058 = vpop.f32.mrb[0].mxu0
    %3059 = vdwg.mxu0
    %3063 = vrot.lane.b32.xlu0 %v3047, 16
    %v3064 = vpop.permute.xlu0 %3063
    %3065 = vrot.lane.b32.xlu0 %v3050, 16
    %v3066 = vpop.permute.xlu0 %3065
    %3067 = vrot.lane.b32.xlu0 %v3055, 16
    %v3068 = vpop.permute.xlu0 %3067
    %3072 = vst.msk [vmem:[#allocation2] sm:$0xff] %vm909, %v3064
    %3073 = vst.msk [vmem:[#allocation2 + $0x8] sm:$0xff] %vm909, %v3066
    %3074 = vst.msk [vmem:[#allocation2 + $0x10] sm:$0x1] %vm912, %v3068
    %3075 = vrot.lane.b32.xlu0 %v2526, 104
    %v3076 = vpop.permute.xlu0 %3075
    %3077 = vrot.lane.b32.xlu0 %v2527, 104
    %v3078 = vpop.permute.xlu0 %3077
    %3079 = vrot.lane.b32.xlu0 %v2526, 72
    %v3080 = vpop.permute.xlu0 %3079
    %3081 = vrot.lane.b32.xlu0 %v2527, 72
    %v3082 = vpop.permute.xlu0 %3081
    %v3084 = vsel %vm364, %v3076, 0
    %v3087 = vsel %vm364, %v3078, 0
    %v3090 = vsel %vm364, %v3080, 0
    %v3093 = vsel %vm364, %v3082, 0
    %3095 = vmatprep.subr.bf16.mxu0 0
    %3096 = vmatpush1.bf16.xpose.msra.mxu0 %v3090
    %3097 = vmatprep.subr.bf16.mxu0 0
    %3098 = vmatpush1.bf16.xpose.msra.mxu0 %v3093
    %3099 = vmatprep.subr.bf16.mxu0 0
    %3100 = vmatpush1.bf16.xpose.msra.mxu0 0
    %3101 = vmatprep.subr.bf16.mxu0 0
    %3102 = vmatpush1.bf16.xpose.msra.mxu0 0
    %3103 = vmatprep.subr.bf16.mxu0 0
    %3104 = vmatpush1.bf16.xpose.msra.mxu0 0
    %3105 = vmatprep.subr.bf16.mxu0 0
    %3106 = vmatpush1.bf16.xpose.msra.mxu0 0
    %3107 = vmatprep.subr.bf16.mxu0 0
    %3108 = vmatpush1.bf16.xpose.msra.mxu0 0
    %3109 = vmatprep.subr.bf16.mxu0 0
    %3110 = vmatpush1.bf16.xpose.msra.mxu0 0
    %3111 = vmatprep.subr.bf16.mxu0 0
    %3112 = vmatpush1.bf16.xpose.msra.mxu0 0
    %3113 = vmatprep.subr.bf16.mxu0 0
    %3114 = vmatpush1.bf16.xpose.msra.mxu0 0
    %3115 = vmatprep.subr.bf16.mxu0 0
    %3116 = vmatpush1.bf16.xpose.msra.mxu0 0
    %3117 = vmatprep.subr.bf16.mxu0 0
    %3118 = vmatpush1.bf16.xpose.msra.mxu0 0
    %3119 = vmatprep.subr.bf16.mxu0 0
    %3120 = vmatpush1.bf16.xpose.msra.mxu0 0
    %3121 = vmatprep.subr.bf16.mxu0 0
    %3122 = vmatpush1.bf16.xpose.msra.mxu0 0
    %3123 = vmatprep.subr.bf16.mxu0 0
    %3124 = vmatpush1.bf16.xpose.msra.mxu0 0
    %3125 = vmatprep.subr.bf16.mxu0 0
    %3126 = vmatpush1.bf16.xpose.msra.mxu0 0
    %3127 = vmatprep.mubr.bf16.mxu0 0
    %3128 = vmatmul.mubr.bf16.gmra.mrb[0].mxu0 %v3084
    %v3129 = vpop.f32.mrb[0].mxu0
    %v3130 = vadd.f32 0.0, %v3129
    %v3131 = vpop.f32.mrb[0].mxu0
    %v3132 = vpop.f32.mrb[0].mxu0
    %v3133 = vadd.f32 0.0, %v3132
    %v3134 = vpop.f32.mrb[0].mxu0
    %3135 = vmatprep.mubr.bf16.mxu0 0
    %3136 = vmatmul.mubr.bf16.gmra.mrb[0].mxu0 %v3087
    %v3137 = vpop.f32.mrb[0].mxu0
    %v3138 = vadd.f32 0.0, %v3137
    %v3139 = vpop.f32.mrb[0].mxu0
    %v3140 = vpop.f32.mrb[0].mxu0
    %v3141 = vpop.f32.mrb[0].mxu0
    %3142 = vdwg.mxu0
    %v3143 = vmul.f32 %v3130, 0.35355338
    %v3144 = vmul.f32 %v3133, 0.35355338
    %v3145 = vmul.f32 %v3138, 0.35355338
    %v3146 = vsel %vm428, %v3143, -inf
    %3147 = vmax.xlane.f32.xlu0 %v3146
    %v3148 = vpop.xlane.xlu0 %3147
    %v3149 = vsel %vm428, %v3144, -inf
    %3150 = vmax.xlane.f32.xlu0 %v3149
    %v3151 = vpop.xlane.xlu0 %3150
    %v3152 = vsel %vm435, %v3145, -inf
    %3153 = vmax.xlane.f32.xlu0 %v3152
    %v3154 = vpop.xlane.xlu0 %3153
    %v3155 = vsub.f32 %v3143, %v3148
    %v3156 = vsub.f32 %v3144, %v3151
    %v3157 = vsub.f32 %v3145, %v3154
    %v3158 = vmul.f32 %v3155, 1.442695
    %v3159 = vpow.pop %v3158
    %v3160 = vmul.f32 %v3156, 1.442695
    %v3161 = vpow.pop %v3160
    %v3162 = vmul.f32 %v3157, 1.442695
    %v3163 = vpow.pop %v3162
    %v3164 = vsel %vm428, %v3159, 0.0
    %3165 = vadd.xlane.f32.xlu0 %v3164
    %v3166 = vpop.xlane.xlu0 %3165
    %v3167 = vsel %vm428, %v3161, 0.0
    %3168 = vadd.xlane.f32.xlu0 %v3167
    %v3169 = vpop.xlane.xlu0 %3168
    %v3170 = vsel %vm435, %v3163, 0.0
    %3171 = vadd.xlane.f32.xlu0 %v3170
    %v3172 = vpop.xlane.xlu0 %3171
    %v3173 = vrcp.pop %v3166
    %v3174 = vmul.f32 %v3159, %v3173
    %v3175 = vrcp.pop %v3169
    %v3176 = vmul.f32 %v3161, %v3175
    %v3177 = vrcp.pop %v3172
    %v3178 = vmul.f32 %v3163, %v3177
    %s3179 = scalar_lea.vmem %s18, 264
    %3180 = vst.msk [vmem:[%s3179] sm:$0xff] %vm428, %v3174
    %3181 = vst.msk [vmem:[%s3179 + $0x8] sm:$0xff] %vm428, %v3176
    %3182 = vst.msk [vmem:[%s3179 + $0x10] sm:$0x1] %vm435, %v3178
    %v3183 = vpack.c.bf16 %v3176, %v3174
    %v3184 = vpack.c.bf16 %v3178, %v3178
    %3185 = vrot.lane.b32.xlu0 %v2526, 40
    %v3186 = vpop.permute.xlu0 %3185
    %3187 = vrot.lane.b32.xlu0 %v2527, 40
    %v3188 = vpop.permute.xlu0 %3187
    %v3191 = vsel %vm428, %v3183, 0
    %v3194 = vsel %vm428, %v3184, 0
    %v3197 = vand.u32 %v3188, %v480
    %3199 = vmatprep.subr.bf16.mxu0 0
    %3200 = vmatpush1.bf16.msra.mxu0 %v3186
    %3201 = vmatprep.subr.bf16.mxu0 0
    %3202 = vmatpush1.bf16.msra.mxu0 %v3197
    %3203 = vmatprep.subr.bf16.mxu0 0
    %3204 = vmatpush1.bf16.msra.mxu0 0
    %3205 = vmatprep.subr.bf16.mxu0 0
    %3206 = vmatpush1.bf16.msra.mxu0 0
    %3207 = vmatprep.subr.bf16.mxu0 0
    %3208 = vmatpush1.bf16.msra.mxu0 0
    %3209 = vmatprep.subr.bf16.mxu0 0
    %3210 = vmatpush1.bf16.msra.mxu0 0
    %3211 = vmatprep.subr.bf16.mxu0 0
    %3212 = vmatpush1.bf16.msra.mxu0 0
    %3213 = vmatprep.subr.bf16.mxu0 0
    %3214 = vmatpush1.bf16.msra.mxu0 0
    %3215 = vmatprep.subr.bf16.mxu0 0
    %3216 = vmatpush1.bf16.msra.mxu0 0
    %3217 = vmatprep.subr.bf16.mxu0 0
    %3218 = vmatpush1.bf16.msra.mxu0 0
    %3219 = vmatprep.subr.bf16.mxu0 0
    %3220 = vmatpush1.bf16.msra.mxu0 0
    %3221 = vmatprep.subr.bf16.mxu0 0
    %3222 = vmatpush1.bf16.msra.mxu0 0
    %3223 = vmatprep.subr.bf16.mxu0 0
    %3224 = vmatpush1.bf16.msra.mxu0 0
    %3225 = vmatprep.subr.bf16.mxu0 0
    %3226 = vmatpush1.bf16.msra.mxu0 0
    %3227 = vmatprep.subr.bf16.mxu0 0
    %3228 = vmatpush1.bf16.msra.mxu0 0
    %3229 = vmatprep.subr.bf16.mxu0 0
    %3230 = vmatpush1.bf16.msra.mxu0 0
    %3231 = vmatprep.mubr.bf16.mxu0 0
    %3232 = vmatmul.mubr.bf16.gmra.mrb[0].mxu0 %v3191
    %v3233 = vpop.f32.mrb[0].mxu0
    %v3234 = vadd.f32 0.0, %v3233
    %v3235 = vpop.f32.mrb[0].mxu0
    %v3236 = vpop.f32.mrb[0].mxu0
    %v3237 = vadd.f32 0.0, %v3236
    %v3238 = vpop.f32.mrb[0].mxu0
    %3239 = vmatprep.mubr.bf16.mxu0 0
    %3240 = vmatmul.mubr.bf16.gmra.mrb[0].mxu0 %v3194
    %v3241 = vpop.f32.mrb[0].mxu0
    %v3242 = vadd.f32 0.0, %v3241
    %v3243 = vpop.f32.mrb[0].mxu0
    %v3244 = vpop.f32.mrb[0].mxu0
    %v3245 = vpop.f32.mrb[0].mxu0
    %3246 = vdwg.mxu0
    %3250 = vrot.lane.b32.xlu0 %v3234, 24
    %v3251 = vpop.permute.xlu0 %3250
    %3252 = vrot.lane.b32.xlu0 %v3237, 24
    %v3253 = vpop.permute.xlu0 %3252
    %3254 = vrot.lane.b32.xlu0 %v3242, 24
    %v3255 = vpop.permute.xlu0 %3254
    %3259 = vst.msk [vmem:[#allocation2] sm:$0xff] %vm1098, %v3251
    %3260 = vst.msk [vmem:[#allocation2 + $0x8] sm:$0xff] %vm1098, %v3253
    %3261 = vst.msk [vmem:[#allocation2 + $0x10] sm:$0x1] %vm1101, %v3255
    %v3262 = vpack.c.bf16 %v2516, %v2513
    %v3263 = vpack.c.bf16 %v2521, %v2521
    %v3265 = vshrl.u32 %v3262, 16
    %v3267 = vshll.u32 %v3262, 16
    %v3269 = vrot.slane %v3267, 1
    %v3270 = vor.u32 %v3265, %v3269
    %v3272 = vshll.u32 %v3263, 16
    %v3274 = vrot.slane %v3272, 1
    %v3275 = vsel %vm1105, %v3270, %v3274
    %v3276 = vshrl.u32 %v3263, 16
    %3278 = vrot.lane.b32.xlu0 %v3275, 96
    %v3279 = vpop.permute.xlu0 %3278
    %3280 = vrot.lane.b32.xlu0 %v3276, 96
    %v3281 = vpop.permute.xlu0 %3280
    %v3283 = vsel %vm364, %v3275, 0
    %v3286 = vsel %vm364, %v3276, 0
    %v3289 = vsel %vm364, %v3279, 0
    %v3292 = vsel %vm364, %v3281, 0
    %3294 = vmatprep.subr.bf16.mxu0 0
    %3295 = vmatpush1.bf16.xpose.msra.mxu0 %v3289
    %3296 = vmatprep.subr.bf16.mxu0 0
    %3297 = vmatpush1.bf16.xpose.msra.mxu0 %v3292
    %3298 = vmatprep.subr.bf16.mxu0 0
    %3299 = vmatpush1.bf16.xpose.msra.mxu0 0
    %3300 = vmatprep.subr.bf16.mxu0 0
    %3301 = vmatpush1.bf16.xpose.msra.mxu0 0
    %3302 = vmatprep.subr.bf16.mxu0 0
    %3303 = vmatpush1.bf16.xpose.msra.mxu0 0
    %3304 = vmatprep.subr.bf16.mxu0 0
    %3305 = vmatpush1.bf16.xpose.msra.mxu0 0
    %3306 = vmatprep.subr.bf16.mxu0 0
    %3307 = vmatpush1.bf16.xpose.msra.mxu0 0
    %3308 = vmatprep.subr.bf16.mxu0 0
    %3309 = vmatpush1.bf16.xpose.msra.mxu0 0
    %3310 = vmatprep.subr.bf16.mxu0 0
    %3311 = vmatpush1.bf16.xpose.msra.mxu0 0
    %3312 = vmatprep.subr.bf16.mxu0 0
    %3313 = vmatpush1.bf16.xpose.msra.mxu0 0
    %3314 = vmatprep.subr.bf16.mxu0 0
    %3315 = vmatpush1.bf16.xpose.msra.mxu0 0
    %3316 = vmatprep.subr.bf16.mxu0 0
    %3317 = vmatpush1.bf16.xpose.msra.mxu0 0
    %3318 = vmatprep.subr.bf16.mxu0 0
    %3319 = vmatpush1.bf16.xpose.msra.mxu0 0
    %3320 = vmatprep.subr.bf16.mxu0 0
    %3321 = vmatpush1.bf16.xpose.msra.mxu0 0
    %3322 = vmatprep.subr.bf16.mxu0 0
    %3323 = vmatpush1.bf16.xpose.msra.mxu0 0
    %3324 = vmatprep.subr.bf16.mxu0 0
    %3325 = vmatpush1.bf16.xpose.msra.mxu0 0
    %3326 = vmatprep.mubr.bf16.mxu0 0
    %3327 = vmatmul.mubr.bf16.gmra.mrb[0].mxu0 %v3283
    %v3328 = vpop.f32.mrb[0].mxu0
    %v3329 = vadd.f32 0.0, %v3328
    %v3330 = vpop.f32.mrb[0].mxu0
    %v3331 = vpop.f32.mrb[0].mxu0
    %v3332 = vadd.f32 0.0, %v3331
    %v3333 = vpop.f32.mrb[0].mxu0
    %3334 = vmatprep.mubr.bf16.mxu0 0
    %3335 = vmatmul.mubr.bf16.gmra.mrb[0].mxu0 %v3286
    %v3336 = vpop.f32.mrb[0].mxu0
    %v3337 = vadd.f32 0.0, %v3336
    %v3338 = vpop.f32.mrb[0].mxu0
    %v3339 = vpop.f32.mrb[0].mxu0
    %v3340 = vpop.f32.mrb[0].mxu0
    %3341 = vdwg.mxu0
    %v3342 = vmul.f32 %v3329, 0.35355338
    %v3343 = vmul.f32 %v3332, 0.35355338
    %v3344 = vmul.f32 %v3337, 0.35355338
    %v3345 = vsel %vm428, %v3342, -inf
    %3346 = vmax.xlane.f32.xlu0 %v3345
    %v3347 = vpop.xlane.xlu0 %3346
    %v3348 = vsel %vm428, %v3343, -inf
    %3349 = vmax.xlane.f32.xlu0 %v3348
    %v3350 = vpop.xlane.xlu0 %3349
    %v3351 = vsel %vm435, %v3344, -inf
    %3352 = vmax.xlane.f32.xlu0 %v3351
    %v3353 = vpop.xlane.xlu0 %3352
    %v3354 = vsub.f32 %v3342, %v3347
    %v3355 = vsub.f32 %v3343, %v3350
    %v3356 = vsub.f32 %v3344, %v3353
    %v3357 = vmul.f32 %v3354, 1.442695
    %v3358 = vpow.pop %v3357
    %v3359 = vmul.f32 %v3355, 1.442695
    %v3360 = vpow.pop %v3359
    %v3361 = vmul.f32 %v3356, 1.442695
    %v3362 = vpow.pop %v3361
    %v3363 = vsel %vm428, %v3358, 0.0
    %3364 = vadd.xlane.f32.xlu0 %v3363
    %v3365 = vpop.xlane.xlu0 %3364
    %v3366 = vsel %vm428, %v3360, 0.0
    %3367 = vadd.xlane.f32.xlu0 %v3366
    %v3368 = vpop.xlane.xlu0 %3367
    %v3369 = vsel %vm435, %v3362, 0.0
    %3370 = vadd.xlane.f32.xlu0 %v3369
    %v3371 = vpop.xlane.xlu0 %3370
    %v3372 = vrcp.pop %v3365
    %v3373 = vmul.f32 %v3358, %v3372
    %v3374 = vrcp.pop %v3368
    %v3375 = vmul.f32 %v3360, %v3374
    %v3376 = vrcp.pop %v3371
    %v3377 = vmul.f32 %v3362, %v3376
    %s3378 = scalar_lea.vmem %s18, 288
    %3379 = vst.msk [vmem:[%s3378] sm:$0xff] %vm428, %v3373
    %3380 = vst.msk [vmem:[%s3378 + $0x8] sm:$0xff] %vm428, %v3375
    %3381 = vst.msk [vmem:[%s3378 + $0x10] sm:$0x1] %vm435, %v3377
    %v3382 = vpack.c.bf16 %v3375, %v3373
    %v3383 = vpack.c.bf16 %v3377, %v3377
    %3384 = vrot.lane.b32.xlu0 %v3275, 64
    %v3385 = vpop.permute.xlu0 %3384
    %3386 = vrot.lane.b32.xlu0 %v3276, 64
    %v3387 = vpop.permute.xlu0 %3386
    %v3390 = vsel %vm428, %v3382, 0
    %v3393 = vsel %vm428, %v3383, 0
    %v3396 = vand.u32 %v3387, %v480
    %3398 = vmatprep.subr.bf16.mxu0 0
    %3399 = vmatpush1.bf16.msra.mxu0 %v3385
    %3400 = vmatprep.subr.bf16.mxu0 0
    %3401 = vmatpush1.bf16.msra.mxu0 %v3396
    %3402 = vmatprep.subr.bf16.mxu0 0
    %3403 = vmatpush1.bf16.msra.mxu0 0
    %3404 = vmatprep.subr.bf16.mxu0 0
    %3405 = vmatpush1.bf16.msra.mxu0 0
    %3406 = vmatprep.subr.bf16.mxu0 0
    %3407 = vmatpush1.bf16.msra.mxu0 0
    %3408 = vmatprep.subr.bf16.mxu0 0
    %3409 = vmatpush1.bf16.msra.mxu0 0
    %3410 = vmatprep.subr.bf16.mxu0 0
    %3411 = vmatpush1.bf16.msra.mxu0 0
    %3412 = vmatprep.subr.bf16.mxu0 0
    %3413 = vmatpush1.bf16.msra.mxu0 0
    %3414 = vmatprep.subr.bf16.mxu0 0
    %3415 = vmatpush1.bf16.msra.mxu0 0
    %3416 = vmatprep.subr.bf16.mxu0 0
    %3417 = vmatpush1.bf16.msra.mxu0 0
    %3418 = vmatprep.subr.bf16.mxu0 0
    %3419 = vmatpush1.bf16.msra.mxu0 0
    %3420 = vmatprep.subr.bf16.mxu0 0
    %3421 = vmatpush1.bf16.msra.mxu0 0
    %3422 = vmatprep.subr.bf16.mxu0 0
    %3423 = vmatpush1.bf16.msra.mxu0 0
    %3424 = vmatprep.subr.bf16.mxu0 0
    %3425 = vmatpush1.bf16.msra.mxu0 0
    %3426 = vmatprep.subr.bf16.mxu0 0
    %3427 = vmatpush1.bf16.msra.mxu0 0
    %3428 = vmatprep.subr.bf16.mxu0 0
    %3429 = vmatpush1.bf16.msra.mxu0 0
    %3430 = vmatprep.mubr.bf16.mxu0 0
    %3431 = vmatmul.mubr.bf16.gmra.mrb[0].mxu0 %v3390
    %v3432 = vpop.f32.mrb[0].mxu0
    %v3433 = vadd.f32 0.0, %v3432
    %v3434 = vpop.f32.mrb[0].mxu0
    %v3435 = vpop.f32.mrb[0].mxu0
    %v3436 = vadd.f32 0.0, %v3435
    %v3437 = vpop.f32.mrb[0].mxu0
    %3438 = vmatprep.mubr.bf16.mxu0 0
    %3439 = vmatmul.mubr.bf16.gmra.mrb[0].mxu0 %v3393
    %v3440 = vpop.f32.mrb[0].mxu0
    %v3441 = vadd.f32 0.0, %v3440
    %v3442 = vpop.f32.mrb[0].mxu0
    %v3443 = vpop.f32.mrb[0].mxu0
    %v3444 = vpop.f32.mrb[0].mxu0
    %3445 = vdwg.mxu0
    %3446 = vst.msk [vmem:[%s1288] sm:$0xff] %vm364, %v3433
    %3447 = vst.msk [vmem:[%s1288 + $0x8] sm:$0xff] %vm364, %v3436
    %3448 = vst.msk [vmem:[%s1288 + $0x10] sm:$0x1] %vm534, %v3441
    %3449 = vrot.lane.b32.xlu0 %v3275, 120
    %v3450 = vpop.permute.xlu0 %3449
    %3451 = vrot.lane.b32.xlu0 %v3276, 120
    %v3452 = vpop.permute.xlu0 %3451
    %3453 = vrot.lane.b32.xlu0 %v3275, 88
    %v3454 = vpop.permute.xlu0 %3453
    %3455 = vrot.lane.b32.xlu0 %v3276, 88
    %v3456 = vpop.permute.xlu0 %3455
    %v3458 = vsel %vm364, %v3450, 0
    %v3461 = vsel %vm364, %v3452, 0
    %v3464 = vsel %vm364, %v3454, 0
    %v3467 = vsel %vm364, %v3456, 0
    %3469 = vmatprep.subr.bf16.mxu0 0
    %3470 = vmatpush1.bf16.xpose.msra.mxu0 %v3464
    %3471 = vmatprep.subr.bf16.mxu0 0
    %3472 = vmatpush1.bf16.xpose.msra.mxu0 %v3467
    %3473 = vmatprep.subr.bf16.mxu0 0
    %3474 = vmatpush1.bf16.xpose.msra.mxu0 0
    %3475 = vmatprep.subr.bf16.mxu0 0
    %3476 = vmatpush1.bf16.xpose.msra.mxu0 0
    %3477 = vmatprep.subr.bf16.mxu0 0
    %3478 = vmatpush1.bf16.xpose.msra.mxu0 0
    %3479 = vmatprep.subr.bf16.mxu0 0
    %3480 = vmatpush1.bf16.xpose.msra.mxu0 0
    %3481 = vmatprep.subr.bf16.mxu0 0
    %3482 = vmatpush1.bf16.xpose.msra.mxu0 0
    %3483 = vmatprep.subr.bf16.mxu0 0
    %3484 = vmatpush1.bf16.xpose.msra.mxu0 0
    %3485 = vmatprep.subr.bf16.mxu0 0
    %3486 = vmatpush1.bf16.xpose.msra.mxu0 0
    %3487 = vmatprep.subr.bf16.mxu0 0
    %3488 = vmatpush1.bf16.xpose.msra.mxu0 0
    %3489 = vmatprep.subr.bf16.mxu0 0
    %3490 = vmatpush1.bf16.xpose.msra.mxu0 0
    %3491 = vmatprep.subr.bf16.mxu0 0
    %3492 = vmatpush1.bf16.xpose.msra.mxu0 0
    %3493 = vmatprep.subr.bf16.mxu0 0
    %3494 = vmatpush1.bf16.xpose.msra.mxu0 0
    %3495 = vmatprep.subr.bf16.mxu0 0
    %3496 = vmatpush1.bf16.xpose.msra.mxu0 0
    %3497 = vmatprep.subr.bf16.mxu0 0
    %3498 = vmatpush1.bf16.xpose.msra.mxu0 0
    %3499 = vmatprep.subr.bf16.mxu0 0
    %3500 = vmatpush1.bf16.xpose.msra.mxu0 0
    %3501 = vmatprep.mubr.bf16.mxu0 0
    %3502 = vmatmul.mubr.bf16.gmra.mrb[0].mxu0 %v3458
    %v3503 = vpop.f32.mrb[0].mxu0
    %v3504 = vadd.f32 0.0, %v3503
    %v3505 = vpop.f32.mrb[0].mxu0
    %v3506 = vpop.f32.mrb[0].mxu0
    %v3507 = vadd.f32 0.0, %v3506
    %v3508 = vpop.f32.mrb[0].mxu0
    %3509 = vmatprep.mubr.bf16.mxu0 0
    %3510 = vmatmul.mubr.bf16.gmra.mrb[0].mxu0 %v3461
    %v3511 = vpop.f32.mrb[0].mxu0
    %v3512 = vadd.f32 0.0, %v3511
    %v3513 = vpop.f32.mrb[0].mxu0
    %v3514 = vpop.f32.mrb[0].mxu0
    %v3515 = vpop.f32.mrb[0].mxu0
    %3516 = vdwg.mxu0
    %v3517 = vmul.f32 %v3504, 0.35355338
    %v3518 = vmul.f32 %v3507, 0.35355338
    %v3519 = vmul.f32 %v3512, 0.35355338
    %v3520 = vsel %vm428, %v3517, -inf
    %3521 = vmax.xlane.f32.xlu0 %v3520
    %v3522 = vpop.xlane.xlu0 %3521
    %v3523 = vsel %vm428, %v3518, -inf
    %3524 = vmax.xlane.f32.xlu0 %v3523
    %v3525 = vpop.xlane.xlu0 %3524
    %v3526 = vsel %vm435, %v3519, -inf
    %3527 = vmax.xlane.f32.xlu0 %v3526
    %v3528 = vpop.xlane.xlu0 %3527
    %v3529 = vsub.f32 %v3517, %v3522
    %v3530 = vsub.f32 %v3518, %v3525
    %v3531 = vsub.f32 %v3519, %v3528
    %v3532 = vmul.f32 %v3529, 1.442695
    %v3533 = vpow.pop %v3532
    %v3534 = vmul.f32 %v3530, 1.442695
    %v3535 = vpow.pop %v3534
    %v3536 = vmul.f32 %v3531, 1.442695
    %v3537 = vpow.pop %v3536
    %v3538 = vsel %vm428, %v3533, 0.0
    %3539 = vadd.xlane.f32.xlu0 %v3538
    %v3540 = vpop.xlane.xlu0 %3539
    %v3541 = vsel %vm428, %v3535, 0.0
    %3542 = vadd.xlane.f32.xlu0 %v3541
    %v3543 = vpop.xlane.xlu0 %3542
    %v3544 = vsel %vm435, %v3537, 0.0
    %3545 = vadd.xlane.f32.xlu0 %v3544
    %v3546 = vpop.xlane.xlu0 %3545
    %v3547 = vrcp.pop %v3540
    %v3548 = vmul.f32 %v3533, %v3547
    %v3549 = vrcp.pop %v3543
    %v3550 = vmul.f32 %v3535, %v3549
    %v3551 = vrcp.pop %v3546
    %v3552 = vmul.f32 %v3537, %v3551
    %s3553 = scalar_lea.vmem %s18, 312
    %3554 = vst.msk [vmem:[%s3553] sm:$0xff] %vm428, %v3548
    %3555 = vst.msk [vmem:[%s3553 + $0x8] sm:$0xff] %vm428, %v3550
    %3556 = vst.msk [vmem:[%s3553 + $0x10] sm:$0x1] %vm435, %v3552
    %v3557 = vpack.c.bf16 %v3550, %v3548
    %v3558 = vpack.c.bf16 %v3552, %v3552
    %3559 = vrot.lane.b32.xlu0 %v3275, 56
    %v3560 = vpop.permute.xlu0 %3559
    %3561 = vrot.lane.b32.xlu0 %v3276, 56
    %v3562 = vpop.permute.xlu0 %3561
    %v3565 = vsel %vm428, %v3557, 0
    %v3568 = vsel %vm428, %v3558, 0
    %v3571 = vand.u32 %v3562, %v480
    %3573 = vmatprep.subr.bf16.mxu0 0
    %3574 = vmatpush1.bf16.msra.mxu0 %v3560
    %3575 = vmatprep.subr.bf16.mxu0 0
    %3576 = vmatpush1.bf16.msra.mxu0 %v3571
    %3577 = vmatprep.subr.bf16.mxu0 0
    %3578 = vmatpush1.bf16.msra.mxu0 0
    %3579 = vmatprep.subr.bf16.mxu0 0
    %3580 = vmatpush1.bf16.msra.mxu0 0
    %3581 = vmatprep.subr.bf16.mxu0 0
    %3582 = vmatpush1.bf16.msra.mxu0 0
    %3583 = vmatprep.subr.bf16.mxu0 0
    %3584 = vmatpush1.bf16.msra.mxu0 0
    %3585 = vmatprep.subr.bf16.mxu0 0
    %3586 = vmatpush1.bf16.msra.mxu0 0
    %3587 = vmatprep.subr.bf16.mxu0 0
    %3588 = vmatpush1.bf16.msra.mxu0 0
    %3589 = vmatprep.subr.bf16.mxu0 0
    %3590 = vmatpush1.bf16.msra.mxu0 0
    %3591 = vmatprep.subr.bf16.mxu0 0
    %3592 = vmatpush1.bf16.msra.mxu0 0
    %3593 = vmatprep.subr.bf16.mxu0 0
    %3594 = vmatpush1.bf16.msra.mxu0 0
    %3595 = vmatprep.subr.bf16.mxu0 0
    %3596 = vmatpush1.bf16.msra.mxu0 0
    %3597 = vmatprep.subr.bf16.mxu0 0
    %3598 = vmatpush1.bf16.msra.mxu0 0
    %3599 = vmatprep.subr.bf16.mxu0 0
    %3600 = vmatpush1.bf16.msra.mxu0 0
    %3601 = vmatprep.subr.bf16.mxu0 0
    %3602 = vmatpush1.bf16.msra.mxu0 0
    %3603 = vmatprep.subr.bf16.mxu0 0
    %3604 = vmatpush1.bf16.msra.mxu0 0
    %3605 = vmatprep.mubr.bf16.mxu0 0
    %3606 = vmatmul.mubr.bf16.gmra.mrb[0].mxu0 %v3565
    %v3607 = vpop.f32.mrb[0].mxu0
    %v3608 = vadd.f32 0.0, %v3607
    %v3609 = vpop.f32.mrb[0].mxu0
    %v3610 = vpop.f32.mrb[0].mxu0
    %v3611 = vadd.f32 0.0, %v3610
    %v3612 = vpop.f32.mrb[0].mxu0
    %3613 = vmatprep.mubr.bf16.mxu0 0
    %3614 = vmatmul.mubr.bf16.gmra.mrb[0].mxu0 %v3568
    %v3615 = vpop.f32.mrb[0].mxu0
    %v3616 = vadd.f32 0.0, %v3615
    %v3617 = vpop.f32.mrb[0].mxu0
    %v3618 = vpop.f32.mrb[0].mxu0
    %v3619 = vpop.f32.mrb[0].mxu0
    %3620 = vdwg.mxu0
    %3624 = vrot.lane.b32.xlu0 %v3608, 8
    %v3625 = vpop.permute.xlu0 %3624
    %3626 = vrot.lane.b32.xlu0 %v3611, 8
    %v3627 = vpop.permute.xlu0 %3626
    %3628 = vrot.lane.b32.xlu0 %v3616, 8
    %v3629 = vpop.permute.xlu0 %3628
    %3633 = vst.msk [vmem:[%s1288] sm:$0xff] %vm720, %v3625
    %3634 = vst.msk [vmem:[%s1288 + $0x8] sm:$0xff] %vm720, %v3627
    %3635 = vst.msk [vmem:[%s1288 + $0x10] sm:$0x1] %vm723, %v3629
    %3636 = vrot.lane.b32.xlu0 %v3275, 112
    %v3637 = vpop.permute.xlu0 %3636
    %3638 = vrot.lane.b32.xlu0 %v3276, 112
    %v3639 = vpop.permute.xlu0 %3638
    %3640 = vrot.lane.b32.xlu0 %v3275, 80
    %v3641 = vpop.permute.xlu0 %3640
    %3642 = vrot.lane.b32.xlu0 %v3276, 80
    %v3643 = vpop.permute.xlu0 %3642
    %v3645 = vsel %vm364, %v3637, 0
    %v3648 = vsel %vm364, %v3639, 0
    %v3651 = vsel %vm364, %v3641, 0
    %v3654 = vsel %vm364, %v3643, 0
    %3656 = vmatprep.subr.bf16.mxu0 0
    %3657 = vmatpush1.bf16.xpose.msra.mxu0 %v3651
    %3658 = vmatprep.subr.bf16.mxu0 0
    %3659 = vmatpush1.bf16.xpose.msra.mxu0 %v3654
    %3660 = vmatprep.subr.bf16.mxu0 0
    %3661 = vmatpush1.bf16.xpose.msra.mxu0 0
    %3662 = vmatprep.subr.bf16.mxu0 0
    %3663 = vmatpush1.bf16.xpose.msra.mxu0 0
    %3664 = vmatprep.subr.bf16.mxu0 0
    %3665 = vmatpush1.bf16.xpose.msra.mxu0 0
    %3666 = vmatprep.subr.bf16.mxu0 0
    %3667 = vmatpush1.bf16.xpose.msra.mxu0 0
    %3668 = vmatprep.subr.bf16.mxu0 0
    %3669 = vmatpush1.bf16.xpose.msra.mxu0 0
    %3670 = vmatprep.subr.bf16.mxu0 0
    %3671 = vmatpush1.bf16.xpose.msra.mxu0 0
    %3672 = vmatprep.subr.bf16.mxu0 0
    %3673 = vmatpush1.bf16.xpose.msra.mxu0 0
    %3674 = vmatprep.subr.bf16.mxu0 0
    %3675 = vmatpush1.bf16.xpose.msra.mxu0 0
    %3676 = vmatprep.subr.bf16.mxu0 0
    %3677 = vmatpush1.bf16.xpose.msra.mxu0 0
    %3678 = vmatprep.subr.bf16.mxu0 0
    %3679 = vmatpush1.bf16.xpose.msra.mxu0 0
    %3680 = vmatprep.subr.bf16.mxu0 0
    %3681 = vmatpush1.bf16.xpose.msra.mxu0 0
    %3682 = vmatprep.subr.bf16.mxu0 0
    %3683 = vmatpush1.bf16.xpose.msra.mxu0 0
    %3684 = vmatprep.subr.bf16.mxu0 0
    %3685 = vmatpush1.bf16.xpose.msra.mxu0 0
    %3686 = vmatprep.subr.bf16.mxu0 0
    %3687 = vmatpush1.bf16.xpose.msra.mxu0 0
    %3688 = vmatprep.mubr.bf16.mxu0 0
    %3689 = vmatmul.mubr.bf16.gmra.mrb[0].mxu0 %v3645
    %v3690 = vpop.f32.mrb[0].mxu0
    %v3691 = vadd.f32 0.0, %v3690
    %v3692 = vpop.f32.mrb[0].mxu0
    %v3693 = vpop.f32.mrb[0].mxu0
    %v3694 = vadd.f32 0.0, %v3693
    %v3695 = vpop.f32.mrb[0].mxu0
    %3696 = vmatprep.mubr.bf16.mxu0 0
    %3697 = vmatmul.mubr.bf16.gmra.mrb[0].mxu0 %v3648
    %v3698 = vpop.f32.mrb[0].mxu0
    %v3699 = vadd.f32 0.0, %v3698
    %v3700 = vpop.f32.mrb[0].mxu0
    %v3701 = vpop.f32.mrb[0].mxu0
    %v3702 = vpop.f32.mrb[0].mxu0
    %3703 = vdwg.mxu0
    %v3704 = vmul.f32 %v3691, 0.35355338
    %v3705 = vmul.f32 %v3694, 0.35355338
    %v3706 = vmul.f32 %v3699, 0.35355338
    %v3707 = vsel %vm428, %v3704, -inf
    %3708 = vmax.xlane.f32.xlu0 %v3707
    %v3709 = vpop.xlane.xlu0 %3708
    %v3710 = vsel %vm428, %v3705, -inf
    %3711 = vmax.xlane.f32.xlu0 %v3710
    %v3712 = vpop.xlane.xlu0 %3711
    %v3713 = vsel %vm435, %v3706, -inf
    %3714 = vmax.xlane.f32.xlu0 %v3713
    %v3715 = vpop.xlane.xlu0 %3714
    %v3716 = vsub.f32 %v3704, %v3709
    %v3717 = vsub.f32 %v3705, %v3712
    %v3718 = vsub.f32 %v3706, %v3715
    %v3719 = vmul.f32 %v3716, 1.442695
    %v3720 = vpow.pop %v3719
    %v3721 = vmul.f32 %v3717, 1.442695
    %v3722 = vpow.pop %v3721
    %v3723 = vmul.f32 %v3718, 1.442695
    %v3724 = vpow.pop %v3723
    %v3725 = vsel %vm428, %v3720, 0.0
    %3726 = vadd.xlane.f32.xlu0 %v3725
    %v3727 = vpop.xlane.xlu0 %3726
    %v3728 = vsel %vm428, %v3722, 0.0
    %3729 = vadd.xlane.f32.xlu0 %v3728
    %v3730 = vpop.xlane.xlu0 %3729
    %v3731 = vsel %vm435, %v3724, 0.0
    %3732 = vadd.xlane.f32.xlu0 %v3731
    %v3733 = vpop.xlane.xlu0 %3732
    %v3734 = vrcp.pop %v3727
    %v3735 = vmul.f32 %v3720, %v3734
    %v3736 = vrcp.pop %v3730
    %v3737 = vmul.f32 %v3722, %v3736
    %v3738 = vrcp.pop %v3733
    %v3739 = vmul.f32 %v3724, %v3738
    %s3740 = scalar_lea.vmem %s18, 336
    %3741 = vst.msk [vmem:[%s3740] sm:$0xff] %vm428, %v3735
    %3742 = vst.msk [vmem:[%s3740 + $0x8] sm:$0xff] %vm428, %v3737
    %3743 = vst.msk [vmem:[%s3740 + $0x10] sm:$0x1] %vm435, %v3739
    %v3744 = vpack.c.bf16 %v3737, %v3735
    %v3745 = vpack.c.bf16 %v3739, %v3739
    %3746 = vrot.lane.b32.xlu0 %v3275, 48
    %v3747 = vpop.permute.xlu0 %3746
    %3748 = vrot.lane.b32.xlu0 %v3276, 48
    %v3749 = vpop.permute.xlu0 %3748
    %v3752 = vsel %vm428, %v3744, 0
    %v3755 = vsel %vm428, %v3745, 0
    %v3758 = vand.u32 %v3749, %v480
    %3760 = vmatprep.subr.bf16.mxu0 0
    %3761 = vmatpush1.bf16.msra.mxu0 %v3747
    %3762 = vmatprep.subr.bf16.mxu0 0
    %3763 = vmatpush1.bf16.msra.mxu0 %v3758
    %3764 = vmatprep.subr.bf16.mxu0 0
    %3765 = vmatpush1.bf16.msra.mxu0 0
    %3766 = vmatprep.subr.bf16.mxu0 0
    %3767 = vmatpush1.bf16.msra.mxu0 0
    %3768 = vmatprep.subr.bf16.mxu0 0
    %3769 = vmatpush1.bf16.msra.mxu0 0
    %3770 = vmatprep.subr.bf16.mxu0 0
    %3771 = vmatpush1.bf16.msra.mxu0 0
    %3772 = vmatprep.subr.bf16.mxu0 0
    %3773 = vmatpush1.bf16.msra.mxu0 0
    %3774 = vmatprep.subr.bf16.mxu0 0
    %3775 = vmatpush1.bf16.msra.mxu0 0
    %3776 = vmatprep.subr.bf16.mxu0 0
    %3777 = vmatpush1.bf16.msra.mxu0 0
    %3778 = vmatprep.subr.bf16.mxu0 0
    %3779 = vmatpush1.bf16.msra.mxu0 0
    %3780 = vmatprep.subr.bf16.mxu0 0
    %3781 = vmatpush1.bf16.msra.mxu0 0
    %3782 = vmatprep.subr.bf16.mxu0 0
    %3783 = vmatpush1.bf16.msra.mxu0 0
    %3784 = vmatprep.subr.bf16.mxu0 0
    %3785 = vmatpush1.bf16.msra.mxu0 0
    %3786 = vmatprep.subr.bf16.mxu0 0
    %3787 = vmatpush1.bf16.msra.mxu0 0
    %3788 = vmatprep.subr.bf16.mxu0 0
    %3789 = vmatpush1.bf16.msra.mxu0 0
    %3790 = vmatprep.subr.bf16.mxu0 0
    %3791 = vmatpush1.bf16.msra.mxu0 0
    %3792 = vmatprep.mubr.bf16.mxu0 0
    %3793 = vmatmul.mubr.bf16.gmra.mrb[0].mxu0 %v3752
    %v3794 = vpop.f32.mrb[0].mxu0
    %v3795 = vadd.f32 0.0, %v3794
    %v3796 = vpop.f32.mrb[0].mxu0
    %v3797 = vpop.f32.mrb[0].mxu0
    %v3798 = vadd.f32 0.0, %v3797
    %v3799 = vpop.f32.mrb[0].mxu0
    %3800 = vmatprep.mubr.bf16.mxu0 0
    %3801 = vmatmul.mubr.bf16.gmra.mrb[0].mxu0 %v3755
    %v3802 = vpop.f32.mrb[0].mxu0
    %v3803 = vadd.f32 0.0, %v3802
    %v3804 = vpop.f32.mrb[0].mxu0
    %v3805 = vpop.f32.mrb[0].mxu0
    %v3806 = vpop.f32.mrb[0].mxu0
    %3807 = vdwg.mxu0
    %3811 = vrot.lane.b32.xlu0 %v3795, 16
    %v3812 = vpop.permute.xlu0 %3811
    %3813 = vrot.lane.b32.xlu0 %v3798, 16
    %v3814 = vpop.permute.xlu0 %3813
    %3815 = vrot.lane.b32.xlu0 %v3803, 16
    %v3816 = vpop.permute.xlu0 %3815
    %3820 = vst.msk [vmem:[%s1288] sm:$0xff] %vm909, %v3812
    %3821 = vst.msk [vmem:[%s1288 + $0x8] sm:$0xff] %vm909, %v3814
    %3822 = vst.msk [vmem:[%s1288 + $0x10] sm:$0x1] %vm912, %v3816
    %3823 = vrot.lane.b32.xlu0 %v3275, 104
    %v3824 = vpop.permute.xlu0 %3823
    %3825 = vrot.lane.b32.xlu0 %v3276, 104
    %v3826 = vpop.permute.xlu0 %3825
    %3827 = vrot.lane.b32.xlu0 %v3275, 72
    %v3828 = vpop.permute.xlu0 %3827
    %3829 = vrot.lane.b32.xlu0 %v3276, 72
    %v3830 = vpop.permute.xlu0 %3829
    %v3832 = vsel %vm364, %v3824, 0
    %v3835 = vsel %vm364, %v3826, 0
    %v3838 = vsel %vm364, %v3828, 0
    %v3841 = vsel %vm364, %v3830, 0
    %3843 = vmatprep.subr.bf16.mxu0 0
    %3844 = vmatpush1.bf16.xpose.msra.mxu0 %v3838
    %3845 = vmatprep.subr.bf16.mxu0 0
    %3846 = vmatpush1.bf16.xpose.msra.mxu0 %v3841
    %3847 = vmatprep.subr.bf16.mxu0 0
    %3848 = vmatpush1.bf16.xpose.msra.mxu0 0
    %3849 = vmatprep.subr.bf16.mxu0 0
    %3850 = vmatpush1.bf16.xpose.msra.mxu0 0
    %3851 = vmatprep.subr.bf16.mxu0 0
    %3852 = vmatpush1.bf16.xpose.msra.mxu0 0
    %3853 = vmatprep.subr.bf16.mxu0 0
    %3854 = vmatpush1.bf16.xpose.msra.mxu0 0
    %3855 = vmatprep.subr.bf16.mxu0 0
    %3856 = vmatpush1.bf16.xpose.msra.mxu0 0
    %3857 = vmatprep.subr.bf16.mxu0 0
    %3858 = vmatpush1.bf16.xpose.msra.mxu0 0
    %3859 = vmatprep.subr.bf16.mxu0 0
    %3860 = vmatpush1.bf16.xpose.msra.mxu0 0
    %3861 = vmatprep.subr.bf16.mxu0 0
    %3862 = vmatpush1.bf16.xpose.msra.mxu0 0
    %3863 = vmatprep.subr.bf16.mxu0 0
    %3864 = vmatpush1.bf16.xpose.msra.mxu0 0
    %3865 = vmatprep.subr.bf16.mxu0 0
    %3866 = vmatpush1.bf16.xpose.msra.mxu0 0
    %3867 = vmatprep.subr.bf16.mxu0 0
    %3868 = vmatpush1.bf16.xpose.msra.mxu0 0
    %3869 = vmatprep.subr.bf16.mxu0 0
    %3870 = vmatpush1.bf16.xpose.msra.mxu0 0
    %3871 = vmatprep.subr.bf16.mxu0 0
    %3872 = vmatpush1.bf16.xpose.msra.mxu0 0
    %3873 = vmatprep.subr.bf16.mxu0 0
    %3874 = vmatpush1.bf16.xpose.msra.mxu0 0
    %3875 = vmatprep.mubr.bf16.mxu0 0
    %3876 = vmatmul.mubr.bf16.gmra.mrb[0].mxu0 %v3832
    %v3877 = vpop.f32.mrb[0].mxu0
    %v3878 = vadd.f32 0.0, %v3877
    %v3879 = vpop.f32.mrb[0].mxu0
    %v3880 = vpop.f32.mrb[0].mxu0
    %v3881 = vadd.f32 0.0, %v3880
    %v3882 = vpop.f32.mrb[0].mxu0
    %3883 = vmatprep.mubr.bf16.mxu0 0
    %3884 = vmatmul.mubr.bf16.gmra.mrb[0].mxu0 %v3835
    %v3885 = vpop.f32.mrb[0].mxu0
    %v3886 = vadd.f32 0.0, %v3885
    %v3887 = vpop.f32.mrb[0].mxu0
    %v3888 = vpop.f32.mrb[0].mxu0
    %v3889 = vpop.f32.mrb[0].mxu0
    %3890 = vdwg.mxu0
    %v3891 = vmul.f32 %v3878, 0.35355338
    %v3892 = vmul.f32 %v3881, 0.35355338
    %v3893 = vmul.f32 %v3886, 0.35355338
    %v3894 = vsel %vm428, %v3891, -inf
    %3895 = vmax.xlane.f32.xlu0 %v3894
    %v3896 = vpop.xlane.xlu0 %3895
    %v3897 = vsel %vm428, %v3892, -inf
    %3898 = vmax.xlane.f32.xlu0 %v3897
    %v3899 = vpop.xlane.xlu0 %3898
    %v3900 = vsel %vm435, %v3893, -inf
    %3901 = vmax.xlane.f32.xlu0 %v3900
    %v3902 = vpop.xlane.xlu0 %3901
    %v3903 = vsub.f32 %v3891, %v3896
    %v3904 = vsub.f32 %v3892, %v3899
    %v3905 = vsub.f32 %v3893, %v3902
    %v3906 = vmul.f32 %v3903, 1.442695
    %v3907 = vpow.pop %v3906
    %v3908 = vmul.f32 %v3904, 1.442695
    %v3909 = vpow.pop %v3908
    %v3910 = vmul.f32 %v3905, 1.442695
    %v3911 = vpow.pop %v3910
    %v3912 = vsel %vm428, %v3907, 0.0
    %3913 = vadd.xlane.f32.xlu0 %v3912
    %v3914 = vpop.xlane.xlu0 %3913
    %v3915 = vsel %vm428, %v3909, 0.0
    %3916 = vadd.xlane.f32.xlu0 %v3915
    %v3917 = vpop.xlane.xlu0 %3916
    %v3918 = vsel %vm435, %v3911, 0.0
    %3919 = vadd.xlane.f32.xlu0 %v3918
    %v3920 = vpop.xlane.xlu0 %3919
    %v3921 = vrcp.pop %v3914
    %v3922 = vmul.f32 %v3907, %v3921
    %v3923 = vrcp.pop %v3917
    %v3924 = vmul.f32 %v3909, %v3923
    %v3925 = vrcp.pop %v3920
    %v3926 = vmul.f32 %v3911, %v3925
    %s3927 = scalar_lea.vmem %s18, 360
    %3928 = vst.msk [vmem:[%s3927] sm:$0xff] %vm428, %v3922
    %3929 = vst.msk [vmem:[%s3927 + $0x8] sm:$0xff] %vm428, %v3924
    %3930 = vst.msk [vmem:[%s3927 + $0x10] sm:$0x1] %vm435, %v3926
    %v3931 = vpack.c.bf16 %v3924, %v3922
    %v3932 = vpack.c.bf16 %v3926, %v3926
    %3933 = vrot.lane.b32.xlu0 %v3275, 40
    %v3934 = vpop.permute.xlu0 %3933
    %3935 = vrot.lane.b32.xlu0 %v3276, 40
    %v3936 = vpop.permute.xlu0 %3935
    %v3939 = vsel %vm428, %v3931, 0
    %v3942 = vsel %vm428, %v3932, 0
    %v3945 = vand.u32 %v3936, %v480
    %3947 = vmatprep.subr.bf16.mxu0 0
    %3948 = vmatpush1.bf16.msra.mxu0 %v3934
    %3949 = vmatprep.subr.bf16.mxu0 0
    %3950 = vmatpush1.bf16.msra.mxu0 %v3945
    %3951 = vmatprep.subr.bf16.mxu0 0
    %3952 = vmatpush1.bf16.msra.mxu0 0
    %3953 = vmatprep.subr.bf16.mxu0 0
    %3954 = vmatpush1.bf16.msra.mxu0 0
    %3955 = vmatprep.subr.bf16.mxu0 0
    %3956 = vmatpush1.bf16.msra.mxu0 0
    %3957 = vmatprep.subr.bf16.mxu0 0
    %3958 = vmatpush1.bf16.msra.mxu0 0
    %3959 = vmatprep.subr.bf16.mxu0 0
    %3960 = vmatpush1.bf16.msra.mxu0 0
    %3961 = vmatprep.subr.bf16.mxu0 0
    %3962 = vmatpush1.bf16.msra.mxu0 0
    %3963 = vmatprep.subr.bf16.mxu0 0
    %3964 = vmatpush1.bf16.msra.mxu0 0
    %3965 = vmatprep.subr.bf16.mxu0 0
    %3966 = vmatpush1.bf16.msra.mxu0 0
    %3967 = vmatprep.subr.bf16.mxu0 0
    %3968 = vmatpush1.bf16.msra.mxu0 0
    %3969 = vmatprep.subr.bf16.mxu0 0
    %3970 = vmatpush1.bf16.msra.mxu0 0
    %3971 = vmatprep.subr.bf16.mxu0 0
    %3972 = vmatpush1.bf16.msra.mxu0 0
    %3973 = vmatprep.subr.bf16.mxu0 0
    %3974 = vmatpush1.bf16.msra.mxu0 0
    %3975 = vmatprep.subr.bf16.mxu0 0
    %3976 = vmatpush1.bf16.msra.mxu0 0
    %3977 = vmatprep.subr.bf16.mxu0 0
    %3978 = vmatpush1.bf16.msra.mxu0 0
    %3979 = vmatprep.mubr.bf16.mxu0 0
    %3980 = vmatmul.mubr.bf16.gmra.mrb[0].mxu0 %v3939
    %v3981 = vpop.f32.mrb[0].mxu0
    %v3982 = vadd.f32 0.0, %v3981
    %v3983 = vpop.f32.mrb[0].mxu0
    %v3984 = vpop.f32.mrb[0].mxu0
    %v3985 = vadd.f32 0.0, %v3984
    %v3986 = vpop.f32.mrb[0].mxu0
    %3987 = vmatprep.mubr.bf16.mxu0 0
    %3988 = vmatmul.mubr.bf16.gmra.mrb[0].mxu0 %v3942
    %v3989 = vpop.f32.mrb[0].mxu0
    %v3990 = vadd.f32 0.0, %v3989
    %v3991 = vpop.f32.mrb[0].mxu0
    %v3992 = vpop.f32.mrb[0].mxu0
    %v3993 = vpop.f32.mrb[0].mxu0
    %3994 = vdwg.mxu0
    %3998 = vrot.lane.b32.xlu0 %v3982, 24
    %v3999 = vpop.permute.xlu0 %3998
    %4000 = vrot.lane.b32.xlu0 %v3985, 24
    %v4001 = vpop.permute.xlu0 %4000
    %4002 = vrot.lane.b32.xlu0 %v3990, 24
    %v4003 = vpop.permute.xlu0 %4002
    %4007 = vst.msk [vmem:[%s1288] sm:$0xff] %vm1098, %v3999
    %4008 = vst.msk [vmem:[%s1288 + $0x8] sm:$0xff] %vm1098, %v4001
    %4009 = vst.msk [vmem:[%s1288 + $0x10] sm:$0x1] %vm1101, %v4003
    %v4010 = vld [vmem:[#allocation2] sm:$0xff]
    %v4011 = vld [vmem:[#allocation2 + $0x8] sm:$0xff]
    %v4012 = vld [vmem:[#allocation2 + $0x10] sm:$0x1]
    %v4013 = vld [vmem:[%s1288] sm:$0xff]
    %v4014 = vld [vmem:[%s1288 + $0x8] sm:$0xff]
    %v4015 = vld [vmem:[%s1288 + $0x10] sm:$0x1]
    %v4019 = vrot.slane %v4013, 7
    %v4020 = vrot.slane %v4014, 7
    %v4021 = vsel %vm163, %v4019, %v4020
    %v4022 = vrot.slane %v4015, 7
    %v4023 = vsel %vm163, %v4020, %v4022
    %v4027 = vsel %vm163, %v4012, %v4019
    %s4028 = scalar_lea.vmem %s8, 32
    %v4029 = vld [vmem:[%s4028] sm:$0xff]
    %v4030 = vld [vmem:[%s4028 + $0x8] sm:$0xff]
    %v4031 = vld [vmem:[%s4028 + $0x10] sm:$0xff]
    %v4032 = vld [vmem:[%s4028 + $0x18] sm:$0xff]
    %v4033 = vpack.c.bf16 %v4011, %v4010
    %v4034 = vpack.c.bf16 %v4021, %v4027
    %v4035 = vpack.c.bf16 %v4023, %v4023
    %v4036 = vpack.c.bf16 %v4030, %v4029
    %v4037 = vpack.c.bf16 %v4032, %v4031
    %v4039 = vsel %vm189, %v4033, 0
    %v4042 = vsel %vm189, %v4034, 0
    %v4045 = vsel %vm189, %v4035, 0
    %4047 = vmatprep.subr.bf16.mxu0 0
    %4048 = vmatpush1.bf16.msra.mxu0 %v4036
    %4049 = vmatprep.subr.bf16.mxu0 0
    %4050 = vmatpush1.bf16.msra.mxu0 %v4037
    %4051 = vmatprep.subr.bf16.mxu0 0
    %4052 = vmatpush1.bf16.msra.mxu0 0
    %4053 = vmatprep.subr.bf16.mxu0 0
    %4054 = vmatpush1.bf16.msra.mxu0 0
    %4055 = vmatprep.subr.bf16.mxu0 0
    %4056 = vmatpush1.bf16.msra.mxu0 0
    %4057 = vmatprep.subr.bf16.mxu0 0
    %4058 = vmatpush1.bf16.msra.mxu0 0
    %4059 = vmatprep.subr.bf16.mxu0 0
    %4060 = vmatpush1.bf16.msra.mxu0 0
    %4061 = vmatprep.subr.bf16.mxu0 0
    %4062 = vmatpush1.bf16.msra.mxu0 0
    %4063 = vmatprep.subr.bf16.mxu0 0
    %4064 = vmatpush1.bf16.msra.mxu0 0
    %4065 = vmatprep.subr.bf16.mxu0 0
    %4066 = vmatpush1.bf16.msra.mxu0 0
    %4067 = vmatprep.subr.bf16.mxu0 0
    %4068 = vmatpush1.bf16.msra.mxu0 0
    %4069 = vmatprep.subr.bf16.mxu0 0
    %4070 = vmatpush1.bf16.msra.mxu0 0
    %4071 = vmatprep.subr.bf16.mxu0 0
    %4072 = vmatpush1.bf16.msra.mxu0 0
    %4073 = vmatprep.subr.bf16.mxu0 0
    %4074 = vmatpush1.bf16.msra.mxu0 0
    %4075 = vmatprep.subr.bf16.mxu0 0
    %4076 = vmatpush1.bf16.msra.mxu0 0
    %4077 = vmatprep.subr.bf16.mxu0 0
    %4078 = vmatpush1.bf16.msra.mxu0 0
    %4079 = vmatprep.mubr.bf16.mxu0 0
    %4080 = vmatmul.mubr.bf16.gmra.mrb[0].mxu0 %v4039
    %v4081 = vpop.f32.mrb[0].mxu0
    %v4082 = vadd.f32 0.0, %v4081
    %v4083 = vpop.f32.mrb[0].mxu0
    %v4084 = vpop.f32.mrb[0].mxu0
    %v4085 = vadd.f32 0.0, %v4084
    %v4086 = vpop.f32.mrb[0].mxu0
    %4087 = vmatprep.mubr.bf16.mxu0 0
    %4088 = vmatmul.mubr.bf16.gmra.mrb[0].mxu0 %v4042
    %v4089 = vpop.f32.mrb[0].mxu0
    %v4090 = vadd.f32 0.0, %v4089
    %v4091 = vpop.f32.mrb[0].mxu0
    %v4092 = vpop.f32.mrb[0].mxu0
    %v4093 = vadd.f32 0.0, %v4092
    %v4094 = vpop.f32.mrb[0].mxu0
    %4095 = vmatprep.mubr.bf16.mxu0 0
    %4096 = vmatmul.mubr.bf16.gmra.mrb[0].mxu0 %v4045
    %v4097 = vpop.f32.mrb[0].mxu0
    %v4098 = vadd.f32 0.0, %v4097
    %v4099 = vpop.f32.mrb[0].mxu0
    %v4100 = vpop.f32.mrb[0].mxu0
    %v4101 = vpop.f32.mrb[0].mxu0
    %4102 = vdwg.mxu0
    %v4103 = vadd.f32 %v2353, %v4082
    %v4104 = vadd.f32 %v2354, %v4085
    %v4105 = vadd.f32 %v2355, %v4090
    %v4106 = vadd.f32 %v2356, %v4093
    %v4107 = vadd.f32 %v2357, %v4098
    %s4108 = scalar_lea.vmem %s9, 1
    %v4109 = vld [vmem:[%s4108] sm:$0x1]
    %v4111 = vlaneseq
    %v4112 = vshrl.u32 %v4111, 7
    %v4113 = vsub.s32 0, %v4112
    %v4114 = vrot.slane %v4109, %v4113
    %v4116 = vadd.f32 %v4103, %v4114
    %v4117 = vadd.f32 %v4104, %v4114
    %v4118 = vadd.f32 %v4105, %v4114
    %v4119 = vadd.f32 %v4106, %v4114
    %v4120 = vadd.f32 %v4107, %v4114
    %v4121 = vsel %vm189, %v4116, 0.0
    %4122 = vadd.xlane.f32.xlu0 %v4121
    %v4123 = vpop.xlane.xlu0 %4122
    %v4124 = vsel %vm189, %v4117, 0.0
    %4125 = vadd.xlane.f32.xlu0 %v4124
    %v4126 = vpop.xlane.xlu0 %4125
    %v4127 = vsel %vm189, %v4118, 0.0
    %4128 = vadd.xlane.f32.xlu0 %v4127
    %v4129 = vpop.xlane.xlu0 %4128
    %v4130 = vsel %vm189, %v4119, 0.0
    %4131 = vadd.xlane.f32.xlu0 %v4130
    %v4132 = vpop.xlane.xlu0 %4131
    %v4133 = vsel %vm202, %v4120, 0.0
    %4134 = vadd.xlane.f32.xlu0 %v4133
    %v4135 = vpop.xlane.xlu0 %4134
    %v4136 = vmul.f32 %v4123, %v206
    %v4137 = vmul.f32 %v4126, %v206
    %v4138 = vmul.f32 %v4129, %v206
    %v4139 = vmul.f32 %v4132, %v206
    %v4140 = vmul.f32 %v4135, %v206
    %v4141 = vsub.f32 %v4116, %v4136
    %v4142 = vsub.f32 %v4117, %v4137
    %v4143 = vsub.f32 %v4118, %v4138
    %v4144 = vsub.f32 %v4119, %v4139
    %v4145 = vsub.f32 %v4120, %v4140
    %v4146 = vmul.f32 %v4141, %v4141
    %v4147 = vmul.f32 %v4142, %v4142
    %v4148 = vmul.f32 %v4143, %v4143
    %v4149 = vmul.f32 %v4144, %v4144
    %v4150 = vmul.f32 %v4145, %v4145
    %v4151 = vsel %vm189, %v4146, 0.0
    %4152 = vadd.xlane.f32.xlu0 %v4151
    %v4153 = vpop.xlane.xlu0 %4152
    %v4154 = vsel %vm189, %v4147, 0.0
    %4155 = vadd.xlane.f32.xlu0 %v4154
    %v4156 = vpop.xlane.xlu0 %4155
    %v4157 = vsel %vm189, %v4148, 0.0
    %4158 = vadd.xlane.f32.xlu0 %v4157
    %v4159 = vpop.xlane.xlu0 %4158
    %v4160 = vsel %vm189, %v4149, 0.0
    %4161 = vadd.xlane.f32.xlu0 %v4160
    %v4162 = vpop.xlane.xlu0 %4161
    %v4163 = vsel %vm202, %v4150, 0.0
    %4164 = vadd.xlane.f32.xlu0 %v4163
    %v4165 = vpop.xlane.xlu0 %4164
    %v4166 = vmul.f32 %v4153, %v206
    %v4167 = vmul.f32 %v4156, %v206
    %v4168 = vmul.f32 %v4159, %v206
    %v4169 = vmul.f32 %v4162, %v206
    %v4170 = vmul.f32 %v4165, %v206
    %v4171 = vadd.f32 %v4166, 1e-06
    %v4172 = vadd.f32 %v4167, 1e-06
    %v4173 = vadd.f32 %v4168, 1e-06
    %v4174 = vadd.f32 %v4169, 1e-06
    %v4175 = vadd.f32 %v4170, 1e-06
    %v4176 = vrsqrt.pop %v4171
    %v4177 = vrsqrt.pop %v4172
    %v4178 = vrsqrt.pop %v4173
    %v4179 = vrsqrt.pop %v4174
    %v4180 = vrsqrt.pop %v4175
    %v4181 = vmul.f32 %v4141, %v4176
    %v4182 = vmul.f32 %v4142, %v4177
    %v4183 = vmul.f32 %v4143, %v4178
    %v4184 = vmul.f32 %v4144, %v4179
    %v4185 = vmul.f32 %v4145, %v4180
    %v4186 = vlaneseq
    %v4187 = vshrl.u32 %v4186, 7
    %v4188 = vsub.s32 2, %v4187
    %v4189 = vrot.slane %v2359, %v4188
    %v4190 = vmul.f32 %v4181, %v4189
    %v4191 = vmul.f32 %v4182, %v4189
    %v4192 = vmul.f32 %v4183, %v4189
    %v4193 = vmul.f32 %v4184, %v4189
    %v4194 = vmul.f32 %v4185, %v4189
    %v4195 = vlaneseq
    %v4196 = vshrl.u32 %v4195, 7
    %v4197 = vsub.s32 3, %v4196
    %v4198 = vrot.slane %v2359, %v4197
    %v4199 = vadd.f32 %v4190, %v4198
    %v4200 = vadd.f32 %v4191, %v4198
    %v4201 = vadd.f32 %v4192, %v4198
    %v4202 = vadd.f32 %v4193, %v4198
    %v4203 = vadd.f32 %v4194, %v4198
    %s4204 = scalar_lea.vmem %s10, 32
    %v4205 = vld [vmem:[%s4204] sm:$0xff]
    %v4206 = vld [vmem:[%s4204 + $0x8] sm:$0xff]
    %v4207 = vld [vmem:[%s4204 + $0x10] sm:$0xff]
    %v4208 = vld [vmem:[%s4204 + $0x18] sm:$0xff]
    %v4209 = vpack.c.bf16 %v4200, %v4199
    %v4210 = vpack.c.bf16 %v4202, %v4201
    %v4211 = vpack.c.bf16 %v4203, %v4203
    %v4212 = vpack.c.bf16 %v4206, %v4205
    %v4213 = vpack.c.bf16 %v4208, %v4207
    %s4214 = scalar_lea.vmem %s11, 1
    %v4215 = vld [vmem:[%s4214] sm:$0x1]
    %v4217 = vlaneseq
    %v4218 = vshrl.u32 %v4217, 7
    %v4219 = vsub.s32 0, %v4218
    %v4220 = vrot.slane %v4215, %v4219
    %v4223 = vsel %vm189, %v4209, 0
    %v4226 = vsel %vm189, %v4210, 0
    %v4229 = vsel %vm189, %v4211, 0
    %4231 = vmatprep.subr.bf16.mxu0 0
    %4232 = vmatpush1.bf16.msra.mxu0 %v4212
    %4233 = vmatprep.subr.bf16.mxu0 0
    %4234 = vmatpush1.bf16.msra.mxu0 %v4213
    %4235 = vmatprep.subr.bf16.mxu0 0
    %4236 = vmatpush1.bf16.msra.mxu0 0
    %4237 = vmatprep.subr.bf16.mxu0 0
    %4238 = vmatpush1.bf16.msra.mxu0 0
    %4239 = vmatprep.subr.bf16.mxu0 0
    %4240 = vmatpush1.bf16.msra.mxu0 0
    %4241 = vmatprep.subr.bf16.mxu0 0
    %4242 = vmatpush1.bf16.msra.mxu0 0
    %4243 = vmatprep.subr.bf16.mxu0 0
    %4244 = vmatpush1.bf16.msra.mxu0 0
    %4245 = vmatprep.subr.bf16.mxu0 0
    %4246 = vmatpush1.bf16.msra.mxu0 0
    %4247 = vmatprep.subr.bf16.mxu0 0
    %4248 = vmatpush1.bf16.msra.mxu0 0
    %4249 = vmatprep.subr.bf16.mxu0 0
    %4250 = vmatpush1.bf16.msra.mxu0 0
    %4251 = vmatprep.subr.bf16.mxu0 0
    %4252 = vmatpush1.bf16.msra.mxu0 0
    %4253 = vmatprep.subr.bf16.mxu0 0
    %4254 = vmatpush1.bf16.msra.mxu0 0
    %4255 = vmatprep.subr.bf16.mxu0 0
    %4256 = vmatpush1.bf16.msra.mxu0 0
    %4257 = vmatprep.subr.bf16.mxu0 0
    %4258 = vmatpush1.bf16.msra.mxu0 0
    %4259 = vmatprep.subr.bf16.mxu0 0
    %4260 = vmatpush1.bf16.msra.mxu0 0
    %4261 = vmatprep.subr.bf16.mxu0 0
    %4262 = vmatpush1.bf16.msra.mxu0 0
    %4263 = vmatprep.mubr.bf16.mxu0 0
    %4264 = vmatmul.mubr.bf16.gmra.mrb[0].mxu0 %v4223
    %v4265 = vpop.f32.mrb[0].mxu0
    %v4266 = vadd.f32 %v4220, %v4265
    %v4267 = vpop.f32.mrb[0].mxu0
    %v4268 = vpop.f32.mrb[0].mxu0
    %v4269 = vadd.f32 %v4220, %v4268
    %v4270 = vpop.f32.mrb[0].mxu0
    %4271 = vmatprep.mubr.bf16.mxu0 0
    %4272 = vmatmul.mubr.bf16.gmra.mrb[0].mxu0 %v4226
    %v4273 = vpop.f32.mrb[0].mxu0
    %v4274 = vadd.f32 %v4220, %v4273
    %v4275 = vpop.f32.mrb[0].mxu0
    %v4276 = vpop.f32.mrb[0].mxu0
    %v4277 = vadd.f32 %v4220, %v4276
    %v4278 = vpop.f32.mrb[0].mxu0
    %4279 = vmatprep.mubr.bf16.mxu0 0
    %4280 = vmatmul.mubr.bf16.gmra.mrb[0].mxu0 %v4229
    %v4281 = vpop.f32.mrb[0].mxu0
    %v4282 = vadd.f32 %v4220, %v4281
    %v4283 = vpop.f32.mrb[0].mxu0
    %v4284 = vpop.f32.mrb[0].mxu0
    %v4285 = vpop.f32.mrb[0].mxu0
    %4286 = vdwg.mxu0
    %v4287 = vmul.f32 %v4266, 0.5
    %v4288 = vmul.f32 %v4269, 0.5
    %v4289 = vmul.f32 %v4274, 0.5
    %v4290 = vmul.f32 %v4277, 0.5
    %v4291 = vmul.f32 %v4282, 0.5
    %v4292 = vmul.f32 %v4266, 0.70710677
    %v4293 = vmul.f32 %v4269, 0.70710677
    %v4294 = vmul.f32 %v4274, 0.70710677
    %v4295 = vmul.f32 %v4277, 0.70710677
    %v4296 = vmul.f32 %v4282, 0.70710677
    %v4297 = vand.u32 2147483647, %v4292
    %v4298 = vand.u32 2147483647, %v4293
    %v4299 = vand.u32 2147483647, %v4294
    %v4300 = vand.u32 2147483647, %v4295
    %v4301 = vand.u32 2147483647, %v4296
    %v4302 = vmul.f32 %v4297, 0.3275911
    %v4303 = vmul.f32 %v4298, 0.3275911
    %v4304 = vmul.f32 %v4299, 0.3275911
    %v4305 = vmul.f32 %v4300, 0.3275911
    %v4306 = vmul.f32 %v4301, 0.3275911
    %v4307 = vadd.f32 %v4302, 1.0
    %v4308 = vadd.f32 %v4303, 1.0
    %v4309 = vadd.f32 %v4304, 1.0
    %v4310 = vadd.f32 %v4305, 1.0
    %v4311 = vadd.f32 %v4306, 1.0
    %v4312 = vrcp.pop %v4307
    %v4313 = vmul.f32 1.0, %v4312
    %v4314 = vrcp.pop %v4308
    %v4315 = vmul.f32 1.0, %v4314
    %v4316 = vrcp.pop %v4309
    %v4317 = vmul.f32 1.0, %v4316
    %v4318 = vrcp.pop %v4310
    %v4319 = vmul.f32 1.0, %v4318
    %v4320 = vrcp.pop %v4311
    %v4321 = vmul.f32 1.0, %v4320
    %v4322 = vmul.f32 %v4313, 1.0614054
    %v4323 = vmul.f32 %v4315, 1.0614054
    %v4324 = vmul.f32 %v4317, 1.0614054
    %v4325 = vmul.f32 %v4319, 1.0614054
    %v4326 = vmul.f32 %v4321, 1.0614054
    %v4327 = vadd.f32 %v4322, -1.4531521
    %v4328 = vadd.f32 %v4323, -1.4531521
    %v4329 = vadd.f32 %v4324, -1.4531521
    %v4330 = vadd.f32 %v4325, -1.4531521
    %v4331 = vadd.f32 %v4326, -1.4531521
    %v4332 = vmul.f32 %v4327, %v4313
    %v4333 = vmul.f32 %v4328, %v4315
    %v4334 = vmul.f32 %v4329, %v4317
    %v4335 = vmul.f32 %v4330, %v4319
    %v4336 = vmul.f32 %v4331, %v4321
    %v4337 = vadd.f32 %v4332, 1.4214138
    %v4338 = vadd.f32 %v4333, 1.4214138
    %v4339 = vadd.f32 %v4334, 1.4214138
    %v4340 = vadd.f32 %v4335, 1.4214138
    %v4341 = vadd.f32 %v4336, 1.4214138
    %v4342 = vmul.f32 %v4337, %v4313
    %v4343 = vmul.f32 %v4338, %v4315
    %v4344 = vmul.f32 %v4339, %v4317
    %v4345 = vmul.f32 %v4340, %v4319
    %v4346 = vmul.f32 %v4341, %v4321
    %v4347 = vadd.f32 %v4342, -0.28449672
    %v4348 = vadd.f32 %v4343, -0.28449672
    %v4349 = vadd.f32 %v4344, -0.28449672
    %v4350 = vadd.f32 %v4345, -0.28449672
    %v4351 = vadd.f32 %v4346, -0.28449672
    %v4352 = vmul.f32 %v4347, %v4313
    %v4353 = vmul.f32 %v4348, %v4315
    %v4354 = vmul.f32 %v4349, %v4317
    %v4355 = vmul.f32 %v4350, %v4319
    %v4356 = vmul.f32 %v4351, %v4321
    %v4357 = vadd.f32 %v4352, 0.2548296
    %v4358 = vadd.f32 %v4353, 0.2548296
    %v4359 = vadd.f32 %v4354, 0.2548296
    %v4360 = vadd.f32 %v4355, 0.2548296
    %v4361 = vadd.f32 %v4356, 0.2548296
    %v4362 = vmul.f32 %v4357, %v4313
    %v4363 = vmul.f32 %v4358, %v4315
    %v4364 = vmul.f32 %v4359, %v4317
    %v4365 = vmul.f32 %v4360, %v4319
    %v4366 = vmul.f32 %v4361, %v4321
    %v4367 = vsub.f32 0.0, %v4297
    %v4368 = vsub.f32 0.0, %v4298
    %v4369 = vsub.f32 0.0, %v4299
    %v4370 = vsub.f32 0.0, %v4300
    %v4371 = vsub.f32 0.0, %v4301
    %v4372 = vmul.f32 %v4367, %v4297
    %v4373 = vmul.f32 %v4368, %v4298
    %v4374 = vmul.f32 %v4369, %v4299
    %v4375 = vmul.f32 %v4370, %v4300
    %v4376 = vmul.f32 %v4371, %v4301
    %v4377 = vmul.f32 %v4372, 1.442695
    %v4378 = vpow.pop %v4377
    %v4379 = vmul.f32 %v4373, 1.442695
    %v4380 = vpow.pop %v4379
    %v4381 = vmul.f32 %v4374, 1.442695
    %v4382 = vpow.pop %v4381
    %v4383 = vmul.f32 %v4375, 1.442695
    %v4384 = vpow.pop %v4383
    %v4385 = vmul.f32 %v4376, 1.442695
    %v4386 = vpow.pop %v4385
    %v4387 = vmul.f32 %v4362, %v4378
    %v4388 = vmul.f32 %v4363, %v4380
    %v4389 = vmul.f32 %v4364, %v4382
    %v4390 = vmul.f32 %v4365, %v4384
    %v4391 = vmul.f32 %v4366, %v4386
    %v4392 = vsub.f32 1.0, %v4387
    %v4393 = vsub.f32 1.0, %v4388
    %v4394 = vsub.f32 1.0, %v4389
    %v4395 = vsub.f32 1.0, %v4390
    %v4396 = vsub.f32 1.0, %v4391
    %vm4397 = vcmp.ge.f32.partialorder %v4292, 0.0
    %vm4398 = vcmp.ge.f32.partialorder %v4293, 0.0
    %vm4399 = vcmp.ge.f32.partialorder %v4294, 0.0
    %vm4400 = vcmp.ge.f32.partialorder %v4295, 0.0
    %vm4401 = vcmp.ge.f32.partialorder %v4296, 0.0
    %v4402 = vsub.f32 0.0, %v4392
    %v4403 = vsub.f32 0.0, %v4393
    %v4404 = vsub.f32 0.0, %v4394
    %v4405 = vsub.f32 0.0, %v4395
    %v4406 = vsub.f32 0.0, %v4396
    %v4407 = vsel %vm4397, %v4392, %v4402
    %v4408 = vsel %vm4398, %v4393, %v4403
    %v4409 = vsel %vm4399, %v4394, %v4404
    %v4410 = vsel %vm4400, %v4395, %v4405
    %v4411 = vsel %vm4401, %v4396, %v4406
    %v4412 = vadd.f32 %v4407, 1.0
    %v4413 = vadd.f32 %v4408, 1.0
    %v4414 = vadd.f32 %v4409, 1.0
    %v4415 = vadd.f32 %v4410, 1.0
    %v4416 = vadd.f32 %v4411, 1.0
    %v4417 = vmul.f32 %v4287, %v4412
    %v4418 = vmul.f32 %v4288, %v4413
    %v4419 = vmul.f32 %v4289, %v4414
    %v4420 = vmul.f32 %v4290, %v4415
    %v4421 = vmul.f32 %v4291, %v4416
    %s4422 = scalar_lea.vmem %s12, 64
    %v4423 = vld [vmem:[%s4422] sm:$0xff]
    %v4424 = vld [vmem:[%s4422 + $0x8] sm:$0xff]
    %v4425 = vld [vmem:[%s4422 + $0x10] sm:$0xff]
    %v4426 = vld [vmem:[%s4422 + $0x18] sm:$0xff]
    %v4427 = vld [vmem:[%s4422 + $0x20] sm:$0xff]
    %v4428 = vld [vmem:[%s4422 + $0x28] sm:$0xff]
    %v4429 = vld [vmem:[%s4422 + $0x30] sm:$0xff]
    %v4430 = vld [vmem:[%s4422 + $0x38] sm:$0xff]
    %v4431 = vpack.c.bf16 %v4418, %v4417
    %v4432 = vpack.c.bf16 %v4420, %v4419
    %v4433 = vpack.c.bf16 %v4421, %v4421
    %v4434 = vpack.c.bf16 %v4424, %v4423
    %v4435 = vpack.c.bf16 %v4426, %v4425
    %v4436 = vpack.c.bf16 %v4428, %v4427
    %v4437 = vpack.c.bf16 %v4430, %v4429
    %v4439 = vsel %vm85, %v4431, 0
    %v4442 = vsel %vm85, %v4432, 0
    %v4445 = vsel %vm85, %v4433, 0
    %4447 = vmatprep.subr.bf16.mxu0 0
    %4448 = vmatpush1.bf16.msra.mxu0 %v4434
    %4449 = vmatprep.subr.bf16.mxu0 0
    %4450 = vmatpush1.bf16.msra.mxu0 %v4435
    %4451 = vmatprep.subr.bf16.mxu0 0
    %4452 = vmatpush1.bf16.msra.mxu0 %v4436
    %4453 = vmatprep.subr.bf16.mxu0 0
    %4454 = vmatpush1.bf16.msra.mxu0 %v4437
    %4455 = vmatprep.subr.bf16.mxu0 0
    %4456 = vmatpush1.bf16.msra.mxu0 0
    %4457 = vmatprep.subr.bf16.mxu0 0
    %4458 = vmatpush1.bf16.msra.mxu0 0
    %4459 = vmatprep.subr.bf16.mxu0 0
    %4460 = vmatpush1.bf16.msra.mxu0 0
    %4461 = vmatprep.subr.bf16.mxu0 0
    %4462 = vmatpush1.bf16.msra.mxu0 0
    %4463 = vmatprep.subr.bf16.mxu0 0
    %4464 = vmatpush1.bf16.msra.mxu0 0
    %4465 = vmatprep.subr.bf16.mxu0 0
    %4466 = vmatpush1.bf16.msra.mxu0 0
    %4467 = vmatprep.subr.bf16.mxu0 0
    %4468 = vmatpush1.bf16.msra.mxu0 0
    %4469 = vmatprep.subr.bf16.mxu0 0
    %4470 = vmatpush1.bf16.msra.mxu0 0
    %4471 = vmatprep.subr.bf16.mxu0 0
    %4472 = vmatpush1.bf16.msra.mxu0 0
    %4473 = vmatprep.subr.bf16.mxu0 0
    %4474 = vmatpush1.bf16.msra.mxu0 0
    %4475 = vmatprep.subr.bf16.mxu0 0
    %4476 = vmatpush1.bf16.msra.mxu0 0
    %4477 = vmatprep.subr.bf16.mxu0 0
    %4478 = vmatpush1.bf16.msra.mxu0 0
    %4479 = vmatprep.mubr.bf16.mxu0 0
    %4480 = vmatmul.mubr.bf16.gmra.mrb[0].mxu0 %v4439
    %v4481 = vpop.f32.mrb[0].mxu0
    %v4482 = vadd.f32 0.0, %v4481
    %v4483 = vpop.f32.mrb[0].mxu0
    %v4484 = vpop.f32.mrb[0].mxu0
    %v4485 = vpop.f32.mrb[0].mxu0
    %4486 = vmatprep.mubr.bf16.mxu0 0
    %4487 = vmatmul.mubr.bf16.gmra.mrb[0].mxu0 %v4442
    %v4488 = vpop.f32.mrb[0].mxu0
    %v4489 = vadd.f32 0.0, %v4488
    %v4490 = vpop.f32.mrb[0].mxu0
    %v4491 = vpop.f32.mrb[0].mxu0
    %v4492 = vpop.f32.mrb[0].mxu0
    %4493 = vmatprep.mubr.bf16.mxu0 0
    %4494 = vmatmul.mubr.bf16.gmra.mrb[0].mxu0 %v4445
    %v4495 = vpop.f32.mrb[0].mxu0
    %v4496 = vpop.f32.mrb[0].mxu0
    %v4497 = vpop.f32.mrb[0].mxu0
    %v4498 = vpop.f32.mrb[0].mxu0
    %4499 = vdwg.mxu0
    %v4500 = vadd.f32 %v4116, %v4482
    %v4501 = vadd.f32 %v4118, %v4489
    %s4502 = scalar_lea.vmem %s13, 1
    %v4503 = vld [vmem:[%s4502] sm:$0x1]
    %v4505 = vlaneseq
    %v4506 = vshrl.u32 %v4505, 7
    %v4507 = vsub.s32 0, %v4506
    %v4508 = vrot.slane %v4503, %v4507
    %v4510 = vadd.f32 %v4500, %v4508
    %v4511 = vadd.f32 %v4501, %v4508
    %v4512 = vsel %vm163, %v4510, %v4511
    %v4513 = vld [vmem:[%s14] sm:$0x1]
    %v4514 = vld [vmem:[%s14 + $0x1] sm:$0x1]
    %v4515 = vsel %vm202, %v4512, 0.0
    %4516 = vadd.xlane.f32.xlu0 %v4515
    %v4517 = vpop.xlane.xlu0 %4516
    %v4518 = vmul.f32 %v4517, %v206
    %v4519 = vsub.f32 %v4512, %v4518
    %v4520 = vmul.f32 %v4519, %v4519
    %v4521 = vsel %vm202, %v4520, 0.0
    %4522 = vadd.xlane.f32.xlu0 %v4521
    %v4523 = vpop.xlane.xlu0 %4522
    %v4524 = vmul.f32 %v4523, %v206
    %v4525 = vadd.f32 %v4524, 1e-06
    %v4526 = vrsqrt.pop %v4525
    %v4527 = vmul.f32 %v4519, %v4526
    %v4528 = vlaneseq
    %v4529 = vshrl.u32 %v4528, 7
    %v4530 = vsub.s32 0, %v4529
    %v4531 = vrot.slane %v4513, %v4530
    %v4532 = vmul.f32 %v4527, %v4531
    %v4533 = vlaneseq
    %v4534 = vshrl.u32 %v4533, 7
    %v4535 = vsub.s32 0, %v4534
    %v4536 = vrot.slane %v4514, %v4535
    %v4537 = vadd.f32 %v4532, %v4536
    %v4538 = vld [vmem:[%s15] sm:$0xff]
    %v4539 = vld [vmem:[%s15 + $0x8] sm:$0xff]
    %v4540 = vld [vmem:[%s15 + $0x10] sm:$0xff]
    %v4541 = vld [vmem:[%s15 + $0x18] sm:$0xff]
    %v4542 = vpack.c.bf16 %v4537, %v4537
    %v4543 = vpack.c.bf16 %v4539, %v4538
    %v4544 = vpack.c.bf16 %v4541, %v4540
    %v4545 = vld [vmem:[%s16] sm:$0x1]
    %v4547 = vlaneseq
    %v4548 = vshrl.u32 %v4547, 7
    %v4549 = vsub.s32 0, %v4548
    %v4550 = vrot.slane %v4545, %v4549
    %v4553 = vsel %vm189, %v4542, 0
    %4555 = vmatprep.subr.bf16.mxu0 0
    %4556 = vmatpush1.bf16.msra.mxu0 %v4543
    %4557 = vmatprep.subr.bf16.mxu0 0
    %4558 = vmatpush1.bf16.msra.mxu0 %v4544
    %4559 = vmatprep.subr.bf16.mxu0 0
    %4560 = vmatpush1.bf16.msra.mxu0 0
    %4561 = vmatprep.subr.bf16.mxu0 0
    %4562 = vmatpush1.bf16.msra.mxu0 0
    %4563 = vmatprep.subr.bf16.mxu0 0
    %4564 = vmatpush1.bf16.msra.mxu0 0
    %4565 = vmatprep.subr.bf16.mxu0 0
    %4566 = vmatpush1.bf16.msra.mxu0 0
    %4567 = vmatprep.subr.bf16.mxu0 0
    %4568 = vmatpush1.bf16.msra.mxu0 0
    %4569 = vmatprep.subr.bf16.mxu0 0
    %4570 = vmatpush1.bf16.msra.mxu0 0
    %4571 = vmatprep.subr.bf16.mxu0 0
    %4572 = vmatpush1.bf16.msra.mxu0 0
    %4573 = vmatprep.subr.bf16.mxu0 0
    %4574 = vmatpush1.bf16.msra.mxu0 0
    %4575 = vmatprep.subr.bf16.mxu0 0
    %4576 = vmatpush1.bf16.msra.mxu0 0
    %4577 = vmatprep.subr.bf16.mxu0 0
    %4578 = vmatpush1.bf16.msra.mxu0 0
    %4579 = vmatprep.subr.bf16.mxu0 0
    %4580 = vmatpush1.bf16.msra.mxu0 0
    %4581 = vmatprep.subr.bf16.mxu0 0
    %4582 = vmatpush1.bf16.msra.mxu0 0
    %4583 = vmatprep.subr.bf16.mxu0 0
    %4584 = vmatpush1.bf16.msra.mxu0 0
    %4585 = vmatprep.subr.bf16.mxu0 0
    %4586 = vmatpush1.bf16.msra.mxu0 0
    %4587 = vmatprep.mubr.bf16.mxu0 0
    %4588 = vmatmul.mubr.bf16.gmra.mrb[0].mxu0 %v4553
    %v4589 = vpop.f32.mrb[0].mxu0
    %v4590 = vadd.f32 %v4550, %v4589
    %v4591 = vpop.f32.mrb[0].mxu0
    %v4592 = vpop.f32.mrb[0].mxu0
    %v4593 = vpop.f32.mrb[0].mxu0
    %4594 = vdwg.mxu0
    %vm4595 = vcmask 123904
    %4596 = vst.msk [vmem:[#allocation3] sm:$0x3] %vm4595, %v4590
    // Predicated region
    $region70: #{vit_forward.1} parent=1 // pred_check
      _
    $region71: #{vit_forward.1} parent=1 // pred_check_branch
      %4598 = sbr.rel (0) target = $region73
    $region72: #{vit_forward.1} parent=1 // pred_region
      %s4600 = ssub.s32 32, 32
      %4601 = vsyncadd [#allocation4], %s4600
      %s4603 = sshll.u32 [#allocation3], 4
      %s4604 = int_to_ptr.vmem [resolvable:$true] %s4603
      %4606 = dma.vmem_to_hbm [thread:$0]  %s4604, 32, %s17, [#allocation4]
    $region73: #{vit_forward.1} parent=1 // pred_fallthru
      _
    // Predicated region
    $region74: #{vit_forward.1} parent=1 // pred_check
      _
    $region75: #{vit_forward.1} parent=1 // pred_check_branch
      %4608 = sbr.rel (0) target = $region77
    $region76: #{vit_forward.1} parent=1 // pred_region
      _
    $region77: #{vit_forward.1} parent=1 // pred_fallthru
      _
    // Predicated region
    $region78: #{vit_forward.1} parent=1 // pred_check
      _
    $region79: #{vit_forward.1} parent=1 // pred_check_branch
      %4610 = sbr.rel (0) target = $region81
    $region80: #{vit_forward.1} parent=1 // pred_region
      %4611 = dma.done [#allocation4], 32
    $region81: #{vit_forward.1} parent=1 // pred_fallthru
      _
    // Predicated region
    $region82: #{vit_forward.1} parent=1 // pred_check
      _
    $region83: #{vit_forward.1} parent=1 // pred_check_branch
      %4613 = sbr.rel (0) target = $region85
    $region84: #{vit_forward.1} parent=1 // pred_region
      _
    $region85: #{vit_forward.1} parent=1 // pred_fallthru
      _
    %4614 = vsyncpa [#allocation4], 1

</llo_original>
